<compile_context>
chip_gen: v5e
topology: v5e:2x2
jax: 0.10.0
libtpu: 0.0.40
codegen_flags: <defaults>
</compile_context>

<pallas_src>
import functools
import math

import jax
import jax.numpy as jnp
from jax.experimental import pallas as pl
from jax.experimental.pallas import tpu as pltpu


# ----------------------------------------------------------------------------
# model dims (toy, representative)
# ----------------------------------------------------------------------------
C_IN = 4       # latent channels (SD latent has 4)
C = 32         # block channels
G = 8          # groupnorm groups
T0 = 32        # sinusoidal time-proj dim
TEMB = 64      # time embedding dim
D_ATTN = 32    # attention inner dim
C_CTX = 32     # text-encoder hidden size
SEQ = 8        # text sequence length


def _silu(x):
    return x * (1.0 / (1.0 + jnp.exp(-x)))


# ----------------------------------------------------------------------------
# Fused Pallas kernel: whole mini-UNet forward for one batch element.
# All activations are channels-first (C, HW) with HW on the lane axis.
# ----------------------------------------------------------------------------

def _fused_unet_kernel(
    # per-batch inputs
    t_ref,        # (1, T0, 1)        sinusoidal timestep embedding (column)
    x_ref,        # (1, C_IN, HW)     latent sample, channels-first, HW flat
    ctx_ref,      # (1, SEQ, C_CTX)   text-encoder hidden states
    # grid-invariant weights (fetched once, stay VMEM-resident)
    tew1_ref,     # (TEMB, T0)   f32
    tew2_ref,     # (TEMB, TEMB) f32
    teb_ref,      # (TEMB, 2)    f32   columns: [b1, b2]
    tprojw_ref,   # (C, TEMB)    f32
    cvec_ref,     # (C, 13)      f32   per-channel gammas/betas/biases (see _pack_params)
    agn_ref,      # (C, C)       f32   group-averaging matrix (1/(HW*cg) on same-group)
    masks_ref,    # (9, HW)      f32   3x3 tap validity masks (zero halo)
    cinw_ref,     # (C, 9*C_IN)  f32   conv_in weight, tap-major
    convw_ref,    # (2C+C_IN, 9*C) bf16  rows [0:C]=rconv1, [C:2C]=rconv2, [2C:2C+C_IN]=conv_out
    attnw_ref,    # (D+C+C_CTX, 2D) bf16 rows [0:D]=wq^T*scale, [D:D+C]=wo^T, [D+C:..]=[wk|wv]
    # output
    o_ref,        # (1, C_IN, HW)     lane-dense output
    *, H, W, eps,
):
    f32, bf16 = jnp.float32, jnp.bfloat16
    HW = H * W
    D = D_ATTN

    agn = agn_ref[...]                         # (C, C)
    masks = masks_ref[...]                     # (9, HW)

    def col(i):
        return cvec_ref[:, i:i + 1]            # (C, 1) f32

    def group_norm(h, gi, bi, silu):
        # h: (C, HW) f32.  Group stats via tiny dots against the precomputed
        # averaging matrix; centered two-pass variance (numerically safe).
        s = jnp.sum(h, axis=1, keepdims=True)                          # (C, 1)
        mean = jnp.dot(agn, s, preferred_element_type=f32)             # (C, 1)
        d = h - mean
        vs = jnp.sum(d * d, axis=1, keepdims=True)                     # (C, 1)
        var = jnp.dot(agn, vs, preferred_element_type=f32)             # (C, 1)
        y = d * (jax.lax.rsqrt(var + eps) * col(gi)) + col(bi)
        return _silu(y) if silu else y

    def shifted_taps(h):
        # Yield the 9 spatially-shifted (zero-padded) taps of h: (cin, HW).
        # A (dh, dw) shift is a lane roll by -(dh*W+dw) plus a boundary mask.
        t = 0
        for dh in (-1, 0, 1):
            for dw in (-1, 0, 1):
                off = dh * W + dw
                if off == 0:
                    tap = h                                            # mask is all-ones
                else:
                    tap = pltpu.roll(h, shift=(-off) % HW, axis=1) * masks[t:t + 1, :]
                yield t, tap
                t += 1

    def conv3x3(h, w_bf16, bias_col):
        # h: (C, HW) f32; w_bf16: (cout, 9*C).  One bf16 MXU matmul, K = 9*C,
        # N = HW (lane-dense); patches built as a value (no scratch traffic).
        patches = jnp.concatenate(
            [tap.astype(bf16) for _, tap in shifted_taps(h)], axis=0)   # (9*C, HW)
        y = jnp.dot(w_bf16, patches, preferred_element_type=f32)        # (cout, HW)
        return y + bias_col

    # ---- time-embedding MLP (column orientation; tiny, fused) --------------
    t0 = t_ref[0]                                                       # (T0, 1)
    h1 = _silu(jnp.dot(tew1_ref[...], t0, preferred_element_type=f32)
               + teb_ref[:, 0:1])
    temb = (jnp.dot(tew2_ref[...], h1, preferred_element_type=f32)
            + teb_ref[:, 1:2])
    tproj = (jnp.dot(tprojw_ref[...], _silu(temb), preferred_element_type=f32)
             + col(4))                                                  # (C, 1)

    # ---- conv_in: dedicated K = 9*C_IN path (9 narrow taps, accumulated) ----
    x_in = x_ref[0]                                                     # (C_IN, HW)
    cinw = cinw_ref[...]                                                # (C, 9*C_IN)
    acc = jnp.zeros((C, HW), f32)
    for t, tap in shifted_taps(x_in):
        acc = acc + jnp.dot(cinw[:, t * C_IN:(t + 1) * C_IN], tap,
                            preferred_element_type=f32)
    hcur = acc + col(0)                                                 # (C, HW)

    # ---- ResNet block: GN+SiLU -> conv -> +temb -> GN+SiLU -> conv -> +resid
    resid = hcur
    hn = group_norm(hcur, 1, 2, silu=True)
    hc = conv3x3(hn, convw_ref[0:C, :], col(3)) + tproj                 # temb inject
    hn2 = group_norm(hc, 5, 6, silu=True)
    hcur = resid + conv3x3(hn2, convw_ref[C:2 * C, :], col(7))

    # ---- cross-attention block (single head; scale folded into Wq) ----------
    a_in = group_norm(hcur, 8, 9, silu=False)
    ctx = ctx_ref[0]                                                    # (SEQ, C_CTX)
    q_t = jnp.dot(attnw_ref[0:D, 0:C], a_in.astype(bf16),
                  preferred_element_type=f32)                           # (D, HW)
    kv = jnp.dot(ctx.astype(bf16), attnw_ref[D + C:D + C + C_CTX, :],
                 preferred_element_type=f32)                            # (SEQ, 2D)
    k, v = kv[:, 0:D], kv[:, D:2 * D]                                   # (SEQ, D) each
    s = jnp.dot(k.astype(bf16), q_t.astype(bf16),
                preferred_element_type=f32)                             # (SEQ, HW)
    s = s - jnp.max(s, axis=0, keepdims=True)
    p = jnp.exp(s)
    p = p * pl.reciprocal(jnp.sum(p, axis=0, keepdims=True), approx=False)
    a_t = jnp.dot(v.T.astype(bf16), p.astype(bf16),
                  preferred_element_type=f32)                           # (D, HW)
    hcur = hcur + jnp.dot(attnw_ref[D:D + C, 0:D], a_t.astype(bf16),
                          preferred_element_type=f32)                   # residual

    # ---- GroupNorm + SiLU + conv_out -> lane-dense (C_IN, HW) output --------
    hn3 = group_norm(hcur, 10, 11, silu=True)
    y = conv3x3(hn3, convw_ref[2 * C:2 * C + C_IN, :],
                cvec_ref[0:C_IN, 12:13])                                # (C_IN, HW)
    o_ref[0] = y.astype(o_ref.dtype)


# ----------------------------------------------------------------------------
# Parameter init (PyTorch-like layout) and packing for the kernel
# ----------------------------------------------------------------------------

def init_params(key):
    ks = jax.random.split(key, 16)
    w = lambda k, s: 0.05 * jax.random.normal(k, s, jnp.float32)
    return {
        "te_w1": w(ks[0], (T0, TEMB)), "te_b1": jnp.zeros((TEMB,), jnp.float32),
        "te_w2": w(ks[1], (TEMB, TEMB)), "te_b2": jnp.zeros((TEMB,), jnp.float32),
        "conv_in_w": w(ks[2], (9, C_IN, C)), "conv_in_b": jnp.zeros((C,), jnp.float32),
        "gn1_g": jnp.ones((C,), jnp.float32), "gn1_b": jnp.zeros((C,), jnp.float32),
        "rconv1_w": w(ks[3], (9, C, C)), "rconv1_b": jnp.zeros((C,), jnp.float32),
        "tproj_w": w(ks[4], (TEMB, C)), "tproj_b": jnp.zeros((C,), jnp.float32),
        "gn2_g": jnp.ones((C,), jnp.float32), "gn2_b": jnp.zeros((C,), jnp.float32),
        "rconv2_w": w(ks[5], (9, C, C)), "rconv2_b": jnp.zeros((C,), jnp.float32),
        "gna_g": jnp.ones((C,), jnp.float32), "gna_b": jnp.zeros((C,), jnp.float32),
        "wq": w(ks[6], (C, D_ATTN)), "wk": w(ks[7], (C_CTX, D_ATTN)),
        "wv": w(ks[8], (C_CTX, D_ATTN)), "wo": w(ks[9], (D_ATTN, C)),
        "gno_g": jnp.ones((C,), jnp.float32), "gno_b": jnp.zeros((C,), jnp.float32),
        "conv_out_w": w(ks[10], (9, C, C_IN)), "conv_out_b": jnp.zeros((C_IN,), jnp.float32),
    }


def _pack_params(p, h, w):
    """Channels-first / bf16 packing (wrapper-side tiny XLA ops, once per call)."""
    f32, bf16 = jnp.float32, jnp.bfloat16
    hw = h * w
    cg = C // G

    def conv_t(wk):                                   # (9, cin, cout) -> (cout, 9*cin)
        k9, cin, cout = wk.shape
        return jnp.transpose(wk.reshape(k9 * cin, cout)).astype(f32)

    # bf16 conv weight pack: rows [0:C]=rconv1, [C:2C]=rconv2, [2C:2C+C_IN]=conv_out
    convw = jnp.concatenate(
        [conv_t(p["rconv1_w"]), conv_t(p["rconv2_w"]), conv_t(p["conv_out_w"])],
        axis=0).astype(bf16)                          # (2C+C_IN, 9*C)

    # bf16 attention weight pack (scale folded into Wq; K|V fused)
    scale = 1.0 / math.sqrt(D_ATTN)
    zpad = jnp.zeros((D_ATTN, D_ATTN), f32)
    wq_t = jnp.concatenate([jnp.transpose(p["wq"]) * scale, zpad], axis=1)  # (D, 2D)
    wo_t = jnp.concatenate([jnp.transpose(p["wo"]), zpad], axis=1)          # (C, 2D)
    wkv = jnp.concatenate([p["wk"], p["wv"]], axis=1)                       # (C_CTX, 2D)
    attnw = jnp.concatenate([wq_t, wo_t, wkv], axis=0).astype(bf16)         # (D+C+C_CTX, 2D)

    # per-channel vectors (gammas / betas / conv biases), columns:
    cvec = jnp.stack([
        p["conv_in_b"],                                       # 0
        p["gn1_g"], p["gn1_b"], p["rconv1_b"], p["tproj_b"],  # 1..4
        p["gn2_g"], p["gn2_b"], p["rconv2_b"],                # 5..7
        p["gna_g"], p["gna_b"],                               # 8..9
        p["gno_g"], p["gno_b"],                               # 10..11
        jnp.zeros((C,), f32).at[:C_IN].set(p["conv_out_b"]),  # 12
    ], axis=1)                                                # (C, 13)

    # group-averaging matrix for GroupNorm statistics
    gid = jnp.arange(C) // cg
    agn = (gid[:, None] == gid[None, :]).astype(f32) / float(hw * cg)       # (C, C)

    # 3x3 tap validity masks (zero halo) over the flattened HW lane axis
    pos = jnp.arange(hw)
    hh, ww = pos // w, pos % w
    mrows = []
    for dh in (-1, 0, 1):
        for dw in (-1, 0, 1):
            ok = (hh + dh >= 0) & (hh + dh < h) & (ww + dw >= 0) & (ww + dw < w)
            mrows.append(ok.astype(f32))
    masks = jnp.stack(mrows, axis=0)                                         # (9, HW)

    return {
        "tew1": jnp.transpose(p["te_w1"]),        # (TEMB, T0)
        "tew2": jnp.transpose(p["te_w2"]),        # (TEMB, TEMB)
        "teb": jnp.stack([p["te_b1"], p["te_b2"]], axis=1),   # (TEMB, 2)
        "tprojw": jnp.transpose(p["tproj_w"]),    # (C, TEMB)
        "cvec": cvec, "agn": agn, "masks": masks,
        "cinw": conv_t(p["conv_in_w"]),           # (C, 9*C_IN) f32
        "convw": convw, "attnw": attnw,
    }


# ----------------------------------------------------------------------------
# Mini UNet2DConditionModel + UnetExportWrapper semantics
# ----------------------------------------------------------------------------

def timestep_embedding(t, dim):
    # sinusoidal "time_proj" (tiny glue; XLA)
    half = dim // 2
    freqs = jnp.exp(-math.log(10000.0)
                    * jnp.arange(half, dtype=jnp.float32) / half)
    args = t.astype(jnp.float32)[:, None] * freqs[None, :]
    return jnp.concatenate([jnp.sin(args), jnp.cos(args)], axis=-1)


def mini_unet(params, sample, timesteps, encoder_hidden_states, return_dict=True):
    """Representative UNet2DConditionModel forward, fully fused into one
    Pallas kernel invocation per batch element (grid=(B,), parallel).

    sample:                 (B, 4, H, W)   NCHW, like PyTorch
    timesteps:              (B,)           int
    encoder_hidden_states:  (B, SEQ, C_CTX)
    """
    bsz, cin, h, w = sample.shape
    hw = h * w
    pk = _pack_params(params, h, w)

    t_emb = timestep_embedding(timesteps, T0).reshape(bsz, T0, 1)      # (B, T0, 1)
    x = sample.reshape(bsz, cin, hw).astype(jnp.float32)               # no transpose
    ctx = encoder_hidden_states.astype(jnp.float32)                    # (B, S, Cctx)
    seq, cctx = ctx.shape[1], ctx.shape[2]

    weights = [pk["tew1"], pk["tew2"], pk["teb"], pk["tprojw"], pk["cvec"],
               pk["agn"], pk["masks"], pk["cinw"], pk["convw"], pk["attnw"]]

    out_flat = pl.pallas_call(
        functools.partial(_fused_unet_kernel, H=h, W=w, eps=1e-5),
        grid=(bsz,),
        in_specs=[
            pl.BlockSpec((1, T0, 1), lambda i: (i, 0, 0)),
            pl.BlockSpec((1, cin, hw), lambda i: (i, 0, 0)),
            pl.BlockSpec((1, seq, cctx), lambda i: (i, 0, 0)),
        ] + [pl.BlockSpec(a.shape, lambda i, _n=a.ndim: (0,) * _n) for a in weights],
        out_specs=pl.BlockSpec((1, C_IN, hw), lambda i: (i, 0, 0)),
        out_shape=jax.ShapeDtypeStruct((bsz, C_IN, hw), jnp.float32),
        compiler_params=pltpu.CompilerParams(
            dimension_semantics=("parallel",)),      # B=2 -> both v7x TCs busy
    )(t_emb, x, ctx, *weights)

    out = out_flat.reshape(bsz, C_IN, h, w)          # free reshape (already NCHW order)
    if return_dict:
        return {"sample": out}
    return (out,)


def unet_export_wrapper_forward(params, *args, **kwargs):
    """Exact semantics of UnetExportWrapper.forward:
    delegate to the wrapped unet with return_dict=False (-> tuple output)."""
    return mini_unet(params, *args, **kwargs, return_dict=False)


# ----------------------------------------------------------------------------
# main
# ----------------------------------------------------------------------------

if __name__ == "__main__":
    key = jax.random.PRNGKey(0)
    k_sample, k_ctx, k_params = jax.random.split(key, 3)

    B, H, W = 2, 16, 16
    sample = jax.random.normal(k_sample, (B, C_IN, H, W), jnp.float32)   # NCHW
    timesteps = jnp.array([10, 500], dtype=jnp.int32)
    encoder_hidden_states = jax.random.normal(k_ctx, (B, SEQ, C_CTX), jnp.float32)

    params = init_params(k_params)

    fwd = jax.jit(unet_export_wrapper_forward)
    out = fwd(params, sample, timesteps, encoder_hidden_states)
    out = jax.block_until_ready(out)

    assert isinstance(out, tuple) and len(out) == 1          # return_dict=False
    assert out[0].shape == (B, C_IN, H, W)
    assert out[0].dtype == jnp.float32
    assert bool(jnp.all(jnp.isfinite(out[0])))

    print("KERNEL_OK")
</pallas_src>

<mosaic_0001>
module attributes {stable_mosaic.version = 11 : i64} {
  func.func @_fused_unet_kernel(%arg0: i32, %arg1: memref<1x32x1xf32, #tpu.memory_space<vmem>>, %arg2: memref<1x4x256xf32, #tpu.memory_space<vmem>>, %arg3: memref<1x8x32xf32, #tpu.memory_space<vmem>>, %arg4: memref<64x32xf32, #tpu.memory_space<vmem>>, %arg5: memref<64x64xf32, #tpu.memory_space<vmem>>, %arg6: memref<64x2xf32, #tpu.memory_space<vmem>>, %arg7: memref<32x64xf32, #tpu.memory_space<vmem>>, %arg8: memref<32x13xf32, #tpu.memory_space<vmem>>, %arg9: memref<32x32xf32, #tpu.memory_space<vmem>>, %arg10: memref<9x256xf32, #tpu.memory_space<vmem>>, %arg11: memref<32x36xf32, #tpu.memory_space<vmem>>, %arg12: memref<68x288xbf16, #tpu.memory_space<vmem>>, %arg13: memref<96x64xbf16, #tpu.memory_space<vmem>>, %arg14: memref<1x4x256xf32, #tpu.memory_space<vmem>>) attributes {dimension_semantics = [#tpu.dimension_semantics<parallel>], iteration_bounds = array<i64: 2>, scalar_prefetch = 0 : i64, scratch_operands = 0 : i64, tpu.core_type = #tpu.core_type<tc>, window_params = [{transform_indices = @transform_0, window_bounds = array<i64: 1, 32, 1>}, {transform_indices = @transform_1, window_bounds = array<i64: 1, 4, 256>}, {transform_indices = @transform_2, window_bounds = array<i64: 1, 8, 32>}, {pipeline_mode = #tpu.pipeline_mode<synchronous>, transform_indices = @transform_3, window_bounds = array<i64: 64, 32>}, {pipeline_mode = #tpu.pipeline_mode<synchronous>, transform_indices = @transform_4, window_bounds = array<i64: 64, 64>}, {pipeline_mode = #tpu.pipeline_mode<synchronous>, transform_indices = @transform_5, window_bounds = array<i64: 64, 2>}, {pipeline_mode = #tpu.pipeline_mode<synchronous>, transform_indices = @transform_6, window_bounds = array<i64: 32, 64>}, {pipeline_mode = #tpu.pipeline_mode<synchronous>, transform_indices = @transform_7, window_bounds = array<i64: 32, 13>}, {pipeline_mode = #tpu.pipeline_mode<synchronous>, transform_indices = @transform_8, window_bounds = array<i64: 32, 32>}, {pipeline_mode = #tpu.pipeline_mode<synchronous>, transform_indices = @transform_9, window_bounds = array<i64: 9, 256>}, {pipeline_mode = #tpu.pipeline_mode<synchronous>, transform_indices = @transform_10, window_bounds = array<i64: 32, 36>}, {pipeline_mode = #tpu.pipeline_mode<synchronous>, transform_indices = @transform_11, window_bounds = array<i64: 68, 288>}, {pipeline_mode = #tpu.pipeline_mode<synchronous>, transform_indices = @transform_12, window_bounds = array<i64: 96, 64>}, {transform_indices = @transform_13, window_bounds = array<i64: 1, 4, 256>}]} {
    %c0 = arith.constant 0 : index
    %c0_0 = arith.constant 0 : index
    %0 = vector.load %arg9[%c0, %c0_0] : memref<32x32xf32, #tpu.memory_space<vmem>>, vector<32x32xf32>
    %c0_1 = arith.constant 0 : index
    %c0_2 = arith.constant 0 : index
    %1 = vector.load %arg10[%c0_1, %c0_2] : memref<9x256xf32, #tpu.memory_space<vmem>>, vector<9x256xf32>
    %c0_3 = arith.constant 0 : index
    %c0_4 = arith.constant 0 : index
    %c0_5 = arith.constant 0 : index
    %2 = vector.load %arg1[%c0_3, %c0_4, %c0_5] : memref<1x32x1xf32, #tpu.memory_space<vmem>>, vector<1x32x1xf32>
    %3 = vector.shape_cast %2 : vector<1x32x1xf32> to vector<32x1xf32>
    %c0_6 = arith.constant 0 : index
    %c0_7 = arith.constant 0 : index
    %4 = vector.load %arg4[%c0_6, %c0_7] : memref<64x32xf32, #tpu.memory_space<vmem>>, vector<64x32xf32>
    %cst = arith.constant dense<0.000000e+00> : vector<64x1xf32>
    %5 = tpu.matmul %4, %3, %cst {dimension_numbers = #tpu.dot_dimension_numbers<[1], [0], [0], [1], [0, 0, 1, 1], [], []>} : vector<64x32xf32>, vector<32x1xf32>, vector<64x1xf32> -> vector<64x1xf32>
    %c0_8 = arith.constant 0 : index
    %c0_9 = arith.constant 0 : index
    %6 = vector.load %arg6[%c0_8, %c0_9] : memref<64x2xf32, #tpu.memory_space<vmem>>, vector<64x1xf32>
    %7 = arith.addf %5, %6 : vector<64x1xf32>
    %cst_10 = arith.constant 0.000000e+00 : f32
    %8 = vector.broadcast %cst_10 : f32 to vector<64x1xf32>
    %9 = arith.subf %8, %7 : vector<64x1xf32>
    %10 = math.exp %9 : vector<64x1xf32>
    %cst_11 = arith.constant 1.000000e+00 : f32
    %11 = vector.broadcast %cst_11 : f32 to vector<64x1xf32>
    %12 = arith.addf %11, %10 : vector<64x1xf32>
    %cst_12 = arith.constant 1.000000e+00 : f32
    %13 = vector.broadcast %cst_12 : f32 to vector<64x1xf32>
    %14 = arith.divf %13, %12 : vector<64x1xf32>
    %15 = arith.mulf %7, %14 : vector<64x1xf32>
    %c0_13 = arith.constant 0 : index
    %c0_14 = arith.constant 0 : index
    %16 = vector.load %arg5[%c0_13, %c0_14] : memref<64x64xf32, #tpu.memory_space<vmem>>, vector<64x64xf32>
    %cst_15 = arith.constant dense<0.000000e+00> : vector<64x1xf32>
    %17 = tpu.matmul %16, %15, %cst_15 {dimension_numbers = #tpu.dot_dimension_numbers<[1], [0], [0], [1], [0, 0, 1, 1], [], []>} : vector<64x64xf32>, vector<64x1xf32>, vector<64x1xf32> -> vector<64x1xf32>
    %c0_16 = arith.constant 0 : index
    %c1 = arith.constant 1 : index
    %18 = vector.load %arg6[%c0_16, %c1] : memref<64x2xf32, #tpu.memory_space<vmem>>, vector<64x1xf32>
    %19 = arith.addf %17, %18 : vector<64x1xf32>
    %c0_17 = arith.constant 0 : index
    %c0_18 = arith.constant 0 : index
    %20 = vector.load %arg7[%c0_17, %c0_18] : memref<32x64xf32, #tpu.memory_space<vmem>>, vector<32x64xf32>
    %cst_19 = arith.constant 0.000000e+00 : f32
    %21 = vector.broadcast %cst_19 : f32 to vector<64x1xf32>
    %22 = arith.subf %21, %19 : vector<64x1xf32>
    %23 = math.exp %22 : vector<64x1xf32>
    %cst_20 = arith.constant 1.000000e+00 : f32
    %24 = vector.broadcast %cst_20 : f32 to vector<64x1xf32>
    %25 = arith.addf %24, %23 : vector<64x1xf32>
    %cst_21 = arith.constant 1.000000e+00 : f32
    %26 = vector.broadcast %cst_21 : f32 to vector<64x1xf32>
    %27 = arith.divf %26, %25 : vector<64x1xf32>
    %28 = arith.mulf %19, %27 : vector<64x1xf32>
    %cst_22 = arith.constant dense<0.000000e+00> : vector<32x1xf32>
    %29 = tpu.matmul %20, %28, %cst_22 {dimension_numbers = #tpu.dot_dimension_numbers<[1], [0], [0], [1], [0, 0, 1, 1], [], []>} : vector<32x64xf32>, vector<64x1xf32>, vector<32x1xf32> -> vector<32x1xf32>
    %c0_23 = arith.constant 0 : index
    %c4 = arith.constant 4 : index
    %30 = vector.load %arg8[%c0_23, %c4] : memref<32x13xf32, #tpu.memory_space<vmem>>, vector<32x1xf32>
    %31 = arith.addf %29, %30 : vector<32x1xf32>
    %c0_24 = arith.constant 0 : index
    %c0_25 = arith.constant 0 : index
    %c0_26 = arith.constant 0 : index
    %32 = vector.load %arg2[%c0_24, %c0_25, %c0_26] : memref<1x4x256xf32, #tpu.memory_space<vmem>>, vector<1x4x256xf32>
    %33 = vector.shape_cast %32 : vector<1x4x256xf32> to vector<4x256xf32>
    %c0_27 = arith.constant 0 : index
    %c0_28 = arith.constant 0 : index
    %34 = vector.load %arg11[%c0_27, %c0_28] : memref<32x36xf32, #tpu.memory_space<vmem>>, vector<32x36xf32>
    %cst_29 = arith.constant 0.000000e+00 : f32
    %35 = vector.broadcast %cst_29 : f32 to vector<32x256xf32>
    %c17_i32 = arith.constant 17 : i32
    %36 = tpu.dynamic_rotate %33 by %c17_i32 dim 1 : vector<4x256xf32>, i32 -> vector<4x256xf32>
    %37 = vector.extract_strided_slice %1 {offsets = [0, 0], sizes = [1, 256], strides = [1, 1]} : vector<9x256xf32> to vector<1x256xf32>
    %38 = vector.broadcast %37 : vector<1x256xf32> to vector<4x256xf32>
    %39 = arith.mulf %36, %38 : vector<4x256xf32>
    %40 = vector.extract_strided_slice %34 {offsets = [0, 0], sizes = [32, 4], strides = [1, 1]} : vector<32x36xf32> to vector<32x4xf32>
    %cst_30 = arith.constant dense<0.000000e+00> : vector<32x256xf32>
    %41 = tpu.matmul %40, %39, %cst_30 {dimension_numbers = #tpu.dot_dimension_numbers<[1], [0], [0], [1], [0, 0, 1, 1], [], []>} : vector<32x4xf32>, vector<4x256xf32>, vector<32x256xf32> -> vector<32x256xf32>
    %42 = arith.addf %35, %41 : vector<32x256xf32>
    %c16_i32 = arith.constant 16 : i32
    %43 = tpu.dynamic_rotate %33 by %c16_i32 dim 1 : vector<4x256xf32>, i32 -> vector<4x256xf32>
    %44 = vector.extract_strided_slice %1 {offsets = [1, 0], sizes = [1, 256], strides = [1, 1]} : vector<9x256xf32> to vector<1x256xf32>
    %45 = vector.broadcast %44 : vector<1x256xf32> to vector<4x256xf32>
    %46 = arith.mulf %43, %45 : vector<4x256xf32>
    %47 = vector.extract_strided_slice %34 {offsets = [0, 4], sizes = [32, 4], strides = [1, 1]} : vector<32x36xf32> to vector<32x4xf32>
    %cst_31 = arith.constant dense<0.000000e+00> : vector<32x256xf32>
    %48 = tpu.matmul %47, %46, %cst_31 {dimension_numbers = #tpu.dot_dimension_numbers<[1], [0], [0], [1], [0, 0, 1, 1], [], []>} : vector<32x4xf32>, vector<4x256xf32>, vector<32x256xf32> -> vector<32x256xf32>
    %49 = arith.addf %42, %48 : vector<32x256xf32>
    %c15_i32 = arith.constant 15 : i32
    %50 = tpu.dynamic_rotate %33 by %c15_i32 dim 1 : vector<4x256xf32>, i32 -> vector<4x256xf32>
    %51 = vector.extract_strided_slice %1 {offsets = [2, 0], sizes = [1, 256], strides = [1, 1]} : vector<9x256xf32> to vector<1x256xf32>
    %52 = vector.broadcast %51 : vector<1x256xf32> to vector<4x256xf32>
    %53 = arith.mulf %50, %52 : vector<4x256xf32>
    %54 = vector.extract_strided_slice %34 {offsets = [0, 8], sizes = [32, 4], strides = [1, 1]} : vector<32x36xf32> to vector<32x4xf32>
    %cst_32 = arith.constant dense<0.000000e+00> : vector<32x256xf32>
    %55 = tpu.matmul %54, %53, %cst_32 {dimension_numbers = #tpu.dot_dimension_numbers<[1], [0], [0], [1], [0, 0, 1, 1], [], []>} : vector<32x4xf32>, vector<4x256xf32>, vector<32x256xf32> -> vector<32x256xf32>
    %56 = arith.addf %49, %55 : vector<32x256xf32>
    %c1_i32 = arith.constant 1 : i32
    %57 = tpu.dynamic_rotate %33 by %c1_i32 dim 1 : vector<4x256xf32>, i32 -> vector<4x256xf32>
    %58 = vector.extract_strided_slice %1 {offsets = [3, 0], sizes = [1, 256], strides = [1, 1]} : vector<9x256xf32> to vector<1x256xf32>
    %59 = vector.broadcast %58 : vector<1x256xf32> to vector<4x256xf32>
    %60 = arith.mulf %57, %59 : vector<4x256xf32>
    %61 = vector.extract_strided_slice %34 {offsets = [0, 12], sizes = [32, 4], strides = [1, 1]} : vector<32x36xf32> to vector<32x4xf32>
    %cst_33 = arith.constant dense<0.000000e+00> : vector<32x256xf32>
    %62 = tpu.matmul %61, %60, %cst_33 {dimension_numbers = #tpu.dot_dimension_numbers<[1], [0], [0], [1], [0, 0, 1, 1], [], []>} : vector<32x4xf32>, vector<4x256xf32>, vector<32x256xf32> -> vector<32x256xf32>
    %63 = arith.addf %56, %62 : vector<32x256xf32>
    %64 = vector.extract_strided_slice %34 {offsets = [0, 16], sizes = [32, 4], strides = [1, 1]} : vector<32x36xf32> to vector<32x4xf32>
    %cst_34 = arith.constant dense<0.000000e+00> : vector<32x256xf32>
    %65 = tpu.matmul %64, %33, %cst_34 {dimension_numbers = #tpu.dot_dimension_numbers<[1], [0], [0], [1], [0, 0, 1, 1], [], []>} : vector<32x4xf32>, vector<4x256xf32>, vector<32x256xf32> -> vector<32x256xf32>
    %66 = arith.addf %63, %65 : vector<32x256xf32>
    %c255_i32 = arith.constant 255 : i32
    %67 = tpu.dynamic_rotate %33 by %c255_i32 dim 1 : vector<4x256xf32>, i32 -> vector<4x256xf32>
    %68 = vector.extract_strided_slice %1 {offsets = [5, 0], sizes = [1, 256], strides = [1, 1]} : vector<9x256xf32> to vector<1x256xf32>
    %69 = vector.broadcast %68 : vector<1x256xf32> to vector<4x256xf32>
    %70 = arith.mulf %67, %69 : vector<4x256xf32>
    %71 = vector.extract_strided_slice %34 {offsets = [0, 20], sizes = [32, 4], strides = [1, 1]} : vector<32x36xf32> to vector<32x4xf32>
    %cst_35 = arith.constant dense<0.000000e+00> : vector<32x256xf32>
    %72 = tpu.matmul %71, %70, %cst_35 {dimension_numbers = #tpu.dot_dimension_numbers<[1], [0], [0], [1], [0, 0, 1, 1], [], []>} : vector<32x4xf32>, vector<4x256xf32>, vector<32x256xf32> -> vector<32x256xf32>
    %73 = arith.addf %66, %72 : vector<32x256xf32>
    %c241_i32 = arith.constant 241 : i32
    %74 = tpu.dynamic_rotate %33 by %c241_i32 dim 1 : vector<4x256xf32>, i32 -> vector<4x256xf32>
    %75 = vector.extract_strided_slice %1 {offsets = [6, 0], sizes = [1, 256], strides = [1, 1]} : vector<9x256xf32> to vector<1x256xf32>
    %76 = vector.broadcast %75 : vector<1x256xf32> to vector<4x256xf32>
    %77 = arith.mulf %74, %76 : vector<4x256xf32>
    %78 = vector.extract_strided_slice %34 {offsets = [0, 24], sizes = [32, 4], strides = [1, 1]} : vector<32x36xf32> to vector<32x4xf32>
    %cst_36 = arith.constant dense<0.000000e+00> : vector<32x256xf32>
    %79 = tpu.matmul %78, %77, %cst_36 {dimension_numbers = #tpu.dot_dimension_numbers<[1], [0], [0], [1], [0, 0, 1, 1], [], []>} : vector<32x4xf32>, vector<4x256xf32>, vector<32x256xf32> -> vector<32x256xf32>
    %80 = arith.addf %73, %79 : vector<32x256xf32>
    %c240_i32 = arith.constant 240 : i32
    %81 = tpu.dynamic_rotate %33 by %c240_i32 dim 1 : vector<4x256xf32>, i32 -> vector<4x256xf32>
    %82 = vector.extract_strided_slice %1 {offsets = [7, 0], sizes = [1, 256], strides = [1, 1]} : vector<9x256xf32> to vector<1x256xf32>
    %83 = vector.broadcast %82 : vector<1x256xf32> to vector<4x256xf32>
    %84 = arith.mulf %81, %83 : vector<4x256xf32>
    %85 = vector.extract_strided_slice %34 {offsets = [0, 28], sizes = [32, 4], strides = [1, 1]} : vector<32x36xf32> to vector<32x4xf32>
    %cst_37 = arith.constant dense<0.000000e+00> : vector<32x256xf32>
    %86 = tpu.matmul %85, %84, %cst_37 {dimension_numbers = #tpu.dot_dimension_numbers<[1], [0], [0], [1], [0, 0, 1, 1], [], []>} : vector<32x4xf32>, vector<4x256xf32>, vector<32x256xf32> -> vector<32x256xf32>
    %87 = arith.addf %80, %86 : vector<32x256xf32>
    %c239_i32 = arith.constant 239 : i32
    %88 = tpu.dynamic_rotate %33 by %c239_i32 dim 1 : vector<4x256xf32>, i32 -> vector<4x256xf32>
    %89 = vector.extract_strided_slice %1 {offsets = [8, 0], sizes = [1, 256], strides = [1, 1]} : vector<9x256xf32> to vector<1x256xf32>
    %90 = vector.broadcast %89 : vector<1x256xf32> to vector<4x256xf32>
    %91 = arith.mulf %88, %90 : vector<4x256xf32>
    %92 = vector.extract_strided_slice %34 {offsets = [0, 32], sizes = [32, 4], strides = [1, 1]} : vector<32x36xf32> to vector<32x4xf32>
    %cst_38 = arith.constant dense<0.000000e+00> : vector<32x256xf32>
    %93 = tpu.matmul %92, %91, %cst_38 {dimension_numbers = #tpu.dot_dimension_numbers<[1], [0], [0], [1], [0, 0, 1, 1], [], []>} : vector<32x4xf32>, vector<4x256xf32>, vector<32x256xf32> -> vector<32x256xf32>
    %94 = arith.addf %87, %93 : vector<32x256xf32>
    %c0_39 = arith.constant 0 : index
    %c0_40 = arith.constant 0 : index
    %95 = vector.load %arg8[%c0_39, %c0_40] : memref<32x13xf32, #tpu.memory_space<vmem>>, vector<32x1xf32>
    %96 = vector.broadcast %95 : vector<32x1xf32> to vector<32x256xf32>
    %97 = arith.addf %94, %96 : vector<32x256xf32>
    %cst_41 = arith.constant dense<0.000000e+00> : vector<32xf32>
    %98 = vector.multi_reduction <add>, %97, %cst_41 [1] : vector<32x256xf32> to vector<32xf32>
    %99 = vector.shape_cast %98 : vector<32xf32> to vector<32x1xf32>
    %cst_42 = arith.constant dense<0.000000e+00> : vector<32x1xf32>
    %100 = tpu.matmul %0, %99, %cst_42 {dimension_numbers = #tpu.dot_dimension_numbers<[1], [0], [0], [1], [0, 0, 1, 1], [], []>} : vector<32x32xf32>, vector<32x1xf32>, vector<32x1xf32> -> vector<32x1xf32>
    %101 = vector.broadcast %100 : vector<32x1xf32> to vector<32x256xf32>
    %102 = arith.subf %97, %101 : vector<32x256xf32>
    %103 = arith.mulf %102, %102 : vector<32x256xf32>
    %cst_43 = arith.constant dense<0.000000e+00> : vector<32xf32>
    %104 = vector.multi_reduction <add>, %103, %cst_43 [1] : vector<32x256xf32> to vector<32xf32>
    %105 = vector.shape_cast %104 : vector<32xf32> to vector<32x1xf32>
    %cst_44 = arith.constant dense<0.000000e+00> : vector<32x1xf32>
    %106 = tpu.matmul %0, %105, %cst_44 {dimension_numbers = #tpu.dot_dimension_numbers<[1], [0], [0], [1], [0, 0, 1, 1], [], []>} : vector<32x32xf32>, vector<32x1xf32>, vector<32x1xf32> -> vector<32x1xf32>
    %cst_45 = arith.constant 9.99999974E-6 : f32
    %107 = vector.broadcast %cst_45 : f32 to vector<32x1xf32>
    %108 = arith.addf %106, %107 : vector<32x1xf32>
    %109 = math.rsqrt %108 : vector<32x1xf32>
    %c0_46 = arith.constant 0 : index
    %c1_47 = arith.constant 1 : index
    %110 = vector.load %arg8[%c0_46, %c1_47] : memref<32x13xf32, #tpu.memory_space<vmem>>, vector<32x1xf32>
    %111 = arith.mulf %109, %110 : vector<32x1xf32>
    %112 = vector.broadcast %111 : vector<32x1xf32> to vector<32x256xf32>
    %113 = arith.mulf %102, %112 : vector<32x256xf32>
    %c0_48 = arith.constant 0 : index
    %c2 = arith.constant 2 : index
    %114 = vector.load %arg8[%c0_48, %c2] : memref<32x13xf32, #tpu.memory_space<vmem>>, vector<32x1xf32>
    %115 = vector.broadcast %114 : vector<32x1xf32> to vector<32x256xf32>
    %116 = arith.addf %113, %115 : vector<32x256xf32>
    %cst_49 = arith.constant 0.000000e+00 : f32
    %117 = vector.broadcast %cst_49 : f32 to vector<32x256xf32>
    %118 = arith.subf %117, %116 : vector<32x256xf32>
    %119 = math.exp %118 : vector<32x256xf32>
    %cst_50 = arith.constant 1.000000e+00 : f32
    %120 = vector.broadcast %cst_50 : f32 to vector<32x256xf32>
    %121 = arith.addf %120, %119 : vector<32x256xf32>
    %cst_51 = arith.constant 1.000000e+00 : f32
    %122 = vector.broadcast %cst_51 : f32 to vector<32x256xf32>
    %123 = arith.divf %122, %121 : vector<32x256xf32>
    %124 = arith.mulf %116, %123 : vector<32x256xf32>
    %c0_52 = arith.constant 0 : index
    %c0_53 = arith.constant 0 : index
    %125 = vector.load %arg12[%c0_52, %c0_53] : memref<68x288xbf16, #tpu.memory_space<vmem>>, vector<32x288xbf16>
    %c0_54 = arith.constant 0 : index
    %c3 = arith.constant 3 : index
    %126 = vector.load %arg8[%c0_54, %c3] : memref<32x13xf32, #tpu.memory_space<vmem>>, vector<32x1xf32>
    %c17_i32_55 = arith.constant 17 : i32
    %127 = tpu.dynamic_rotate %124 by %c17_i32_55 dim 1 : vector<32x256xf32>, i32 -> vector<32x256xf32>
    %128 = vector.extract_strided_slice %1 {offsets = [0, 0], sizes = [1, 256], strides = [1, 1]} : vector<9x256xf32> to vector<1x256xf32>
    %129 = vector.broadcast %128 : vector<1x256xf32> to vector<32x256xf32>
    %130 = arith.mulf %127, %129 : vector<32x256xf32>
    %131 = arith.truncf %130 : vector<32x256xf32> to vector<32x256xbf16>
    %c16_i32_56 = arith.constant 16 : i32
    %132 = tpu.dynamic_rotate %124 by %c16_i32_56 dim 1 : vector<32x256xf32>, i32 -> vector<32x256xf32>
    %133 = vector.extract_strided_slice %1 {offsets = [1, 0], sizes = [1, 256], strides = [1, 1]} : vector<9x256xf32> to vector<1x256xf32>
    %134 = vector.broadcast %133 : vector<1x256xf32> to vector<32x256xf32>
    %135 = arith.mulf %132, %134 : vector<32x256xf32>
    %136 = arith.truncf %135 : vector<32x256xf32> to vector<32x256xbf16>
    %c15_i32_57 = arith.constant 15 : i32
    %137 = tpu.dynamic_rotate %124 by %c15_i32_57 dim 1 : vector<32x256xf32>, i32 -> vector<32x256xf32>
    %138 = vector.extract_strided_slice %1 {offsets = [2, 0], sizes = [1, 256], strides = [1, 1]} : vector<9x256xf32> to vector<1x256xf32>
    %139 = vector.broadcast %138 : vector<1x256xf32> to vector<32x256xf32>
    %140 = arith.mulf %137, %139 : vector<32x256xf32>
    %141 = arith.truncf %140 : vector<32x256xf32> to vector<32x256xbf16>
    %c1_i32_58 = arith.constant 1 : i32
    %142 = tpu.dynamic_rotate %124 by %c1_i32_58 dim 1 : vector<32x256xf32>, i32 -> vector<32x256xf32>
    %143 = vector.extract_strided_slice %1 {offsets = [3, 0], sizes = [1, 256], strides = [1, 1]} : vector<9x256xf32> to vector<1x256xf32>
    %144 = vector.broadcast %143 : vector<1x256xf32> to vector<32x256xf32>
    %145 = arith.mulf %142, %144 : vector<32x256xf32>
    %146 = arith.truncf %145 : vector<32x256xf32> to vector<32x256xbf16>
    %147 = arith.truncf %124 : vector<32x256xf32> to vector<32x256xbf16>
    %c255_i32_59 = arith.constant 255 : i32
    %148 = tpu.dynamic_rotate %124 by %c255_i32_59 dim 1 : vector<32x256xf32>, i32 -> vector<32x256xf32>
    %149 = vector.extract_strided_slice %1 {offsets = [5, 0], sizes = [1, 256], strides = [1, 1]} : vector<9x256xf32> to vector<1x256xf32>
    %150 = vector.broadcast %149 : vector<1x256xf32> to vector<32x256xf32>
    %151 = arith.mulf %148, %150 : vector<32x256xf32>
    %152 = arith.truncf %151 : vector<32x256xf32> to vector<32x256xbf16>
    %c241_i32_60 = arith.constant 241 : i32
    %153 = tpu.dynamic_rotate %124 by %c241_i32_60 dim 1 : vector<32x256xf32>, i32 -> vector<32x256xf32>
    %154 = vector.extract_strided_slice %1 {offsets = [6, 0], sizes = [1, 256], strides = [1, 1]} : vector<9x256xf32> to vector<1x256xf32>
    %155 = vector.broadcast %154 : vector<1x256xf32> to vector<32x256xf32>
    %156 = arith.mulf %153, %155 : vector<32x256xf32>
    %157 = arith.truncf %156 : vector<32x256xf32> to vector<32x256xbf16>
    %c240_i32_61 = arith.constant 240 : i32
    %158 = tpu.dynamic_rotate %124 by %c240_i32_61 dim 1 : vector<32x256xf32>, i32 -> vector<32x256xf32>
    %159 = vector.extract_strided_slice %1 {offsets = [7, 0], sizes = [1, 256], strides = [1, 1]} : vector<9x256xf32> to vector<1x256xf32>
    %160 = vector.broadcast %159 : vector<1x256xf32> to vector<32x256xf32>
    %161 = arith.mulf %158, %160 : vector<32x256xf32>
    %162 = arith.truncf %161 : vector<32x256xf32> to vector<32x256xbf16>
    %c239_i32_62 = arith.constant 239 : i32
    %163 = tpu.dynamic_rotate %124 by %c239_i32_62 dim 1 : vector<32x256xf32>, i32 -> vector<32x256xf32>
    %164 = vector.extract_strided_slice %1 {offsets = [8, 0], sizes = [1, 256], strides = [1, 1]} : vector<9x256xf32> to vector<1x256xf32>
    %165 = vector.broadcast %164 : vector<1x256xf32> to vector<32x256xf32>
    %166 = arith.mulf %163, %165 : vector<32x256xf32>
    %167 = arith.truncf %166 : vector<32x256xf32> to vector<32x256xbf16>
    %168 = tpu.concatenate %131, %136, %141, %146, %147, %152, %157, %162, %167 in 0 : vector<32x256xbf16>, vector<32x256xbf16>, vector<32x256xbf16>, vector<32x256xbf16>, vector<32x256xbf16>, vector<32x256xbf16>, vector<32x256xbf16>, vector<32x256xbf16>, vector<32x256xbf16> -> vector<288x256xbf16>
    %cst_63 = arith.constant dense<0.000000e+00> : vector<32x256xf32>
    %169 = tpu.matmul %125, %168, %cst_63 {dimension_numbers = #tpu.dot_dimension_numbers<[1], [0], [0], [1], [0, 0, 1, 1], [], []>} : vector<32x288xbf16>, vector<288x256xbf16>, vector<32x256xf32> -> vector<32x256xf32>
    %170 = vector.broadcast %126 : vector<32x1xf32> to vector<32x256xf32>
    %171 = arith.addf %169, %170 : vector<32x256xf32>
    %172 = vector.broadcast %31 : vector<32x1xf32> to vector<32x256xf32>
    %173 = arith.addf %171, %172 : vector<32x256xf32>
    %cst_64 = arith.constant dense<0.000000e+00> : vector<32xf32>
    %174 = vector.multi_reduction <add>, %173, %cst_64 [1] : vector<32x256xf32> to vector<32xf32>
    %175 = vector.shape_cast %174 : vector<32xf32> to vector<32x1xf32>
    %cst_65 = arith.constant dense<0.000000e+00> : vector<32x1xf32>
    %176 = tpu.matmul %0, %175, %cst_65 {dimension_numbers = #tpu.dot_dimension_numbers<[1], [0], [0], [1], [0, 0, 1, 1], [], []>} : vector<32x32xf32>, vector<32x1xf32>, vector<32x1xf32> -> vector<32x1xf32>
    %177 = vector.broadcast %176 : vector<32x1xf32> to vector<32x256xf32>
    %178 = arith.subf %173, %177 : vector<32x256xf32>
    %179 = arith.mulf %178, %178 : vector<32x256xf32>
    %cst_66 = arith.constant dense<0.000000e+00> : vector<32xf32>
    %180 = vector.multi_reduction <add>, %179, %cst_66 [1] : vector<32x256xf32> to vector<32xf32>
    %181 = vector.shape_cast %180 : vector<32xf32> to vector<32x1xf32>
    %cst_67 = arith.constant dense<0.000000e+00> : vector<32x1xf32>
    %182 = tpu.matmul %0, %181, %cst_67 {dimension_numbers = #tpu.dot_dimension_numbers<[1], [0], [0], [1], [0, 0, 1, 1], [], []>} : vector<32x32xf32>, vector<32x1xf32>, vector<32x1xf32> -> vector<32x1xf32>
    %cst_68 = arith.constant 9.99999974E-6 : f32
    %183 = vector.broadcast %cst_68 : f32 to vector<32x1xf32>
    %184 = arith.addf %182, %183 : vector<32x1xf32>
    %185 = math.rsqrt %184 : vector<32x1xf32>
    %c0_69 = arith.constant 0 : index
    %c5 = arith.constant 5 : index
    %186 = vector.load %arg8[%c0_69, %c5] : memref<32x13xf32, #tpu.memory_space<vmem>>, vector<32x1xf32>
    %187 = arith.mulf %185, %186 : vector<32x1xf32>
    %188 = vector.broadcast %187 : vector<32x1xf32> to vector<32x256xf32>
    %189 = arith.mulf %178, %188 : vector<32x256xf32>
    %c0_70 = arith.constant 0 : index
    %c6 = arith.constant 6 : index
    %190 = vector.load %arg8[%c0_70, %c6] : memref<32x13xf32, #tpu.memory_space<vmem>>, vector<32x1xf32>
    %191 = vector.broadcast %190 : vector<32x1xf32> to vector<32x256xf32>
    %192 = arith.addf %189, %191 : vector<32x256xf32>
    %cst_71 = arith.constant 0.000000e+00 : f32
    %193 = vector.broadcast %cst_71 : f32 to vector<32x256xf32>
    %194 = arith.subf %193, %192 : vector<32x256xf32>
    %195 = math.exp %194 : vector<32x256xf32>
    %cst_72 = arith.constant 1.000000e+00 : f32
    %196 = vector.broadcast %cst_72 : f32 to vector<32x256xf32>
    %197 = arith.addf %196, %195 : vector<32x256xf32>
    %cst_73 = arith.constant 1.000000e+00 : f32
    %198 = vector.broadcast %cst_73 : f32 to vector<32x256xf32>
    %199 = arith.divf %198, %197 : vector<32x256xf32>
    %200 = arith.mulf %192, %199 : vector<32x256xf32>
    %c32 = arith.constant 32 : index
    %c0_74 = arith.constant 0 : index
    %201 = vector.load %arg12[%c32, %c0_74] : memref<68x288xbf16, #tpu.memory_space<vmem>>, vector<32x288xbf16>
    %c0_75 = arith.constant 0 : index
    %c7 = arith.constant 7 : index
    %202 = vector.load %arg8[%c0_75, %c7] : memref<32x13xf32, #tpu.memory_space<vmem>>, vector<32x1xf32>
    %c17_i32_76 = arith.constant 17 : i32
    %203 = tpu.dynamic_rotate %200 by %c17_i32_76 dim 1 : vector<32x256xf32>, i32 -> vector<32x256xf32>
    %204 = vector.extract_strided_slice %1 {offsets = [0, 0], sizes = [1, 256], strides = [1, 1]} : vector<9x256xf32> to vector<1x256xf32>
    %205 = vector.broadcast %204 : vector<1x256xf32> to vector<32x256xf32>
    %206 = arith.mulf %203, %205 : vector<32x256xf32>
    %207 = arith.truncf %206 : vector<32x256xf32> to vector<32x256xbf16>
    %c16_i32_77 = arith.constant 16 : i32
    %208 = tpu.dynamic_rotate %200 by %c16_i32_77 dim 1 : vector<32x256xf32>, i32 -> vector<32x256xf32>
    %209 = vector.extract_strided_slice %1 {offsets = [1, 0], sizes = [1, 256], strides = [1, 1]} : vector<9x256xf32> to vector<1x256xf32>
    %210 = vector.broadcast %209 : vector<1x256xf32> to vector<32x256xf32>
    %211 = arith.mulf %208, %210 : vector<32x256xf32>
    %212 = arith.truncf %211 : vector<32x256xf32> to vector<32x256xbf16>
    %c15_i32_78 = arith.constant 15 : i32
    %213 = tpu.dynamic_rotate %200 by %c15_i32_78 dim 1 : vector<32x256xf32>, i32 -> vector<32x256xf32>
    %214 = vector.extract_strided_slice %1 {offsets = [2, 0], sizes = [1, 256], strides = [1, 1]} : vector<9x256xf32> to vector<1x256xf32>
    %215 = vector.broadcast %214 : vector<1x256xf32> to vector<32x256xf32>
    %216 = arith.mulf %213, %215 : vector<32x256xf32>
    %217 = arith.truncf %216 : vector<32x256xf32> to vector<32x256xbf16>
    %c1_i32_79 = arith.constant 1 : i32
    %218 = tpu.dynamic_rotate %200 by %c1_i32_79 dim 1 : vector<32x256xf32>, i32 -> vector<32x256xf32>
    %219 = vector.extract_strided_slice %1 {offsets = [3, 0], sizes = [1, 256], strides = [1, 1]} : vector<9x256xf32> to vector<1x256xf32>
    %220 = vector.broadcast %219 : vector<1x256xf32> to vector<32x256xf32>
    %221 = arith.mulf %218, %220 : vector<32x256xf32>
    %222 = arith.truncf %221 : vector<32x256xf32> to vector<32x256xbf16>
    %223 = arith.truncf %200 : vector<32x256xf32> to vector<32x256xbf16>
    %c255_i32_80 = arith.constant 255 : i32
    %224 = tpu.dynamic_rotate %200 by %c255_i32_80 dim 1 : vector<32x256xf32>, i32 -> vector<32x256xf32>
    %225 = vector.extract_strided_slice %1 {offsets = [5, 0], sizes = [1, 256], strides = [1, 1]} : vector<9x256xf32> to vector<1x256xf32>
    %226 = vector.broadcast %225 : vector<1x256xf32> to vector<32x256xf32>
    %227 = arith.mulf %224, %226 : vector<32x256xf32>
    %228 = arith.truncf %227 : vector<32x256xf32> to vector<32x256xbf16>
    %c241_i32_81 = arith.constant 241 : i32
    %229 = tpu.dynamic_rotate %200 by %c241_i32_81 dim 1 : vector<32x256xf32>, i32 -> vector<32x256xf32>
    %230 = vector.extract_strided_slice %1 {offsets = [6, 0], sizes = [1, 256], strides = [1, 1]} : vector<9x256xf32> to vector<1x256xf32>
    %231 = vector.broadcast %230 : vector<1x256xf32> to vector<32x256xf32>
    %232 = arith.mulf %229, %231 : vector<32x256xf32>
    %233 = arith.truncf %232 : vector<32x256xf32> to vector<32x256xbf16>
    %c240_i32_82 = arith.constant 240 : i32
    %234 = tpu.dynamic_rotate %200 by %c240_i32_82 dim 1 : vector<32x256xf32>, i32 -> vector<32x256xf32>
    %235 = vector.extract_strided_slice %1 {offsets = [7, 0], sizes = [1, 256], strides = [1, 1]} : vector<9x256xf32> to vector<1x256xf32>
    %236 = vector.broadcast %235 : vector<1x256xf32> to vector<32x256xf32>
    %237 = arith.mulf %234, %236 : vector<32x256xf32>
    %238 = arith.truncf %237 : vector<32x256xf32> to vector<32x256xbf16>
    %c239_i32_83 = arith.constant 239 : i32
    %239 = tpu.dynamic_rotate %200 by %c239_i32_83 dim 1 : vector<32x256xf32>, i32 -> vector<32x256xf32>
    %240 = vector.extract_strided_slice %1 {offsets = [8, 0], sizes = [1, 256], strides = [1, 1]} : vector<9x256xf32> to vector<1x256xf32>
    %241 = vector.broadcast %240 : vector<1x256xf32> to vector<32x256xf32>
    %242 = arith.mulf %239, %241 : vector<32x256xf32>
    %243 = arith.truncf %242 : vector<32x256xf32> to vector<32x256xbf16>
    %244 = tpu.concatenate %207, %212, %217, %222, %223, %228, %233, %238, %243 in 0 : vector<32x256xbf16>, vector<32x256xbf16>, vector<32x256xbf16>, vector<32x256xbf16>, vector<32x256xbf16>, vector<32x256xbf16>, vector<32x256xbf16>, vector<32x256xbf16>, vector<32x256xbf16> -> vector<288x256xbf16>
    %cst_84 = arith.constant dense<0.000000e+00> : vector<32x256xf32>
    %245 = tpu.matmul %201, %244, %cst_84 {dimension_numbers = #tpu.dot_dimension_numbers<[1], [0], [0], [1], [0, 0, 1, 1], [], []>} : vector<32x288xbf16>, vector<288x256xbf16>, vector<32x256xf32> -> vector<32x256xf32>
    %246 = vector.broadcast %202 : vector<32x1xf32> to vector<32x256xf32>
    %247 = arith.addf %245, %246 : vector<32x256xf32>
    %248 = arith.addf %97, %247 : vector<32x256xf32>
    %cst_85 = arith.constant dense<0.000000e+00> : vector<32xf32>
    %249 = vector.multi_reduction <add>, %248, %cst_85 [1] : vector<32x256xf32> to vector<32xf32>
    %250 = vector.shape_cast %249 : vector<32xf32> to vector<32x1xf32>
    %cst_86 = arith.constant dense<0.000000e+00> : vector<32x1xf32>
    %251 = tpu.matmul %0, %250, %cst_86 {dimension_numbers = #tpu.dot_dimension_numbers<[1], [0], [0], [1], [0, 0, 1, 1], [], []>} : vector<32x32xf32>, vector<32x1xf32>, vector<32x1xf32> -> vector<32x1xf32>
    %252 = vector.broadcast %251 : vector<32x1xf32> to vector<32x256xf32>
    %253 = arith.subf %248, %252 : vector<32x256xf32>
    %254 = arith.mulf %253, %253 : vector<32x256xf32>
    %cst_87 = arith.constant dense<0.000000e+00> : vector<32xf32>
    %255 = vector.multi_reduction <add>, %254, %cst_87 [1] : vector<32x256xf32> to vector<32xf32>
    %256 = vector.shape_cast %255 : vector<32xf32> to vector<32x1xf32>
    %cst_88 = arith.constant dense<0.000000e+00> : vector<32x1xf32>
    %257 = tpu.matmul %0, %256, %cst_88 {dimension_numbers = #tpu.dot_dimension_numbers<[1], [0], [0], [1], [0, 0, 1, 1], [], []>} : vector<32x32xf32>, vector<32x1xf32>, vector<32x1xf32> -> vector<32x1xf32>
    %cst_89 = arith.constant 9.99999974E-6 : f32
    %258 = vector.broadcast %cst_89 : f32 to vector<32x1xf32>
    %259 = arith.addf %257, %258 : vector<32x1xf32>
    %260 = math.rsqrt %259 : vector<32x1xf32>
    %c0_90 = arith.constant 0 : index
    %c8 = arith.constant 8 : index
    %261 = vector.load %arg8[%c0_90, %c8] : memref<32x13xf32, #tpu.memory_space<vmem>>, vector<32x1xf32>
    %262 = arith.mulf %260, %261 : vector<32x1xf32>
    %263 = vector.broadcast %262 : vector<32x1xf32> to vector<32x256xf32>
    %264 = arith.mulf %253, %263 : vector<32x256xf32>
    %c0_91 = arith.constant 0 : index
    %c9 = arith.constant 9 : index
    %265 = vector.load %arg8[%c0_91, %c9] : memref<32x13xf32, #tpu.memory_space<vmem>>, vector<32x1xf32>
    %266 = vector.broadcast %265 : vector<32x1xf32> to vector<32x256xf32>
    %267 = arith.addf %264, %266 : vector<32x256xf32>
    %c0_92 = arith.constant 0 : index
    %c0_93 = arith.constant 0 : index
    %c0_94 = arith.constant 0 : index
    %268 = vector.load %arg3[%c0_92, %c0_93, %c0_94] : memref<1x8x32xf32, #tpu.memory_space<vmem>>, vector<1x8x32xf32>
    %269 = vector.shape_cast %268 : vector<1x8x32xf32> to vector<8x32xf32>
    %c0_95 = arith.constant 0 : index
    %c0_96 = arith.constant 0 : index
    %270 = vector.load %arg13[%c0_95, %c0_96] : memref<96x64xbf16, #tpu.memory_space<vmem>>, vector<32x32xbf16>
    %271 = arith.truncf %267 : vector<32x256xf32> to vector<32x256xbf16>
    %cst_97 = arith.constant dense<0.000000e+00> : vector<32x256xf32>
    %272 = tpu.matmul %270, %271, %cst_97 {dimension_numbers = #tpu.dot_dimension_numbers<[1], [0], [0], [1], [0, 0, 1, 1], [], []>} : vector<32x32xbf16>, vector<32x256xbf16>, vector<32x256xf32> -> vector<32x256xf32>
    %273 = arith.truncf %269 : vector<8x32xf32> to vector<8x32xbf16>
    %c64 = arith.constant 64 : index
    %c0_98 = arith.constant 0 : index
    %274 = vector.load %arg13[%c64, %c0_98] : memref<96x64xbf16, #tpu.memory_space<vmem>>, vector<32x64xbf16>
    %cst_99 = arith.constant dense<0.000000e+00> : vector<8x64xf32>
    %275 = tpu.matmul %273, %274, %cst_99 {dimension_numbers = #tpu.dot_dimension_numbers<[1], [0], [0], [1], [0, 0, 1, 1], [], []>} : vector<8x32xbf16>, vector<32x64xbf16>, vector<8x64xf32> -> vector<8x64xf32>
    %276 = vector.extract_strided_slice %275 {offsets = [0, 0], sizes = [8, 32], strides = [1, 1]} : vector<8x64xf32> to vector<8x32xf32>
    %277 = vector.extract_strided_slice %275 {offsets = [0, 32], sizes = [8, 32], strides = [1, 1]} : vector<8x64xf32> to vector<8x32xf32>
    %278 = arith.truncf %276 : vector<8x32xf32> to vector<8x32xbf16>
    %279 = arith.truncf %272 : vector<32x256xf32> to vector<32x256xbf16>
    %cst_100 = arith.constant dense<0.000000e+00> : vector<8x256xf32>
    %280 = tpu.matmul %278, %279, %cst_100 {dimension_numbers = #tpu.dot_dimension_numbers<[1], [0], [0], [1], [0, 0, 1, 1], [], []>} : vector<8x32xbf16>, vector<32x256xbf16>, vector<8x256xf32> -> vector<8x256xf32>
    %cst_101 = arith.constant dense<0xFF800000> : vector<256xf32>
    %281 = vector.multi_reduction <maximumf>, %280, %cst_101 [0] : vector<8x256xf32> to vector<256xf32>
    %282 = vector.shape_cast %281 : vector<256xf32> to vector<1x256xf32>
    %283 = vector.broadcast %282 : vector<1x256xf32> to vector<8x256xf32>
    %284 = arith.subf %280, %283 : vector<8x256xf32>
    %285 = math.exp %284 : vector<8x256xf32>
    %cst_102 = arith.constant dense<0.000000e+00> : vector<256xf32>
    %286 = vector.multi_reduction <add>, %285, %cst_102 [0] : vector<8x256xf32> to vector<256xf32>
    %287 = vector.shape_cast %286 : vector<256xf32> to vector<1x256xf32>
    %288 = tpu.reciprocal %287 : vector<1x256xf32> -> vector<1x256xf32>
    %289 = vector.broadcast %288 : vector<1x256xf32> to vector<8x256xf32>
    %290 = arith.mulf %285, %289 : vector<8x256xf32>
    %291 = tpu.transpose %277, [1, 0] : vector<8x32xf32> -> vector<32x8xf32>
    %292 = arith.truncf %291 : vector<32x8xf32> to vector<32x8xbf16>
    %293 = arith.truncf %290 : vector<8x256xf32> to vector<8x256xbf16>
    %cst_103 = arith.constant dense<0.000000e+00> : vector<32x256xf32>
    %294 = tpu.matmul %292, %293, %cst_103 {dimension_numbers = #tpu.dot_dimension_numbers<[1], [0], [0], [1], [0, 0, 1, 1], [], []>} : vector<32x8xbf16>, vector<8x256xbf16>, vector<32x256xf32> -> vector<32x256xf32>
    %c32_104 = arith.constant 32 : index
    %c0_105 = arith.constant 0 : index
    %295 = vector.load %arg13[%c32_104, %c0_105] : memref<96x64xbf16, #tpu.memory_space<vmem>>, vector<32x32xbf16>
    %296 = arith.truncf %294 : vector<32x256xf32> to vector<32x256xbf16>
    %cst_106 = arith.constant dense<0.000000e+00> : vector<32x256xf32>
    %297 = tpu.matmul %295, %296, %cst_106 {dimension_numbers = #tpu.dot_dimension_numbers<[1], [0], [0], [1], [0, 0, 1, 1], [], []>} : vector<32x32xbf16>, vector<32x256xbf16>, vector<32x256xf32> -> vector<32x256xf32>
    %298 = arith.addf %248, %297 : vector<32x256xf32>
    %cst_107 = arith.constant dense<0.000000e+00> : vector<32xf32>
    %299 = vector.multi_reduction <add>, %298, %cst_107 [1] : vector<32x256xf32> to vector<32xf32>
    %300 = vector.shape_cast %299 : vector<32xf32> to vector<32x1xf32>
    %cst_108 = arith.constant dense<0.000000e+00> : vector<32x1xf32>
    %301 = tpu.matmul %0, %300, %cst_108 {dimension_numbers = #tpu.dot_dimension_numbers<[1], [0], [0], [1], [0, 0, 1, 1], [], []>} : vector<32x32xf32>, vector<32x1xf32>, vector<32x1xf32> -> vector<32x1xf32>
    %302 = vector.broadcast %301 : vector<32x1xf32> to vector<32x256xf32>
    %303 = arith.subf %298, %302 : vector<32x256xf32>
    %304 = arith.mulf %303, %303 : vector<32x256xf32>
    %cst_109 = arith.constant dense<0.000000e+00> : vector<32xf32>
    %305 = vector.multi_reduction <add>, %304, %cst_109 [1] : vector<32x256xf32> to vector<32xf32>
    %306 = vector.shape_cast %305 : vector<32xf32> to vector<32x1xf32>
    %cst_110 = arith.constant dense<0.000000e+00> : vector<32x1xf32>
    %307 = tpu.matmul %0, %306, %cst_110 {dimension_numbers = #tpu.dot_dimension_numbers<[1], [0], [0], [1], [0, 0, 1, 1], [], []>} : vector<32x32xf32>, vector<32x1xf32>, vector<32x1xf32> -> vector<32x1xf32>
    %cst_111 = arith.constant 9.99999974E-6 : f32
    %308 = vector.broadcast %cst_111 : f32 to vector<32x1xf32>
    %309 = arith.addf %307, %308 : vector<32x1xf32>
    %310 = math.rsqrt %309 : vector<32x1xf32>
    %c0_112 = arith.constant 0 : index
    %c10 = arith.constant 10 : index
    %311 = vector.load %arg8[%c0_112, %c10] : memref<32x13xf32, #tpu.memory_space<vmem>>, vector<32x1xf32>
    %312 = arith.mulf %310, %311 : vector<32x1xf32>
    %313 = vector.broadcast %312 : vector<32x1xf32> to vector<32x256xf32>
    %314 = arith.mulf %303, %313 : vector<32x256xf32>
    %c0_113 = arith.constant 0 : index
    %c11 = arith.constant 11 : index
    %315 = vector.load %arg8[%c0_113, %c11] : memref<32x13xf32, #tpu.memory_space<vmem>>, vector<32x1xf32>
    %316 = vector.broadcast %315 : vector<32x1xf32> to vector<32x256xf32>
    %317 = arith.addf %314, %316 : vector<32x256xf32>
    %cst_114 = arith.constant 0.000000e+00 : f32
    %318 = vector.broadcast %cst_114 : f32 to vector<32x256xf32>
    %319 = arith.subf %318, %317 : vector<32x256xf32>
    %320 = math.exp %319 : vector<32x256xf32>
    %cst_115 = arith.constant 1.000000e+00 : f32
    %321 = vector.broadcast %cst_115 : f32 to vector<32x256xf32>
    %322 = arith.addf %321, %320 : vector<32x256xf32>
    %cst_116 = arith.constant 1.000000e+00 : f32
    %323 = vector.broadcast %cst_116 : f32 to vector<32x256xf32>
    %324 = arith.divf %323, %322 : vector<32x256xf32>
    %325 = arith.mulf %317, %324 : vector<32x256xf32>
    %c64_117 = arith.constant 64 : index
    %c0_118 = arith.constant 0 : index
    %326 = vector.load %arg12[%c64_117, %c0_118] : memref<68x288xbf16, #tpu.memory_space<vmem>>, vector<4x288xbf16>
    %c0_119 = arith.constant 0 : index
    %c12 = arith.constant 12 : index
    %327 = vector.load %arg8[%c0_119, %c12] : memref<32x13xf32, #tpu.memory_space<vmem>>, vector<4x1xf32>
    %c17_i32_120 = arith.constant 17 : i32
    %328 = tpu.dynamic_rotate %325 by %c17_i32_120 dim 1 : vector<32x256xf32>, i32 -> vector<32x256xf32>
    %329 = vector.extract_strided_slice %1 {offsets = [0, 0], sizes = [1, 256], strides = [1, 1]} : vector<9x256xf32> to vector<1x256xf32>
    %330 = vector.broadcast %329 : vector<1x256xf32> to vector<32x256xf32>
    %331 = arith.mulf %328, %330 : vector<32x256xf32>
    %332 = arith.truncf %331 : vector<32x256xf32> to vector<32x256xbf16>
    %c16_i32_121 = arith.constant 16 : i32
    %333 = tpu.dynamic_rotate %325 by %c16_i32_121 dim 1 : vector<32x256xf32>, i32 -> vector<32x256xf32>
    %334 = vector.extract_strided_slice %1 {offsets = [1, 0], sizes = [1, 256], strides = [1, 1]} : vector<9x256xf32> to vector<1x256xf32>
    %335 = vector.broadcast %334 : vector<1x256xf32> to vector<32x256xf32>
    %336 = arith.mulf %333, %335 : vector<32x256xf32>
    %337 = arith.truncf %336 : vector<32x256xf32> to vector<32x256xbf16>
    %c15_i32_122 = arith.constant 15 : i32
    %338 = tpu.dynamic_rotate %325 by %c15_i32_122 dim 1 : vector<32x256xf32>, i32 -> vector<32x256xf32>
    %339 = vector.extract_strided_slice %1 {offsets = [2, 0], sizes = [1, 256], strides = [1, 1]} : vector<9x256xf32> to vector<1x256xf32>
    %340 = vector.broadcast %339 : vector<1x256xf32> to vector<32x256xf32>
    %341 = arith.mulf %338, %340 : vector<32x256xf32>
    %342 = arith.truncf %341 : vector<32x256xf32> to vector<32x256xbf16>
    %c1_i32_123 = arith.constant 1 : i32
    %343 = tpu.dynamic_rotate %325 by %c1_i32_123 dim 1 : vector<32x256xf32>, i32 -> vector<32x256xf32>
    %344 = vector.extract_strided_slice %1 {offsets = [3, 0], sizes = [1, 256], strides = [1, 1]} : vector<9x256xf32> to vector<1x256xf32>
    %345 = vector.broadcast %344 : vector<1x256xf32> to vector<32x256xf32>
    %346 = arith.mulf %343, %345 : vector<32x256xf32>
    %347 = arith.truncf %346 : vector<32x256xf32> to vector<32x256xbf16>
    %348 = arith.truncf %325 : vector<32x256xf32> to vector<32x256xbf16>
    %c255_i32_124 = arith.constant 255 : i32
    %349 = tpu.dynamic_rotate %325 by %c255_i32_124 dim 1 : vector<32x256xf32>, i32 -> vector<32x256xf32>
    %350 = vector.extract_strided_slice %1 {offsets = [5, 0], sizes = [1, 256], strides = [1, 1]} : vector<9x256xf32> to vector<1x256xf32>
    %351 = vector.broadcast %350 : vector<1x256xf32> to vector<32x256xf32>
    %352 = arith.mulf %349, %351 : vector<32x256xf32>
    %353 = arith.truncf %352 : vector<32x256xf32> to vector<32x256xbf16>
    %c241_i32_125 = arith.constant 241 : i32
    %354 = tpu.dynamic_rotate %325 by %c241_i32_125 dim 1 : vector<32x256xf32>, i32 -> vector<32x256xf32>
    %355 = vector.extract_strided_slice %1 {offsets = [6, 0], sizes = [1, 256], strides = [1, 1]} : vector<9x256xf32> to vector<1x256xf32>
    %356 = vector.broadcast %355 : vector<1x256xf32> to vector<32x256xf32>
    %357 = arith.mulf %354, %356 : vector<32x256xf32>
    %358 = arith.truncf %357 : vector<32x256xf32> to vector<32x256xbf16>
    %c240_i32_126 = arith.constant 240 : i32
    %359 = tpu.dynamic_rotate %325 by %c240_i32_126 dim 1 : vector<32x256xf32>, i32 -> vector<32x256xf32>
    %360 = vector.extract_strided_slice %1 {offsets = [7, 0], sizes = [1, 256], strides = [1, 1]} : vector<9x256xf32> to vector<1x256xf32>
    %361 = vector.broadcast %360 : vector<1x256xf32> to vector<32x256xf32>
    %362 = arith.mulf %359, %361 : vector<32x256xf32>
    %363 = arith.truncf %362 : vector<32x256xf32> to vector<32x256xbf16>
    %c239_i32_127 = arith.constant 239 : i32
    %364 = tpu.dynamic_rotate %325 by %c239_i32_127 dim 1 : vector<32x256xf32>, i32 -> vector<32x256xf32>
    %365 = vector.extract_strided_slice %1 {offsets = [8, 0], sizes = [1, 256], strides = [1, 1]} : vector<9x256xf32> to vector<1x256xf32>
    %366 = vector.broadcast %365 : vector<1x256xf32> to vector<32x256xf32>
    %367 = arith.mulf %364, %366 : vector<32x256xf32>
    %368 = arith.truncf %367 : vector<32x256xf32> to vector<32x256xbf16>
    %369 = tpu.concatenate %332, %337, %342, %347, %348, %353, %358, %363, %368 in 0 : vector<32x256xbf16>, vector<32x256xbf16>, vector<32x256xbf16>, vector<32x256xbf16>, vector<32x256xbf16>, vector<32x256xbf16>, vector<32x256xbf16>, vector<32x256xbf16>, vector<32x256xbf16> -> vector<288x256xbf16>
    %cst_128 = arith.constant dense<0.000000e+00> : vector<4x256xf32>
    %370 = tpu.matmul %326, %369, %cst_128 {dimension_numbers = #tpu.dot_dimension_numbers<[1], [0], [0], [1], [0, 0, 1, 1], [], []>} : vector<4x288xbf16>, vector<288x256xbf16>, vector<4x256xf32> -> vector<4x256xf32>
    %371 = vector.broadcast %327 : vector<4x1xf32> to vector<4x256xf32>
    %372 = arith.addf %370, %371 : vector<4x256xf32>
    %c0_129 = arith.constant 0 : index
    %c0_130 = arith.constant 0 : index
    %c0_131 = arith.constant 0 : index
    %373 = vector.load %arg14[%c0_129, %c0_130, %c0_131] : memref<1x4x256xf32, #tpu.memory_space<vmem>>, vector<1x4x256xf32>
    %374 = vector.shape_cast %373 : vector<1x4x256xf32> to vector<4x256xf32>
    %375 = vector.shape_cast %372 : vector<4x256xf32> to vector<1x4x256xf32>
    tpu.vector_store %arg14[%c0_129, %c0_130, %c0_131], %375 {strides = array<i32>} : memref<1x4x256xf32, #tpu.memory_space<vmem>>, vector<1x4x256xf32>,
    return
  }
  func.func @transform_0(%arg0: i32) -> (i32, i32, i32) {
    %c0_i32 = arith.constant 0 : i32
    %c0_i32_0 = arith.constant 0 : i32
    %c0_i32_1 = arith.constant 0 : i32
    return %arg0, %c0_i32, %c0_i32_0 : i32, i32, i32
  }
  func.func @transform_1(%arg0: i32) -> (i32, i32, i32) {
    %c0_i32 = arith.constant 0 : i32
    %c0_i32_0 = arith.constant 0 : i32
    %c0_i32_1 = arith.constant 0 : i32
    return %arg0, %c0_i32, %c0_i32_0 : i32, i32, i32
  }
  func.func @transform_2(%arg0: i32) -> (i32, i32, i32) {
    %c0_i32 = arith.constant 0 : i32
    %c0_i32_0 = arith.constant 0 : i32
    %c0_i32_1 = arith.constant 0 : i32
    return %arg0, %c0_i32, %c0_i32_0 : i32, i32, i32
  }
  func.func @transform_3(%arg0: i32) -> (i32, i32) {
    %c0_i32 = arith.constant 0 : i32
    %c0_i32_0 = arith.constant 0 : i32
    %c0_i32_1 = arith.constant 0 : i32
    return %c0_i32, %c0_i32_0 : i32, i32
  }
  func.func @transform_4(%arg0: i32) -> (i32, i32) {
    %c0_i32 = arith.constant 0 : i32
    %c0_i32_0 = arith.constant 0 : i32
    %c0_i32_1 = arith.constant 0 : i32
    return %c0_i32, %c0_i32_0 : i32, i32
  }
  func.func @transform_5(%arg0: i32) -> (i32, i32) {
    %c0_i32 = arith.constant 0 : i32
    %c0_i32_0 = arith.constant 0 : i32
    %c0_i32_1 = arith.constant 0 : i32
    return %c0_i32, %c0_i32_0 : i32, i32
  }
  func.func @transform_6(%arg0: i32) -> (i32, i32) {
    %c0_i32 = arith.constant 0 : i32
    %c0_i32_0 = arith.constant 0 : i32
    %c0_i32_1 = arith.constant 0 : i32
    return %c0_i32, %c0_i32_0 : i32, i32
  }
  func.func @transform_7(%arg0: i32) -> (i32, i32) {
    %c0_i32 = arith.constant 0 : i32
    %c0_i32_0 = arith.constant 0 : i32
    %c0_i32_1 = arith.constant 0 : i32
    return %c0_i32, %c0_i32_0 : i32, i32
  }
  func.func @transform_8(%arg0: i32) -> (i32, i32) {
    %c0_i32 = arith.constant 0 : i32
    %c0_i32_0 = arith.constant 0 : i32
    %c0_i32_1 = arith.constant 0 : i32
    return %c0_i32, %c0_i32_0 : i32, i32
  }
  func.func @transform_9(%arg0: i32) -> (i32, i32) {
    %c0_i32 = arith.constant 0 : i32
    %c0_i32_0 = arith.constant 0 : i32
    %c0_i32_1 = arith.constant 0 : i32
    return %c0_i32, %c0_i32_0 : i32, i32
  }
  func.func @transform_10(%arg0: i32) -> (i32, i32) {
    %c0_i32 = arith.constant 0 : i32
    %c0_i32_0 = arith.constant 0 : i32
    %c0_i32_1 = arith.constant 0 : i32
    return %c0_i32, %c0_i32_0 : i32, i32
  }
  func.func @transform_11(%arg0: i32) -> (i32, i32) {
    %c0_i32 = arith.constant 0 : i32
    %c0_i32_0 = arith.constant 0 : i32
    %c0_i32_1 = arith.constant 0 : i32
    return %c0_i32, %c0_i32_0 : i32, i32
  }
  func.func @transform_12(%arg0: i32) -> (i32, i32) {
    %c0_i32 = arith.constant 0 : i32
    %c0_i32_0 = arith.constant 0 : i32
    %c0_i32_1 = arith.constant 0 : i32
    return %c0_i32, %c0_i32_0 : i32, i32
  }
  func.func @transform_13(%arg0: i32) -> (i32, i32, i32) {
    %c0_i32 = arith.constant 0 : i32
    %c0_i32_0 = arith.constant 0 : i32
    %c0_i32_1 = arith.constant 0 : i32
    return %arg0, %c0_i32, %c0_i32_0 : i32, i32, i32
  }
}

</mosaic_0001>

<llo_original>
// kernel: unet_export_wrapper_forward.1
$region0: #{unet_export_wrapper_forward.1}
  #allocation0 [shape = 'u32[]', space=smem, size = 0x4, offset = 0x4, fixed_abs, tag = 'smem constant byte address 0x4 - core index']
  #allocation1 [shape = 'u32[72,128]{1,0:T(1,128)}', space=vmem, size = 0x9000, scoped, tag = 'internal scratch']
  %s0 = inlined_call_operand.vmem [shape: f32[2,32,1], index: 0, kind: input, shape index: {}]
  %s1 = inlined_call_operand.vmem [shape: f32[2,4,256], index: 1, kind: input, shape index: {}]
  %s2 = inlined_call_operand.vmem [shape: f32[2,8,32], index: 2, kind: input, shape index: {}]
  %s3 = inlined_call_operand.vmem [shape: f32[64,32], index: 3, kind: input, shape index: {}]
  %s4 = inlined_call_operand.vmem [shape: f32[64,64], index: 4, kind: input, shape index: {}]
  %s5 = inlined_call_operand.vmem [shape: f32[64,2], index: 5, kind: input, shape index: {}]
  %s6 = inlined_call_operand.vmem [shape: f32[32,64], index: 6, kind: input, shape index: {}]
  %s7 = inlined_call_operand.vmem [shape: f32[32,13], index: 7, kind: input, shape index: {}]
  %s8 = inlined_call_operand.vmem [shape: f32[32,32], index: 8, kind: input, shape index: {}]
  %s9 = inlined_call_operand.vmem [shape: f32[9,256], index: 9, kind: input, shape index: {}]
  %s10 = inlined_call_operand.vmem [shape: f32[32,36], index: 10, kind: input, shape index: {}]
  %s11 = inlined_call_operand.vmem [shape: bf16[68,288], index: 11, kind: input, shape index: {}]
  %s12 = inlined_call_operand.vmem [shape: bf16[96,64], index: 12, kind: input, shape index: {}]
  %s13 = inlined_call_operand.vmem [shape: f32[2,4,256], index: 13, kind: output, shape index: {}]
  %s14 = sld [smem:[#allocation0]]
  $region85: #{unet_export_wrapper_forward.1} parent=0
    _
  %s16 = ssub.s32 1, %s14
  %s17 = scalar_select 0, %s16, %s14
  loop: start=0, step=1, limit=4
  $region2: #{unet_export_wrapper_forward.1} parent=0 // loop_pre_header
    _
  $region3: #{unet_export_wrapper_forward.1} parent=0 // loop_header
    %s19 = sphi 0, %s23
    %p20 = scmp.ge.s32.totalorder %s19, 4
    %s29 = sphi 0, %s31
    %s32 = sphi 0, %s29
    %s33 = sphi 0, %s32
    %s49 = sphi 0, %s33
    %s55 = sphi 0, %s57
    %s58 = sphi 0, %s55
    %s59 = sphi 0, %s58
    %s75 = sphi 0, %s59
    %s81 = sphi 0, %s83
    %s84 = sphi 0, %s81
    %s85 = sphi 0, %s84
    %s101 = sphi 0, %s85
    %s105 = sphi 0, %s105
    %s107 = sphi 0, %s105
    %s108 = sphi 0, %s107
    %s122 = sphi 0, %s108
    %s126 = sphi 0, %s126
    %s128 = sphi 0, %s126
    %s129 = sphi 0, %s128
    %s143 = sphi 0, %s129
    %s147 = sphi 0, %s147
    %s149 = sphi 0, %s147
    %s150 = sphi 0, %s149
    %s164 = sphi 0, %s150
    %s168 = sphi 0, %s168
    %s170 = sphi 0, %s168
    %s171 = sphi 0, %s170
    %s185 = sphi 0, %s171
    %s189 = sphi 0, %s189
    %s191 = sphi 0, %s189
    %s192 = sphi 0, %s191
    %s206 = sphi 0, %s192
    %s210 = sphi 0, %s210
    %s212 = sphi 0, %s210
    %s213 = sphi 0, %s212
    %s227 = sphi 0, %s213
    %s231 = sphi 0, %s231
    %s233 = sphi 0, %s231
    %s234 = sphi 0, %s233
    %s248 = sphi 0, %s234
    %s252 = sphi 0, %s252
    %s254 = sphi 0, %s252
    %s255 = sphi 0, %s254
    %s269 = sphi 0, %s255
    %s273 = sphi 0, %s273
    %s275 = sphi 0, %s273
    %s276 = sphi 0, %s275
    %s290 = sphi 0, %s276
    %s294 = sphi 0, %s294
    %s296 = sphi 0, %s294
    %s297 = sphi 0, %s296
    %s311 = sphi 0, %s297
    %s317 = sphi 0, %s319
    %s320 = sphi 0, %s317
    %s321 = sphi 0, %s320
    %s337 = sphi 0, %s321
  $region4: #{unet_export_wrapper_forward.1} parent=0 // loop_header_branch
    %22 = sbr.rel (%p20) target = $region8
  $region5: #{unet_export_wrapper_forward.1} parent=0 // loop_body
    %s24 = ssub.s32 %s19, 1
    %s25 = ssub.s32 %s19, 2
    %s26 = sadd.s32 %s19, 1
    %s27 = ssub.s32 %s19, %s26
    %p28 = scmp.eq.s32.totalorder %s27, 0
    %s30 = sadd.s32 %s29, 1
    %s31 = scalar_select %p28, %s29, %s30
    %p34 = pneg %p28
    %p35 = scmp.eq.s32.totalorder %s19, 1
    %p36 = por %p34, %p35
    %p37 = scmp.ne.s32.totalorder %s29, %s32
    %p38 = scmp.eq.s32.totalorder %s19, 0
    %p39 = por %p37, %p38
    %p40 = scmp.ne.s32.totalorder %s29, %s32
    %p41 = scmp.eq.s32.totalorder %s24, 1
    %p42 = por %p40, %p41
    %p43 = scmp.ne.s32.totalorder %s32, %s33
    %p44 = scmp.eq.s32.totalorder %s24, 0
    %p45 = por %p43, %p44
    %p46 = scmp.ne.s32.totalorder %s32, %s33
    %p47 = scmp.eq.s32.totalorder %s25, 1
    %p48 = por %p46, %p47
    %p50 = scmp.ne.s32.totalorder %s33, %s49
    %p51 = scmp.eq.s32.totalorder %s25, 0
    %p52 = por %p50, %p51
    %s53 = ssub.s32 %s19, %s26
    %p54 = scmp.eq.s32.totalorder %s53, 0
    %s56 = sadd.s32 %s55, 1
    %s57 = scalar_select %p54, %s55, %s56
    %p60 = pneg %p54
    %p61 = scmp.eq.s32.totalorder %s19, 1
    %p62 = por %p60, %p61
    %p63 = scmp.ne.s32.totalorder %s55, %s58
    %p64 = scmp.eq.s32.totalorder %s19, 0
    %p65 = por %p63, %p64
    %p66 = scmp.ne.s32.totalorder %s55, %s58
    %p67 = scmp.eq.s32.totalorder %s24, 1
    %p68 = por %p66, %p67
    %p69 = scmp.ne.s32.totalorder %s58, %s59
    %p70 = scmp.eq.s32.totalorder %s24, 0
    %p71 = por %p69, %p70
    %p72 = scmp.ne.s32.totalorder %s58, %s59
    %p73 = scmp.eq.s32.totalorder %s25, 1
    %p74 = por %p72, %p73
    %p76 = scmp.ne.s32.totalorder %s59, %s75
    %p77 = scmp.eq.s32.totalorder %s25, 0
    %p78 = por %p76, %p77
    %s79 = ssub.s32 %s19, %s26
    %p80 = scmp.eq.s32.totalorder %s79, 0
    %s82 = sadd.s32 %s81, 1
    %s83 = scalar_select %p80, %s81, %s82
    %p86 = pneg %p80
    %p87 = scmp.eq.s32.totalorder %s19, 1
    %p88 = por %p86, %p87
    %p89 = scmp.ne.s32.totalorder %s81, %s84
    %p90 = scmp.eq.s32.totalorder %s19, 0
    %p91 = por %p89, %p90
    %p92 = scmp.ne.s32.totalorder %s81, %s84
    %p93 = scmp.eq.s32.totalorder %s24, 1
    %p94 = por %p92, %p93
    %p95 = scmp.ne.s32.totalorder %s84, %s85
    %p96 = scmp.eq.s32.totalorder %s24, 0
    %p97 = por %p95, %p96
    %p98 = scmp.ne.s32.totalorder %s84, %s85
    %p99 = scmp.eq.s32.totalorder %s25, 1
    %p100 = por %p98, %p99
    %p102 = scmp.ne.s32.totalorder %s85, %s101
    %p103 = scmp.eq.s32.totalorder %s25, 0
    %p104 = por %p102, %p103
    %s106 = sadd.s32 %s105, 1
    %p109 = scmp.eq.s32.totalorder %s19, 1
    %p110 = scmp.ne.s32.totalorder %s105, %s107
    %p111 = scmp.eq.s32.totalorder %s19, 0
    %p112 = por %p110, %p111
    %p113 = scmp.ne.s32.totalorder %s105, %s107
    %p114 = scmp.eq.s32.totalorder %s24, 1
    %p115 = por %p113, %p114
    %p116 = scmp.ne.s32.totalorder %s107, %s108
    %p117 = scmp.eq.s32.totalorder %s24, 0
    %p118 = por %p116, %p117
    %p119 = scmp.ne.s32.totalorder %s107, %s108
    %p120 = scmp.eq.s32.totalorder %s25, 1
    %p121 = por %p119, %p120
    %p123 = scmp.ne.s32.totalorder %s108, %s122
    %p124 = scmp.eq.s32.totalorder %s25, 0
    %p125 = por %p123, %p124
    %s127 = sadd.s32 %s126, 1
    %p130 = scmp.eq.s32.totalorder %s19, 1
    %p131 = scmp.ne.s32.totalorder %s126, %s128
    %p132 = scmp.eq.s32.totalorder %s19, 0
    %p133 = por %p131, %p132
    %p134 = scmp.ne.s32.totalorder %s126, %s128
    %p135 = scmp.eq.s32.totalorder %s24, 1
    %p136 = por %p134, %p135
    %p137 = scmp.ne.s32.totalorder %s128, %s129
    %p138 = scmp.eq.s32.totalorder %s24, 0
    %p139 = por %p137, %p138
    %p140 = scmp.ne.s32.totalorder %s128, %s129
    %p141 = scmp.eq.s32.totalorder %s25, 1
    %p142 = por %p140, %p141
    %p144 = scmp.ne.s32.totalorder %s129, %s143
    %p145 = scmp.eq.s32.totalorder %s25, 0
    %p146 = por %p144, %p145
    %s148 = sadd.s32 %s147, 1
    %p151 = scmp.eq.s32.totalorder %s19, 1
    %p152 = scmp.ne.s32.totalorder %s147, %s149
    %p153 = scmp.eq.s32.totalorder %s19, 0
    %p154 = por %p152, %p153
    %p155 = scmp.ne.s32.totalorder %s147, %s149
    %p156 = scmp.eq.s32.totalorder %s24, 1
    %p157 = por %p155, %p156
    %p158 = scmp.ne.s32.totalorder %s149, %s150
    %p159 = scmp.eq.s32.totalorder %s24, 0
    %p160 = por %p158, %p159
    %p161 = scmp.ne.s32.totalorder %s149, %s150
    %p162 = scmp.eq.s32.totalorder %s25, 1
    %p163 = por %p161, %p162
    %p165 = scmp.ne.s32.totalorder %s150, %s164
    %p166 = scmp.eq.s32.totalorder %s25, 0
    %p167 = por %p165, %p166
    %s169 = sadd.s32 %s168, 1
    %p172 = scmp.eq.s32.totalorder %s19, 1
    %p173 = scmp.ne.s32.totalorder %s168, %s170
    %p174 = scmp.eq.s32.totalorder %s19, 0
    %p175 = por %p173, %p174
    %p176 = scmp.ne.s32.totalorder %s168, %s170
    %p177 = scmp.eq.s32.totalorder %s24, 1
    %p178 = por %p176, %p177
    %p179 = scmp.ne.s32.totalorder %s170, %s171
    %p180 = scmp.eq.s32.totalorder %s24, 0
    %p181 = por %p179, %p180
    %p182 = scmp.ne.s32.totalorder %s170, %s171
    %p183 = scmp.eq.s32.totalorder %s25, 1
    %p184 = por %p182, %p183
    %p186 = scmp.ne.s32.totalorder %s171, %s185
    %p187 = scmp.eq.s32.totalorder %s25, 0
    %p188 = por %p186, %p187
    %s190 = sadd.s32 %s189, 1
    %p193 = scmp.eq.s32.totalorder %s19, 1
    %p194 = scmp.ne.s32.totalorder %s189, %s191
    %p195 = scmp.eq.s32.totalorder %s19, 0
    %p196 = por %p194, %p195
    %p197 = scmp.ne.s32.totalorder %s189, %s191
    %p198 = scmp.eq.s32.totalorder %s24, 1
    %p199 = por %p197, %p198
    %p200 = scmp.ne.s32.totalorder %s191, %s192
    %p201 = scmp.eq.s32.totalorder %s24, 0
    %p202 = por %p200, %p201
    %p203 = scmp.ne.s32.totalorder %s191, %s192
    %p204 = scmp.eq.s32.totalorder %s25, 1
    %p205 = por %p203, %p204
    %p207 = scmp.ne.s32.totalorder %s192, %s206
    %p208 = scmp.eq.s32.totalorder %s25, 0
    %p209 = por %p207, %p208
    %s211 = sadd.s32 %s210, 1
    %p214 = scmp.eq.s32.totalorder %s19, 1
    %p215 = scmp.ne.s32.totalorder %s210, %s212
    %p216 = scmp.eq.s32.totalorder %s19, 0
    %p217 = por %p215, %p216
    %p218 = scmp.ne.s32.totalorder %s210, %s212
    %p219 = scmp.eq.s32.totalorder %s24, 1
    %p220 = por %p218, %p219
    %p221 = scmp.ne.s32.totalorder %s212, %s213
    %p222 = scmp.eq.s32.totalorder %s24, 0
    %p223 = por %p221, %p222
    %p224 = scmp.ne.s32.totalorder %s212, %s213
    %p225 = scmp.eq.s32.totalorder %s25, 1
    %p226 = por %p224, %p225
    %p228 = scmp.ne.s32.totalorder %s213, %s227
    %p229 = scmp.eq.s32.totalorder %s25, 0
    %p230 = por %p228, %p229
    %s232 = sadd.s32 %s231, 1
    %p235 = scmp.eq.s32.totalorder %s19, 1
    %p236 = scmp.ne.s32.totalorder %s231, %s233
    %p237 = scmp.eq.s32.totalorder %s19, 0
    %p238 = por %p236, %p237
    %p239 = scmp.ne.s32.totalorder %s231, %s233
    %p240 = scmp.eq.s32.totalorder %s24, 1
    %p241 = por %p239, %p240
    %p242 = scmp.ne.s32.totalorder %s233, %s234
    %p243 = scmp.eq.s32.totalorder %s24, 0
    %p244 = por %p242, %p243
    %p245 = scmp.ne.s32.totalorder %s233, %s234
    %p246 = scmp.eq.s32.totalorder %s25, 1
    %p247 = por %p245, %p246
    %p249 = scmp.ne.s32.totalorder %s234, %s248
    %p250 = scmp.eq.s32.totalorder %s25, 0
    %p251 = por %p249, %p250
    %s253 = sadd.s32 %s252, 1
    %p256 = scmp.eq.s32.totalorder %s19, 1
    %p257 = scmp.ne.s32.totalorder %s252, %s254
    %p258 = scmp.eq.s32.totalorder %s19, 0
    %p259 = por %p257, %p258
    %p260 = scmp.ne.s32.totalorder %s252, %s254
    %p261 = scmp.eq.s32.totalorder %s24, 1
    %p262 = por %p260, %p261
    %p263 = scmp.ne.s32.totalorder %s254, %s255
    %p264 = scmp.eq.s32.totalorder %s24, 0
    %p265 = por %p263, %p264
    %p266 = scmp.ne.s32.totalorder %s254, %s255
    %p267 = scmp.eq.s32.totalorder %s25, 1
    %p268 = por %p266, %p267
    %p270 = scmp.ne.s32.totalorder %s255, %s269
    %p271 = scmp.eq.s32.totalorder %s25, 0
    %p272 = por %p270, %p271
    %s274 = sadd.s32 %s273, 1
    %p277 = scmp.eq.s32.totalorder %s19, 1
    %p278 = scmp.ne.s32.totalorder %s273, %s275
    %p279 = scmp.eq.s32.totalorder %s19, 0
    %p280 = por %p278, %p279
    %p281 = scmp.ne.s32.totalorder %s273, %s275
    %p282 = scmp.eq.s32.totalorder %s24, 1
    %p283 = por %p281, %p282
    %p284 = scmp.ne.s32.totalorder %s275, %s276
    %p285 = scmp.eq.s32.totalorder %s24, 0
    %p286 = por %p284, %p285
    %p287 = scmp.ne.s32.totalorder %s275, %s276
    %p288 = scmp.eq.s32.totalorder %s25, 1
    %p289 = por %p287, %p288
    %p291 = scmp.ne.s32.totalorder %s276, %s290
    %p292 = scmp.eq.s32.totalorder %s25, 0
    %p293 = por %p291, %p292
    %s295 = sadd.s32 %s294, 1
    %p298 = scmp.eq.s32.totalorder %s19, 1
    %p299 = scmp.ne.s32.totalorder %s294, %s296
    %p300 = scmp.eq.s32.totalorder %s19, 0
    %p301 = por %p299, %p300
    %p302 = scmp.ne.s32.totalorder %s294, %s296
    %p303 = scmp.eq.s32.totalorder %s24, 1
    %p304 = por %p302, %p303
    %p305 = scmp.ne.s32.totalorder %s296, %s297
    %p306 = scmp.eq.s32.totalorder %s24, 0
    %p307 = por %p305, %p306
    %p308 = scmp.ne.s32.totalorder %s296, %s297
    %p309 = scmp.eq.s32.totalorder %s25, 1
    %p310 = por %p308, %p309
    %p312 = scmp.ne.s32.totalorder %s297, %s311
    %p313 = scmp.eq.s32.totalorder %s25, 0
    %p314 = por %p312, %p313
    %s315 = ssub.s32 %s19, %s26
    %p316 = scmp.eq.s32.totalorder %s315, 0
    %s318 = sadd.s32 %s317, 1
    %s319 = scalar_select %p316, %s317, %s318
    %p322 = pneg %p316
    %p323 = scmp.eq.s32.totalorder %s19, 1
    %p324 = por %p322, %p323
    %p325 = scmp.ne.s32.totalorder %s317, %s320
    %p326 = scmp.eq.s32.totalorder %s19, 0
    %p327 = por %p325, %p326
    %p328 = scmp.ne.s32.totalorder %s317, %s320
    %p329 = scmp.eq.s32.totalorder %s24, 1
    %p330 = por %p328, %p329
    %p331 = scmp.ne.s32.totalorder %s320, %s321
    %p332 = scmp.eq.s32.totalorder %s24, 0
    %p333 = por %p331, %p332
    %p334 = scmp.ne.s32.totalorder %s320, %s321
    %p335 = scmp.eq.s32.totalorder %s25, 1
    %p336 = por %p334, %p335
    %p338 = scmp.ne.s32.totalorder %s321, %s337
    %p339 = scmp.eq.s32.totalorder %s25, 0
    %p340 = por %p338, %p339
    %p341 = scmp.le.s32.totalorder 1, %s19
    %p342 = scmp.lt.s32.totalorder %s19, 3
    %p343 = pnand %p341, %p342
    %p344 = pneg %p343
    // Predicated region
    $region9: #{unet_export_wrapper_forward.1} parent=5 // pred_check
      _
    $region10: #{unet_export_wrapper_forward.1} parent=5 // pred_check_branch
      %346 = sbr.rel (%p343) target = $region12
    $region11: #{unet_export_wrapper_forward.1} parent=5 // pred_region
      %s347 = ssub.s32 %s19, 1
      // Predicated region
      $region13: #{unet_export_wrapper_forward.1} parent=11 // pred_check
        %p348 = pneg %p118
      $region14: #{unet_export_wrapper_forward.1} parent=11 // pred_check_branch
        %350 = sbr.rel (%p348) target = $region16
      $region15: #{unet_export_wrapper_forward.1} parent=11 // pred_region
        _
      $region16: #{unet_export_wrapper_forward.1} parent=11 // pred_fallthru
        _
      // Predicated region
      $region17: #{unet_export_wrapper_forward.1} parent=11 // pred_check
        %p351 = pneg %p139
      $region18: #{unet_export_wrapper_forward.1} parent=11 // pred_check_branch
        %353 = sbr.rel (%p351) target = $region20
      $region19: #{unet_export_wrapper_forward.1} parent=11 // pred_region
        _
      $region20: #{unet_export_wrapper_forward.1} parent=11 // pred_fallthru
        _
      // Predicated region
      $region21: #{unet_export_wrapper_forward.1} parent=11 // pred_check
        %p354 = pneg %p160
      $region22: #{unet_export_wrapper_forward.1} parent=11 // pred_check_branch
        %356 = sbr.rel (%p354) target = $region24
      $region23: #{unet_export_wrapper_forward.1} parent=11 // pred_region
        _
      $region24: #{unet_export_wrapper_forward.1} parent=11 // pred_fallthru
        _
      // Predicated region
      $region25: #{unet_export_wrapper_forward.1} parent=11 // pred_check
        %p357 = pneg %p181
      $region26: #{unet_export_wrapper_forward.1} parent=11 // pred_check_branch
        %359 = sbr.rel (%p357) target = $region28
      $region27: #{unet_export_wrapper_forward.1} parent=11 // pred_region
        _
      $region28: #{unet_export_wrapper_forward.1} parent=11 // pred_fallthru
        _
      // Predicated region
      $region29: #{unet_export_wrapper_forward.1} parent=11 // pred_check
        %p360 = pneg %p202
      $region30: #{unet_export_wrapper_forward.1} parent=11 // pred_check_branch
        %362 = sbr.rel (%p360) target = $region32
      $region31: #{unet_export_wrapper_forward.1} parent=11 // pred_region
        _
      $region32: #{unet_export_wrapper_forward.1} parent=11 // pred_fallthru
        _
      // Predicated region
      $region33: #{unet_export_wrapper_forward.1} parent=11 // pred_check
        %p363 = pneg %p223
      $region34: #{unet_export_wrapper_forward.1} parent=11 // pred_check_branch
        %365 = sbr.rel (%p363) target = $region36
      $region35: #{unet_export_wrapper_forward.1} parent=11 // pred_region
        _
      $region36: #{unet_export_wrapper_forward.1} parent=11 // pred_fallthru
        _
      // Predicated region
      $region37: #{unet_export_wrapper_forward.1} parent=11 // pred_check
        %p366 = pneg %p244
      $region38: #{unet_export_wrapper_forward.1} parent=11 // pred_check_branch
        %368 = sbr.rel (%p366) target = $region40
      $region39: #{unet_export_wrapper_forward.1} parent=11 // pred_region
        _
      $region40: #{unet_export_wrapper_forward.1} parent=11 // pred_fallthru
        _
      // Predicated region
      $region41: #{unet_export_wrapper_forward.1} parent=11 // pred_check
        %p369 = pneg %p265
      $region42: #{unet_export_wrapper_forward.1} parent=11 // pred_check_branch
        %371 = sbr.rel (%p369) target = $region44
      $region43: #{unet_export_wrapper_forward.1} parent=11 // pred_region
        _
      $region44: #{unet_export_wrapper_forward.1} parent=11 // pred_fallthru
        _
      // Predicated region
      $region45: #{unet_export_wrapper_forward.1} parent=11 // pred_check
        %p372 = pneg %p286
      $region46: #{unet_export_wrapper_forward.1} parent=11 // pred_check_branch
        %374 = sbr.rel (%p372) target = $region48
      $region47: #{unet_export_wrapper_forward.1} parent=11 // pred_region
        _
      $region48: #{unet_export_wrapper_forward.1} parent=11 // pred_fallthru
        _
      // Predicated region
      $region49: #{unet_export_wrapper_forward.1} parent=11 // pred_check
        %p375 = pneg %p307
      $region50: #{unet_export_wrapper_forward.1} parent=11 // pred_check_branch
        %377 = sbr.rel (%p375) target = $region52
      $region51: #{unet_export_wrapper_forward.1} parent=11 // pred_region
        _
      $region52: #{unet_export_wrapper_forward.1} parent=11 // pred_fallthru
        _
    $region12: #{unet_export_wrapper_forward.1} parent=5 // pred_fallthru
      _
    %p378 = scmp.lt.s32.totalorder %s19, 2
    // Predicated region
    $region53: #{unet_export_wrapper_forward.1} parent=5 // pred_check
      %p379 = pneg %p378
    $region54: #{unet_export_wrapper_forward.1} parent=5 // pred_check_branch
      %381 = sbr.rel (%p379) target = $region56
    $region55: #{unet_export_wrapper_forward.1} parent=5 // pred_region
      // Predicated region
      $region57: #{unet_export_wrapper_forward.1} parent=55 // pred_check
        %p382 = pneg %p39
      $region58: #{unet_export_wrapper_forward.1} parent=55 // pred_check_branch
        %384 = sbr.rel (%p382) target = $region60
      $region59: #{unet_export_wrapper_forward.1} parent=55 // pred_region
        %p385 = scmp.lt.s32.totalorder %s19, 1
        %s386 = scalar_select %p385, %s19, 1
        %s387 = smul.addr %s386, 4
        %s388 = smul.addr %s387, 8
        %s389 = scalar_lea.vmem %s0, %s388
      $region60: #{unet_export_wrapper_forward.1} parent=55 // pred_fallthru
        _
      // Predicated region
      $region61: #{unet_export_wrapper_forward.1} parent=55 // pred_check
        %p390 = pneg %p65
      $region62: #{unet_export_wrapper_forward.1} parent=55 // pred_check_branch
        %392 = sbr.rel (%p390) target = $region64
      $region63: #{unet_export_wrapper_forward.1} parent=55 // pred_region
        %p393 = scmp.lt.s32.totalorder %s19, 1
        %s394 = scalar_select %p393, %s19, 1
        %s395 = smul.addr %s394, 2
        %s396 = smul.addr %s395, 4
        %s397 = scalar_lea.vmem %s1, %s396
      $region64: #{unet_export_wrapper_forward.1} parent=55 // pred_fallthru
        _
      // Predicated region
      $region65: #{unet_export_wrapper_forward.1} parent=55 // pred_check
        %p398 = pneg %p91
      $region66: #{unet_export_wrapper_forward.1} parent=55 // pred_check_branch
        %400 = sbr.rel (%p398) target = $region68
      $region67: #{unet_export_wrapper_forward.1} parent=55 // pred_region
        %p401 = scmp.lt.s32.totalorder %s19, 1
        %s402 = scalar_select %p401, %s19, 1
        %s403 = smul.addr %s402, 8
        %s404 = scalar_lea.vmem %s2, %s403
      $region68: #{unet_export_wrapper_forward.1} parent=55 // pred_fallthru
        _
    $region56: #{unet_export_wrapper_forward.1} parent=5 // pred_fallthru
      _
    %p405 = scmp.le.s32.totalorder 1, %s19
    %p406 = scmp.lt.s32.totalorder %s19, 3
    %p407 = pnand %p405, %p406
    %p408 = pneg %p407
    // Predicated region
    $region69: #{unet_export_wrapper_forward.1} parent=5 // pred_check
      _
    $region70: #{unet_export_wrapper_forward.1} parent=5 // pred_check_branch
      %410 = sbr.rel (%p407) target = $region72
    $region71: #{unet_export_wrapper_forward.1} parent=5 // pred_region
      %s411 = ssub.s32 %s19, 1
      %p412 = scmp.lt.s32.totalorder %s24, 1
      %s413 = scalar_select %p412, %s24, 1
      %s414 = smul.addr %s413, 4
      %s415 = smul.addr %s414, 8
      %s416 = scalar_lea.vmem %s0, %s415
      %p417 = pneg %p45
      %p418 = pneg %p42
      %p419 = scmp.lt.s32.totalorder %s24, 1
      %s420 = scalar_select %p419, %s24, 1
      %s421 = smul.addr %s420, 2
      %s422 = smul.addr %s421, 4
      %s423 = scalar_lea.vmem %s1, %s422
      %p424 = pneg %p71
      %p425 = pneg %p68
      %p426 = scmp.lt.s32.totalorder %s24, 1
      %s427 = scalar_select %p426, %s24, 1
      %s428 = smul.addr %s427, 8
      %s429 = scalar_lea.vmem %s2, %s428
      %p430 = pneg %p97
      %p431 = pneg %p94
      %p432 = pneg %p118
      %p433 = pneg %p115
      %p434 = pneg %p139
      %p435 = pneg %p136
      %p436 = pneg %p160
      %p437 = pneg %p157
      %p438 = pneg %p181
      %p439 = pneg %p178
      %p440 = pneg %p202
      %p441 = pneg %p199
      %p442 = pneg %p223
      %p443 = pneg %p220
      %p444 = pneg %p244
      %p445 = pneg %p241
      %p446 = pneg %p265
      %p447 = pneg %p262
      %p448 = pneg %p286
      %p449 = pneg %p283
      %p450 = pneg %p307
      %p451 = pneg %p304
      %p452 = pneg %p333
      %p453 = pneg %p330
      %p454 = scmp.lt.s32.totalorder %s24, 1
      %s455 = scalar_select %p454, %s24, 1
      %s456 = smul.addr %s455, 2
      %s457 = smul.addr %s456, 4
      %s458 = scalar_lea.vmem %s13, %s457
      %p459 = scmp.lt.s32.totalorder %s24, 1
      %s460 = scalar_select %p459, %s24, 1
      %s461 = smul.addr %s460, 4
      %s462 = smul.addr %s461, 8
      %s463 = scalar_lea.vmem %s0, %s462
      %p464 = scmp.lt.s32.totalorder %s24, 1
      %s465 = scalar_select %p464, %s24, 1
      %s466 = smul.addr %s465, 2
      %s467 = smul.addr %s466, 4
      %s468 = scalar_lea.vmem %s1, %s467
      %p469 = scmp.lt.s32.totalorder %s24, 1
      %s470 = scalar_select %p469, %s24, 1
      %s471 = smul.addr %s470, 8
      %s472 = scalar_lea.vmem %s2, %s471
      %p473 = scmp.lt.s32.totalorder %s24, 1
      %s474 = scalar_select %p473, %s24, 1
      %s475 = smul.addr %s474, 2
      %s476 = smul.addr %s475, 4
      %s477 = scalar_lea.vmem %s13, %s476
      %v479 = vld [vmem:[%s8] sm:$0xff]
      %v480 = vld [vmem:[%s8 + $0x8] sm:$0xff]
      %v481 = vld [vmem:[%s8 + $0x10] sm:$0xff]
      %v482 = vld [vmem:[%s8 + $0x18] sm:$0xff]
      %v483 = vld [vmem:[%s9] sm:$0xff]
      %v484 = vld [vmem:[%s9 + $0x8] sm:$0xff]
      %v485 = vld [vmem:[%s9 + $0x10] sm:$0x1]
      %v486 = vld [vmem:[%s9 + $0x18] sm:$0x1]
      %v487 = vld [vmem:[%s463] sm:$0xff]
      %v488 = vld [vmem:[%s463 + $0x8] sm:$0xff]
      %v489 = vld [vmem:[%s463 + $0x10] sm:$0xff]
      %v490 = vld [vmem:[%s463 + $0x18] sm:$0xff]
      %v491 = vld [vmem:[%s3] sm:$0xff]
      %v492 = vld [vmem:[%s3 + $0x8] sm:$0xff]
      %v493 = vld [vmem:[%s3 + $0x10] sm:$0xff]
      %v494 = vld [vmem:[%s3 + $0x18] sm:$0xff]
      %v495 = vld [vmem:[%s3 + $0x20] sm:$0xff]
      %v496 = vld [vmem:[%s3 + $0x28] sm:$0xff]
      %v497 = vld [vmem:[%s3 + $0x30] sm:$0xff]
      %v498 = vld [vmem:[%s3 + $0x38] sm:$0xff]
      %v499 = vld [vmem:[%s5] sm:$0xff]
      %v500 = vld [vmem:[%s5 + $0x8] sm:$0xff]
      %v501 = vld [vmem:[%s5 + $0x10] sm:$0xff]
      %v502 = vld [vmem:[%s5 + $0x18] sm:$0xff]
      %v503 = vld [vmem:[%s5 + $0x20] sm:$0xff]
      %v504 = vld [vmem:[%s5 + $0x28] sm:$0xff]
      %v505 = vld [vmem:[%s5 + $0x30] sm:$0xff]
      %v506 = vld [vmem:[%s5 + $0x38] sm:$0xff]
      %vm507 = vcmask 261120
      %v509 = vsel %vm507, %v491, 0
      %v512 = vsel %vm507, %v492, 0
      %v515 = vsel %vm507, %v493, 0
      %v518 = vsel %vm507, %v494, 0
      %v521 = vsel %vm507, %v495, 0
      %v524 = vsel %vm507, %v496, 0
      %v527 = vsel %vm507, %v497, 0
      %v530 = vsel %vm507, %v498, 0
      %532 = vmatpush.msra.mxu0 0.0
      %533 = vmatpush.msra.mxu0 0.0
      %534 = vmatpush.msra.mxu0 0.0
      %535 = vmatpush.msra.mxu0 0.0
      %536 = vmatpush.msra.mxu0 0.0
      %537 = vmatpush.msra.mxu0 0.0
      %538 = vmatpush.msra.mxu0 0.0
      %539 = vmatpush.msra.mxu0 0.0
      %540 = vmatpush.msra.mxu0 0.0
      %541 = vmatpush.msra.mxu0 0.0
      %542 = vmatpush.msra.mxu0 0.0
      %543 = vmatpush.msra.mxu0 0.0
      %544 = vmatpush.msra.mxu0 %v490
      %545 = vmatpush.msra.mxu0 %v489
      %546 = vmatpush.msra.mxu0 %v488
      %547 = vmatpush.msra.mxu0 %v487
      %548 = vmatmul.f32.gmra.mxu0 %v509
      %v549 = vpop.f32.mrf.mxu0
      %v550 = vadd.f32 %v499, %v549
      %551 = vmatmul.f32.gmra.mxu0 %v512
      %v552 = vpop.f32.mrf.mxu0
      %v553 = vadd.f32 %v500, %v552
      %554 = vmatmul.f32.gmra.mxu0 %v515
      %v555 = vpop.f32.mrf.mxu0
      %v556 = vadd.f32 %v501, %v555
      %557 = vmatmul.f32.gmra.mxu0 %v518
      %v558 = vpop.f32.mrf.mxu0
      %v559 = vadd.f32 %v502, %v558
      %560 = vmatmul.f32.gmra.mxu0 %v521
      %v561 = vpop.f32.mrf.mxu0
      %v562 = vadd.f32 %v503, %v561
      %563 = vmatmul.f32.gmra.mxu0 %v524
      %v564 = vpop.f32.mrf.mxu0
      %v565 = vadd.f32 %v504, %v564
      %566 = vmatmul.f32.gmra.mxu0 %v527
      %v567 = vpop.f32.mrf.mxu0
      %v568 = vadd.f32 %v505, %v567
      %569 = vmatmul.f32.gmra.mxu0 %v530
      %v570 = vpop.f32.mrf.mxu0
      %v571 = vadd.f32 %v506, %v570
      %572 = vdwg.mxu0
      %v573 = vsub.f32 0.0, %v550
      %v574 = vsub.f32 0.0, %v553
      %v575 = vsub.f32 0.0, %v556
      %v576 = vsub.f32 0.0, %v559
      %v577 = vsub.f32 0.0, %v562
      %v578 = vsub.f32 0.0, %v565
      %v579 = vsub.f32 0.0, %v568
      %v580 = vsub.f32 0.0, %v571
      %v581 = vmul.f32 %v573, 1.442695
      %v582 = vpow.pop %v581
      %v583 = vmul.f32 %v574, 1.442695
      %v584 = vpow.pop %v583
      %v585 = vmul.f32 %v575, 1.442695
      %v586 = vpow.pop %v585
      %v587 = vmul.f32 %v576, 1.442695
      %v588 = vpow.pop %v587
      %v589 = vmul.f32 %v577, 1.442695
      %v590 = vpow.pop %v589
      %v591 = vmul.f32 %v578, 1.442695
      %v592 = vpow.pop %v591
      %v593 = vmul.f32 %v579, 1.442695
      %v594 = vpow.pop %v593
      %v595 = vmul.f32 %v580, 1.442695
      %v596 = vpow.pop %v595
      %v597 = vadd.f32 %v582, 1.0
      %v598 = vadd.f32 %v584, 1.0
      %v599 = vadd.f32 %v586, 1.0
      %v600 = vadd.f32 %v588, 1.0
      %v601 = vadd.f32 %v590, 1.0
      %v602 = vadd.f32 %v592, 1.0
      %v603 = vadd.f32 %v594, 1.0
      %v604 = vadd.f32 %v596, 1.0
      %v605 = vrcp.pop %v597
      %v606 = vmul.f32 %v597, %v605
      %v607 = vsub.f32 1.0, %v606
      %v608 = vmul.f32 %v605, %v607
      %v609 = vadd.f32 %v605, %v608
      %vm610 = vweird.f32 %v597
      %vm611 = vweird.f32 %v605
      %vm612 = vmor %vm610, %vm611
      %v613 = vsel %vm612, %v605, %v609
      %v614 = vand.u32 2147483647, %v597
      %vm615 = vcmp.eq.f32.partialorder %v614, 8.507059e+37
      %v616 = vand.u32 %v597, 2147483648
      %v617 = vor.u32 1.1754944e-38, %v616
      %v618 = vsel %vm615, %v617, %v613
      %v619 = vmul.f32 1.0, %v618
      %v620 = vrcp.pop %v598
      %v621 = vmul.f32 %v598, %v620
      %v622 = vsub.f32 1.0, %v621
      %v623 = vmul.f32 %v620, %v622
      %v624 = vadd.f32 %v620, %v623
      %vm625 = vweird.f32 %v598
      %vm626 = vweird.f32 %v620
      %vm627 = vmor %vm625, %vm626
      %v628 = vsel %vm627, %v620, %v624
      %v629 = vand.u32 2147483647, %v598
      %vm630 = vcmp.eq.f32.partialorder %v629, 8.507059e+37
      %v631 = vand.u32 %v598, 2147483648
      %v632 = vor.u32 1.1754944e-38, %v631
      %v633 = vsel %vm630, %v632, %v628
      %v634 = vmul.f32 1.0, %v633
      %v635 = vrcp.pop %v599
      %v636 = vmul.f32 %v599, %v635
      %v637 = vsub.f32 1.0, %v636
      %v638 = vmul.f32 %v635, %v637
      %v639 = vadd.f32 %v635, %v638
      %vm640 = vweird.f32 %v599
      %vm641 = vweird.f32 %v635
      %vm642 = vmor %vm640, %vm641
      %v643 = vsel %vm642, %v635, %v639
      %v644 = vand.u32 2147483647, %v599
      %vm645 = vcmp.eq.f32.partialorder %v644, 8.507059e+37
      %v646 = vand.u32 %v599, 2147483648
      %v647 = vor.u32 1.1754944e-38, %v646
      %v648 = vsel %vm645, %v647, %v643
      %v649 = vmul.f32 1.0, %v648
      %v650 = vrcp.pop %v600
      %v651 = vmul.f32 %v600, %v650
      %v652 = vsub.f32 1.0, %v651
      %v653 = vmul.f32 %v650, %v652
      %v654 = vadd.f32 %v650, %v653
      %vm655 = vweird.f32 %v600
      %vm656 = vweird.f32 %v650
      %vm657 = vmor %vm655, %vm656
      %v658 = vsel %vm657, %v650, %v654
      %v659 = vand.u32 2147483647, %v600
      %vm660 = vcmp.eq.f32.partialorder %v659, 8.507059e+37
      %v661 = vand.u32 %v600, 2147483648
      %v662 = vor.u32 1.1754944e-38, %v661
      %v663 = vsel %vm660, %v662, %v658
      %v664 = vmul.f32 1.0, %v663
      %v665 = vrcp.pop %v601
      %v666 = vmul.f32 %v601, %v665
      %v667 = vsub.f32 1.0, %v666
      %v668 = vmul.f32 %v665, %v667
      %v669 = vadd.f32 %v665, %v668
      %vm670 = vweird.f32 %v601
      %vm671 = vweird.f32 %v665
      %vm672 = vmor %vm670, %vm671
      %v673 = vsel %vm672, %v665, %v669
      %v674 = vand.u32 2147483647, %v601
      %vm675 = vcmp.eq.f32.partialorder %v674, 8.507059e+37
      %v676 = vand.u32 %v601, 2147483648
      %v677 = vor.u32 1.1754944e-38, %v676
      %v678 = vsel %vm675, %v677, %v673
      %v679 = vmul.f32 1.0, %v678
      %v680 = vrcp.pop %v602
      %v681 = vmul.f32 %v602, %v680
      %v682 = vsub.f32 1.0, %v681
      %v683 = vmul.f32 %v680, %v682
      %v684 = vadd.f32 %v680, %v683
      %vm685 = vweird.f32 %v602
      %vm686 = vweird.f32 %v680
      %vm687 = vmor %vm685, %vm686
      %v688 = vsel %vm687, %v680, %v684
      %v689 = vand.u32 2147483647, %v602
      %vm690 = vcmp.eq.f32.partialorder %v689, 8.507059e+37
      %v691 = vand.u32 %v602, 2147483648
      %v692 = vor.u32 1.1754944e-38, %v691
      %v693 = vsel %vm690, %v692, %v688
      %v694 = vmul.f32 1.0, %v693
      %v695 = vrcp.pop %v603
      %v696 = vmul.f32 %v603, %v695
      %v697 = vsub.f32 1.0, %v696
      %v698 = vmul.f32 %v695, %v697
      %v699 = vadd.f32 %v695, %v698
      %vm700 = vweird.f32 %v603
      %vm701 = vweird.f32 %v695
      %vm702 = vmor %vm700, %vm701
      %v703 = vsel %vm702, %v695, %v699
      %v704 = vand.u32 2147483647, %v603
      %vm705 = vcmp.eq.f32.partialorder %v704, 8.507059e+37
      %v706 = vand.u32 %v603, 2147483648
      %v707 = vor.u32 1.1754944e-38, %v706
      %v708 = vsel %vm705, %v707, %v703
      %v709 = vmul.f32 1.0, %v708
      %v710 = vrcp.pop %v604
      %v711 = vmul.f32 %v604, %v710
      %v712 = vsub.f32 1.0, %v711
      %v713 = vmul.f32 %v710, %v712
      %v714 = vadd.f32 %v710, %v713
      %vm715 = vweird.f32 %v604
      %vm716 = vweird.f32 %v710
      %vm717 = vmor %vm715, %vm716
      %v718 = vsel %vm717, %v710, %v714
      %v719 = vand.u32 2147483647, %v604
      %vm720 = vcmp.eq.f32.partialorder %v719, 8.507059e+37
      %v721 = vand.u32 %v604, 2147483648
      %v722 = vor.u32 1.1754944e-38, %v721
      %v723 = vsel %vm720, %v722, %v718
      %v724 = vmul.f32 1.0, %v723
      %v725 = vmul.f32 %v550, %v619
      %v726 = vmul.f32 %v553, %v634
      %v727 = vmul.f32 %v556, %v649
      %v728 = vmul.f32 %v559, %v664
      %v729 = vmul.f32 %v562, %v679
      %v730 = vmul.f32 %v565, %v694
      %v731 = vmul.f32 %v568, %v709
      %v732 = vmul.f32 %v571, %v724
      %v733 = vld [vmem:[%s4] sm:$0xff]
      %v734 = vld [vmem:[%s4 + $0x8] sm:$0xff]
      %v735 = vld [vmem:[%s4 + $0x10] sm:$0xff]
      %v736 = vld [vmem:[%s4 + $0x18] sm:$0xff]
      %v737 = vld [vmem:[%s4 + $0x20] sm:$0xff]
      %v738 = vld [vmem:[%s4 + $0x28] sm:$0xff]
      %v739 = vld [vmem:[%s4 + $0x30] sm:$0xff]
      %v740 = vld [vmem:[%s4 + $0x38] sm:$0xff]
      %749 = vrot.lane.b32.xlu0 %v499, 127
      %v750 = vpop.permute.xlu0 %749
      %751 = vrot.lane.b32.xlu0 %v500, 127
      %v752 = vpop.permute.xlu0 %751
      %753 = vrot.lane.b32.xlu0 %v501, 127
      %v754 = vpop.permute.xlu0 %753
      %755 = vrot.lane.b32.xlu0 %v502, 127
      %v756 = vpop.permute.xlu0 %755
      %757 = vrot.lane.b32.xlu0 %v503, 127
      %v758 = vpop.permute.xlu0 %757
      %759 = vrot.lane.b32.xlu0 %v504, 127
      %v760 = vpop.permute.xlu0 %759
      %761 = vrot.lane.b32.xlu0 %v505, 127
      %v762 = vpop.permute.xlu0 %761
      %763 = vrot.lane.b32.xlu0 %v506, 127
      %v764 = vpop.permute.xlu0 %763
      %vm773 = vcmask 523264
      %v775 = vsel %vm773, %v733, 0
      %v778 = vsel %vm773, %v734, 0
      %v781 = vsel %vm773, %v735, 0
      %v784 = vsel %vm773, %v736, 0
      %v787 = vsel %vm773, %v737, 0
      %v790 = vsel %vm773, %v738, 0
      %v793 = vsel %vm773, %v739, 0
      %v796 = vsel %vm773, %v740, 0
      %798 = vmatpush.msra.mxu0 0.0
      %799 = vmatpush.msra.mxu0 0.0
      %800 = vmatpush.msra.mxu0 0.0
      %801 = vmatpush.msra.mxu0 0.0
      %802 = vmatpush.msra.mxu0 0.0
      %803 = vmatpush.msra.mxu0 0.0
      %804 = vmatpush.msra.mxu0 0.0
      %805 = vmatpush.msra.mxu0 0.0
      %806 = vmatpush.msra.mxu0 %v732
      %807 = vmatpush.msra.mxu0 %v731
      %808 = vmatpush.msra.mxu0 %v730
      %809 = vmatpush.msra.mxu0 %v729
      %810 = vmatpush.msra.mxu0 %v728
      %811 = vmatpush.msra.mxu0 %v727
      %812 = vmatpush.msra.mxu0 %v726
      %813 = vmatpush.msra.mxu0 %v725
      %814 = vmatmul.f32.gmra.mxu0 %v775
      %v815 = vpop.f32.mrf.mxu0
      %v816 = vadd.f32 %v750, %v815
      %817 = vmatmul.f32.gmra.mxu0 %v778
      %v818 = vpop.f32.mrf.mxu0
      %v819 = vadd.f32 %v752, %v818
      %820 = vmatmul.f32.gmra.mxu0 %v781
      %v821 = vpop.f32.mrf.mxu0
      %v822 = vadd.f32 %v754, %v821
      %823 = vmatmul.f32.gmra.mxu0 %v784
      %v824 = vpop.f32.mrf.mxu0
      %v825 = vadd.f32 %v756, %v824
      %826 = vmatmul.f32.gmra.mxu0 %v787
      %v827 = vpop.f32.mrf.mxu0
      %v828 = vadd.f32 %v758, %v827
      %829 = vmatmul.f32.gmra.mxu0 %v790
      %v830 = vpop.f32.mrf.mxu0
      %v831 = vadd.f32 %v760, %v830
      %832 = vmatmul.f32.gmra.mxu0 %v793
      %v833 = vpop.f32.mrf.mxu0
      %v834 = vadd.f32 %v762, %v833
      %835 = vmatmul.f32.gmra.mxu0 %v796
      %v836 = vpop.f32.mrf.mxu0
      %v837 = vadd.f32 %v764, %v836
      %838 = vdwg.mxu0
      %v839 = vld [vmem:[%s6] sm:$0xff]
      %v840 = vld [vmem:[%s6 + $0x8] sm:$0xff]
      %v841 = vld [vmem:[%s6 + $0x10] sm:$0xff]
      %v842 = vld [vmem:[%s6 + $0x18] sm:$0xff]
      %v843 = vsub.f32 0.0, %v816
      %v844 = vsub.f32 0.0, %v819
      %v845 = vsub.f32 0.0, %v822
      %v846 = vsub.f32 0.0, %v825
      %v847 = vsub.f32 0.0, %v828
      %v848 = vsub.f32 0.0, %v831
      %v849 = vsub.f32 0.0, %v834
      %v850 = vsub.f32 0.0, %v837
      %v851 = vmul.f32 %v843, 1.442695
      %v852 = vpow.pop %v851
      %v853 = vmul.f32 %v844, 1.442695
      %v854 = vpow.pop %v853
      %v855 = vmul.f32 %v845, 1.442695
      %v856 = vpow.pop %v855
      %v857 = vmul.f32 %v846, 1.442695
      %v858 = vpow.pop %v857
      %v859 = vmul.f32 %v847, 1.442695
      %v860 = vpow.pop %v859
      %v861 = vmul.f32 %v848, 1.442695
      %v862 = vpow.pop %v861
      %v863 = vmul.f32 %v849, 1.442695
      %v864 = vpow.pop %v863
      %v865 = vmul.f32 %v850, 1.442695
      %v866 = vpow.pop %v865
      %v867 = vadd.f32 %v852, 1.0
      %v868 = vadd.f32 %v854, 1.0
      %v869 = vadd.f32 %v856, 1.0
      %v870 = vadd.f32 %v858, 1.0
      %v871 = vadd.f32 %v860, 1.0
      %v872 = vadd.f32 %v862, 1.0
      %v873 = vadd.f32 %v864, 1.0
      %v874 = vadd.f32 %v866, 1.0
      %v875 = vrcp.pop %v867
      %v876 = vmul.f32 %v867, %v875
      %v877 = vsub.f32 1.0, %v876
      %v878 = vmul.f32 %v875, %v877
      %v879 = vadd.f32 %v875, %v878
      %vm880 = vweird.f32 %v867
      %vm881 = vweird.f32 %v875
      %vm882 = vmor %vm880, %vm881
      %v883 = vsel %vm882, %v875, %v879
      %v884 = vand.u32 2147483647, %v867
      %vm885 = vcmp.eq.f32.partialorder %v884, 8.507059e+37
      %v886 = vand.u32 %v867, 2147483648
      %v887 = vor.u32 1.1754944e-38, %v886
      %v888 = vsel %vm885, %v887, %v883
      %v889 = vmul.f32 1.0, %v888
      %v890 = vrcp.pop %v868
      %v891 = vmul.f32 %v868, %v890
      %v892 = vsub.f32 1.0, %v891
      %v893 = vmul.f32 %v890, %v892
      %v894 = vadd.f32 %v890, %v893
      %vm895 = vweird.f32 %v868
      %vm896 = vweird.f32 %v890
      %vm897 = vmor %vm895, %vm896
      %v898 = vsel %vm897, %v890, %v894
      %v899 = vand.u32 2147483647, %v868
      %vm900 = vcmp.eq.f32.partialorder %v899, 8.507059e+37
      %v901 = vand.u32 %v868, 2147483648
      %v902 = vor.u32 1.1754944e-38, %v901
      %v903 = vsel %vm900, %v902, %v898
      %v904 = vmul.f32 1.0, %v903
      %v905 = vrcp.pop %v869
      %v906 = vmul.f32 %v869, %v905
      %v907 = vsub.f32 1.0, %v906
      %v908 = vmul.f32 %v905, %v907
      %v909 = vadd.f32 %v905, %v908
      %vm910 = vweird.f32 %v869
      %vm911 = vweird.f32 %v905
      %vm912 = vmor %vm910, %vm911
      %v913 = vsel %vm912, %v905, %v909
      %v914 = vand.u32 2147483647, %v869
      %vm915 = vcmp.eq.f32.partialorder %v914, 8.507059e+37
      %v916 = vand.u32 %v869, 2147483648
      %v917 = vor.u32 1.1754944e-38, %v916
      %v918 = vsel %vm915, %v917, %v913
      %v919 = vmul.f32 1.0, %v918
      %v920 = vrcp.pop %v870
      %v921 = vmul.f32 %v870, %v920
      %v922 = vsub.f32 1.0, %v921
      %v923 = vmul.f32 %v920, %v922
      %v924 = vadd.f32 %v920, %v923
      %vm925 = vweird.f32 %v870
      %vm926 = vweird.f32 %v920
      %vm927 = vmor %vm925, %vm926
      %v928 = vsel %vm927, %v920, %v924
      %v929 = vand.u32 2147483647, %v870
      %vm930 = vcmp.eq.f32.partialorder %v929, 8.507059e+37
      %v931 = vand.u32 %v870, 2147483648
      %v932 = vor.u32 1.1754944e-38, %v931
      %v933 = vsel %vm930, %v932, %v928
      %v934 = vmul.f32 1.0, %v933
      %v935 = vrcp.pop %v871
      %v936 = vmul.f32 %v871, %v935
      %v937 = vsub.f32 1.0, %v936
      %v938 = vmul.f32 %v935, %v937
      %v939 = vadd.f32 %v935, %v938
      %vm940 = vweird.f32 %v871
      %vm941 = vweird.f32 %v935
      %vm942 = vmor %vm940, %vm941
      %v943 = vsel %vm942, %v935, %v939
      %v944 = vand.u32 2147483647, %v871
      %vm945 = vcmp.eq.f32.partialorder %v944, 8.507059e+37
      %v946 = vand.u32 %v871, 2147483648
      %v947 = vor.u32 1.1754944e-38, %v946
      %v948 = vsel %vm945, %v947, %v943
      %v949 = vmul.f32 1.0, %v948
      %v950 = vrcp.pop %v872
      %v951 = vmul.f32 %v872, %v950
      %v952 = vsub.f32 1.0, %v951
      %v953 = vmul.f32 %v950, %v952
      %v954 = vadd.f32 %v950, %v953
      %vm955 = vweird.f32 %v872
      %vm956 = vweird.f32 %v950
      %vm957 = vmor %vm955, %vm956
      %v958 = vsel %vm957, %v950, %v954
      %v959 = vand.u32 2147483647, %v872
      %vm960 = vcmp.eq.f32.partialorder %v959, 8.507059e+37
      %v961 = vand.u32 %v872, 2147483648
      %v962 = vor.u32 1.1754944e-38, %v961
      %v963 = vsel %vm960, %v962, %v958
      %v964 = vmul.f32 1.0, %v963
      %v965 = vrcp.pop %v873
      %v966 = vmul.f32 %v873, %v965
      %v967 = vsub.f32 1.0, %v966
      %v968 = vmul.f32 %v965, %v967
      %v969 = vadd.f32 %v965, %v968
      %vm970 = vweird.f32 %v873
      %vm971 = vweird.f32 %v965
      %vm972 = vmor %vm970, %vm971
      %v973 = vsel %vm972, %v965, %v969
      %v974 = vand.u32 2147483647, %v873
      %vm975 = vcmp.eq.f32.partialorder %v974, 8.507059e+37
      %v976 = vand.u32 %v873, 2147483648
      %v977 = vor.u32 1.1754944e-38, %v976
      %v978 = vsel %vm975, %v977, %v973
      %v979 = vmul.f32 1.0, %v978
      %v980 = vrcp.pop %v874
      %v981 = vmul.f32 %v874, %v980
      %v982 = vsub.f32 1.0, %v981
      %v983 = vmul.f32 %v980, %v982
      %v984 = vadd.f32 %v980, %v983
      %vm985 = vweird.f32 %v874
      %vm986 = vweird.f32 %v980
      %vm987 = vmor %vm985, %vm986
      %v988 = vsel %vm987, %v980, %v984
      %v989 = vand.u32 2147483647, %v874
      %vm990 = vcmp.eq.f32.partialorder %v989, 8.507059e+37
      %v991 = vand.u32 %v874, 2147483648
      %v992 = vor.u32 1.1754944e-38, %v991
      %v993 = vsel %vm990, %v992, %v988
      %v994 = vmul.f32 1.0, %v993
      %v995 = vmul.f32 %v816, %v889
      %v996 = vmul.f32 %v819, %v904
      %v997 = vmul.f32 %v822, %v919
      %v998 = vmul.f32 %v825, %v934
      %v999 = vmul.f32 %v828, %v949
      %v1000 = vmul.f32 %v831, %v964
      %v1001 = vmul.f32 %v834, %v979
      %v1002 = vmul.f32 %v837, %v994
      %v1003 = vld [vmem:[%s7] sm:$0xff]
      %v1004 = vld [vmem:[%s7 + $0x8] sm:$0xff]
      %v1005 = vld [vmem:[%s7 + $0x10] sm:$0xff]
      %v1006 = vld [vmem:[%s7 + $0x18] sm:$0xff]
      %1011 = vrot.lane.b32.xlu0 %v1003, 124
      %v1012 = vpop.permute.xlu0 %1011
      %1013 = vrot.lane.b32.xlu0 %v1004, 124
      %v1014 = vpop.permute.xlu0 %1013
      %1015 = vrot.lane.b32.xlu0 %v1005, 124
      %v1016 = vpop.permute.xlu0 %1015
      %1017 = vrot.lane.b32.xlu0 %v1006, 124
      %v1018 = vpop.permute.xlu0 %1017
      %v1024 = vsel %vm773, %v839, 0
      %v1027 = vsel %vm773, %v840, 0
      %v1030 = vsel %vm773, %v841, 0
      %v1033 = vsel %vm773, %v842, 0
      %1035 = vmatpush.msra.mxu0 0.0
      %1036 = vmatpush.msra.mxu0 0.0
      %1037 = vmatpush.msra.mxu0 0.0
      %1038 = vmatpush.msra.mxu0 0.0
      %1039 = vmatpush.msra.mxu0 0.0
      %1040 = vmatpush.msra.mxu0 0.0
      %1041 = vmatpush.msra.mxu0 0.0
      %1042 = vmatpush.msra.mxu0 0.0
      %1043 = vmatpush.msra.mxu0 %v1002
      %1044 = vmatpush.msra.mxu0 %v1001
      %1045 = vmatpush.msra.mxu0 %v1000
      %1046 = vmatpush.msra.mxu0 %v999
      %1047 = vmatpush.msra.mxu0 %v998
      %1048 = vmatpush.msra.mxu0 %v997
      %1049 = vmatpush.msra.mxu0 %v996
      %1050 = vmatpush.msra.mxu0 %v995
      %1051 = vmatmul.f32.gmra.mxu0 %v1024
      %v1052 = vpop.f32.mrf.mxu0
      %v1053 = vadd.f32 %v1012, %v1052
      %1054 = vmatmul.f32.gmra.mxu0 %v1027
      %v1055 = vpop.f32.mrf.mxu0
      %v1056 = vadd.f32 %v1014, %v1055
      %1057 = vmatmul.f32.gmra.mxu0 %v1030
      %v1058 = vpop.f32.mrf.mxu0
      %v1059 = vadd.f32 %v1016, %v1058
      %1060 = vmatmul.f32.gmra.mxu0 %v1033
      %v1061 = vpop.f32.mrf.mxu0
      %v1062 = vadd.f32 %v1018, %v1061
      %1063 = vdwg.mxu0
      %v1064 = vld [vmem:[%s468] sm:$0xff]
      %v1065 = vld [vmem:[%s10] sm:$0xff]
      %v1066 = vld [vmem:[%s10 + $0x8] sm:$0xff]
      %v1067 = vld [vmem:[%s10 + $0x10] sm:$0xff]
      %v1068 = vld [vmem:[%s10 + $0x18] sm:$0xff]
      %1070 = vst [vmem:[#allocation1] ss:$2 sm:$0xff] %v1064
      %v1071 = vld.sshfl [vmem:[#allocation1] sm:$0xff pattern:$0x75316420]
      %v1072 = vld.sshfl [vmem:[#allocation1 + $0x8] sm:$0xff pattern:$0x75316420]
      %1075 = vrot.lane.b32.xlu0 %v1071, 17
      %v1076 = vpop.permute.xlu0 %1075
      %1077 = vrot.lane.b32.xlu0 %v1072, 17
      %v1078 = vpop.permute.xlu0 %1077
      %v1079 = vlaneseq
      %v1080 = vand.u32 %v1079, 127
      %vm1081 = vcmp.lt.s32.totalorder %v1080, 17
      %v1082 = vsel %vm1081, %v1076, %v1078
      %v1083 = vsel %vm1081, %v1078, %v1076
      %v1084 = vperm.slane %v483, 0
      %v1085 = vperm.slane %v484, 0
      %v1086 = vmul.f32 %v1083, %v1084
      %v1087 = vmul.f32 %v1082, %v1085
      %1088 = vst [vmem:[#allocation1] ss:$2 sm:$0xff] %v1064
      %v1089 = vld.sshfl [vmem:[#allocation1] sm:$0xff pattern:$0x75316420]
      %v1090 = vld.sshfl [vmem:[#allocation1 + $0x8] sm:$0xff pattern:$0x75316420]
      %1093 = vrot.lane.b32.xlu0 %v1089, 16
      %v1094 = vpop.permute.xlu0 %1093
      %1095 = vrot.lane.b32.xlu0 %v1090, 16
      %v1096 = vpop.permute.xlu0 %1095
      %vm1097 = vcmp.lt.s32.totalorder %v1080, 16
      %v1098 = vsel %vm1097, %v1094, %v1096
      %v1099 = vsel %vm1097, %v1096, %v1094
      %v1100 = vperm.slane %v483, 1
      %v1101 = vperm.slane %v484, 1
      %v1102 = vmul.f32 %v1099, %v1100
      %v1103 = vmul.f32 %v1098, %v1101
      %1108 = vrot.lane.b32.xlu0 %v1065, 124
      %v1109 = vpop.permute.xlu0 %1108
      %1110 = vrot.lane.b32.xlu0 %v1066, 124
      %v1111 = vpop.permute.xlu0 %1110
      %1112 = vrot.lane.b32.xlu0 %v1067, 124
      %v1113 = vpop.permute.xlu0 %1112
      %1114 = vrot.lane.b32.xlu0 %v1068, 124
      %v1115 = vpop.permute.xlu0 %1114
      %vm1116 = vcmask 31744
      %v1117 = vsel %vm1116, %v1109, 0
      %v1119 = vsel %vm1116, %v1111, 0
      %v1121 = vsel %vm1116, %v1113, 0
      %v1123 = vsel %vm1116, %v1115, 0
      %vm1125 = vcmask 1043456
      %v1127 = vsel %vm1125, %v1102, 0
      %v1130 = vsel %vm1125, %v1103, 0
      %1132 = vmatpush.msra.mxu0 0.0
      %1133 = vmatpush.msra.mxu0 0.0
      %1134 = vmatpush.msra.mxu0 0.0
      %1135 = vmatpush.msra.mxu0 0.0
      %1136 = vmatpush.msra.mxu0 0.0
      %1137 = vmatpush.msra.mxu0 0.0
      %1138 = vmatpush.msra.mxu0 0.0
      %1139 = vmatpush.msra.mxu0 0.0
      %1140 = vmatpush.msra.mxu0 0.0
      %1141 = vmatpush.msra.mxu0 0.0
      %1142 = vmatpush.msra.mxu0 0.0
      %1143 = vmatpush.msra.mxu0 0.0
      %1144 = vmatpush.msra.mxu0 0.0
      %1145 = vmatpush.msra.mxu0 0.0
      %1146 = vmatpush.msra.mxu0 0.0
      %1147 = vmatpush.msra.mxu0 %v1127
      %1148 = vmatmul.f32.gmra.mxu0 %v1117
      %v1149 = vpop.f32.mrf.mxu0
      %v1150 = vadd.f32 0.0, %v1149
      %1151 = vmatmul.f32.gmra.mxu0 %v1119
      %v1152 = vpop.f32.mrf.mxu0
      %v1153 = vadd.f32 0.0, %v1152
      %1154 = vmatmul.f32.gmra.mxu0 %v1121
      %v1155 = vpop.f32.mrf.mxu0
      %v1156 = vadd.f32 0.0, %v1155
      %1157 = vmatmul.f32.gmra.mxu0 %v1123
      %v1158 = vpop.f32.mrf.mxu0
      %v1159 = vadd.f32 0.0, %v1158
      %1160 = vdwg.mxu0
      %1161 = vmatpush.msra.mxu0 0.0
      %1162 = vmatpush.msra.mxu0 0.0
      %1163 = vmatpush.msra.mxu0 0.0
      %1164 = vmatpush.msra.mxu0 0.0
      %1165 = vmatpush.msra.mxu0 0.0
      %1166 = vmatpush.msra.mxu0 0.0
      %1167 = vmatpush.msra.mxu0 0.0
      %1168 = vmatpush.msra.mxu0 0.0
      %1169 = vmatpush.msra.mxu0 0.0
      %1170 = vmatpush.msra.mxu0 0.0
      %1171 = vmatpush.msra.mxu0 0.0
      %1172 = vmatpush.msra.mxu0 0.0
      %1173 = vmatpush.msra.mxu0 0.0
      %1174 = vmatpush.msra.mxu0 0.0
      %1175 = vmatpush.msra.mxu0 0.0
      %1176 = vmatpush.msra.mxu0 %v1130
      %1177 = vmatmul.f32.gmra.mxu0 %v1117
      %v1178 = vpop.f32.mrf.mxu0
      %v1179 = vadd.f32 0.0, %v1178
      %1180 = vmatmul.f32.gmra.mxu0 %v1119
      %v1181 = vpop.f32.mrf.mxu0
      %v1182 = vadd.f32 0.0, %v1181
      %1183 = vmatmul.f32.gmra.mxu0 %v1121
      %v1184 = vpop.f32.mrf.mxu0
      %v1185 = vadd.f32 0.0, %v1184
      %1186 = vmatmul.f32.gmra.mxu0 %v1123
      %v1187 = vpop.f32.mrf.mxu0
      %v1188 = vadd.f32 0.0, %v1187
      %1189 = vdwg.mxu0
      %v1190 = vsel %vm1116, %v1065, 0
      %v1192 = vsel %vm1116, %v1066, 0
      %v1194 = vsel %vm1116, %v1067, 0
      %v1196 = vsel %vm1116, %v1068, 0
      %v1199 = vsel %vm1125, %v1086, 0
      %v1202 = vsel %vm1125, %v1087, 0
      %1204 = vmatpush.msra.mxu0 0.0
      %1205 = vmatpush.msra.mxu0 0.0
      %1206 = vmatpush.msra.mxu0 0.0
      %1207 = vmatpush.msra.mxu0 0.0
      %1208 = vmatpush.msra.mxu0 0.0
      %1209 = vmatpush.msra.mxu0 0.0
      %1210 = vmatpush.msra.mxu0 0.0
      %1211 = vmatpush.msra.mxu0 0.0
      %1212 = vmatpush.msra.mxu0 0.0
      %1213 = vmatpush.msra.mxu0 0.0
      %1214 = vmatpush.msra.mxu0 0.0
      %1215 = vmatpush.msra.mxu0 0.0
      %1216 = vmatpush.msra.mxu0 0.0
      %1217 = vmatpush.msra.mxu0 0.0
      %1218 = vmatpush.msra.mxu0 0.0
      %1219 = vmatpush.msra.mxu0 %v1199
      %1220 = vmatmul.f32.gmra.mxu0 %v1190
      %v1221 = vpop.f32.mrf.mxu0
      %v1222 = vadd.f32 %v1150, %v1221
      %1223 = vmatmul.f32.gmra.mxu0 %v1192
      %v1224 = vpop.f32.mrf.mxu0
      %v1225 = vadd.f32 %v1153, %v1224
      %1226 = vmatmul.f32.gmra.mxu0 %v1194
      %v1227 = vpop.f32.mrf.mxu0
      %v1228 = vadd.f32 %v1156, %v1227
      %1229 = vmatmul.f32.gmra.mxu0 %v1196
      %v1230 = vpop.f32.mrf.mxu0
      %v1231 = vadd.f32 %v1159, %v1230
      %1232 = vdwg.mxu0
      %1233 = vmatpush.msra.mxu0 0.0
      %1234 = vmatpush.msra.mxu0 0.0
      %1235 = vmatpush.msra.mxu0 0.0
      %1236 = vmatpush.msra.mxu0 0.0
      %1237 = vmatpush.msra.mxu0 0.0
      %1238 = vmatpush.msra.mxu0 0.0
      %1239 = vmatpush.msra.mxu0 0.0
      %1240 = vmatpush.msra.mxu0 0.0
      %1241 = vmatpush.msra.mxu0 0.0
      %1242 = vmatpush.msra.mxu0 0.0
      %1243 = vmatpush.msra.mxu0 0.0
      %1244 = vmatpush.msra.mxu0 0.0
      %1245 = vmatpush.msra.mxu0 0.0
      %1246 = vmatpush.msra.mxu0 0.0
      %1247 = vmatpush.msra.mxu0 0.0
      %1248 = vmatpush.msra.mxu0 %v1202
      %1249 = vmatmul.f32.gmra.mxu0 %v1190
      %v1250 = vpop.f32.mrf.mxu0
      %v1251 = vadd.f32 %v1179, %v1250
      %1252 = vmatmul.f32.gmra.mxu0 %v1192
      %v1253 = vpop.f32.mrf.mxu0
      %v1254 = vadd.f32 %v1182, %v1253
      %1255 = vmatmul.f32.gmra.mxu0 %v1194
      %v1256 = vpop.f32.mrf.mxu0
      %v1257 = vadd.f32 %v1185, %v1256
      %1258 = vmatmul.f32.gmra.mxu0 %v1196
      %v1259 = vpop.f32.mrf.mxu0
      %v1260 = vadd.f32 %v1188, %v1259
      %1261 = vdwg.mxu0
      %1262 = vst [vmem:[#allocation1] ss:$2 sm:$0xff] %v1064
      %v1263 = vld.sshfl [vmem:[#allocation1] sm:$0xff pattern:$0x75316420]
      %v1264 = vld.sshfl [vmem:[#allocation1 + $0x8] sm:$0xff pattern:$0x75316420]
      %1267 = vrot.lane.b32.xlu0 %v1263, 15
      %v1268 = vpop.permute.xlu0 %1267
      %1269 = vrot.lane.b32.xlu0 %v1264, 15
      %v1270 = vpop.permute.xlu0 %1269
      %vm1271 = vcmp.lt.s32.totalorder %v1080, 15
      %v1272 = vsel %vm1271, %v1268, %v1270
      %v1273 = vsel %vm1271, %v1270, %v1268
      %v1274 = vperm.slane %v483, 2
      %v1275 = vperm.slane %v484, 2
      %v1276 = vmul.f32 %v1273, %v1274
      %v1277 = vmul.f32 %v1272, %v1275
      %1278 = vrot.lane.b32.xlu0 %v1065, 120
      %v1279 = vpop.permute.xlu0 %1278
      %1280 = vrot.lane.b32.xlu0 %v1066, 120
      %v1281 = vpop.permute.xlu0 %1280
      %1282 = vrot.lane.b32.xlu0 %v1067, 120
      %v1283 = vpop.permute.xlu0 %1282
      %1284 = vrot.lane.b32.xlu0 %v1068, 120
      %v1285 = vpop.permute.xlu0 %1284
      %v1286 = vsel %vm1116, %v1279, 0
      %v1288 = vsel %vm1116, %v1281, 0
      %v1290 = vsel %vm1116, %v1283, 0
      %v1292 = vsel %vm1116, %v1285, 0
      %v1295 = vsel %vm1125, %v1276, 0
      %v1298 = vsel %vm1125, %v1277, 0
      %1300 = vmatpush.msra.mxu0 0.0
      %1301 = vmatpush.msra.mxu0 0.0
      %1302 = vmatpush.msra.mxu0 0.0
      %1303 = vmatpush.msra.mxu0 0.0
      %1304 = vmatpush.msra.mxu0 0.0
      %1305 = vmatpush.msra.mxu0 0.0
      %1306 = vmatpush.msra.mxu0 0.0
      %1307 = vmatpush.msra.mxu0 0.0
      %1308 = vmatpush.msra.mxu0 0.0
      %1309 = vmatpush.msra.mxu0 0.0
      %1310 = vmatpush.msra.mxu0 0.0
      %1311 = vmatpush.msra.mxu0 0.0
      %1312 = vmatpush.msra.mxu0 0.0
      %1313 = vmatpush.msra.mxu0 0.0
      %1314 = vmatpush.msra.mxu0 0.0
      %1315 = vmatpush.msra.mxu0 %v1295
      %1316 = vmatmul.f32.gmra.mxu0 %v1286
      %v1317 = vpop.f32.mrf.mxu0
      %v1318 = vadd.f32 0.0, %v1317
      %1319 = vmatmul.f32.gmra.mxu0 %v1288
      %v1320 = vpop.f32.mrf.mxu0
      %v1321 = vadd.f32 0.0, %v1320
      %1322 = vmatmul.f32.gmra.mxu0 %v1290
      %v1323 = vpop.f32.mrf.mxu0
      %v1324 = vadd.f32 0.0, %v1323
      %1325 = vmatmul.f32.gmra.mxu0 %v1292
      %v1326 = vpop.f32.mrf.mxu0
      %v1327 = vadd.f32 0.0, %v1326
      %1328 = vdwg.mxu0
      %1329 = vmatpush.msra.mxu0 0.0
      %1330 = vmatpush.msra.mxu0 0.0
      %1331 = vmatpush.msra.mxu0 0.0
      %1332 = vmatpush.msra.mxu0 0.0
      %1333 = vmatpush.msra.mxu0 0.0
      %1334 = vmatpush.msra.mxu0 0.0
      %1335 = vmatpush.msra.mxu0 0.0
      %1336 = vmatpush.msra.mxu0 0.0
      %1337 = vmatpush.msra.mxu0 0.0
      %1338 = vmatpush.msra.mxu0 0.0
      %1339 = vmatpush.msra.mxu0 0.0
      %1340 = vmatpush.msra.mxu0 0.0
      %1341 = vmatpush.msra.mxu0 0.0
      %1342 = vmatpush.msra.mxu0 0.0
      %1343 = vmatpush.msra.mxu0 0.0
      %1344 = vmatpush.msra.mxu0 %v1298
      %1345 = vmatmul.f32.gmra.mxu0 %v1286
      %v1346 = vpop.f32.mrf.mxu0
      %v1347 = vadd.f32 0.0, %v1346
      %1348 = vmatmul.f32.gmra.mxu0 %v1288
      %v1349 = vpop.f32.mrf.mxu0
      %v1350 = vadd.f32 0.0, %v1349
      %1351 = vmatmul.f32.gmra.mxu0 %v1290
      %v1352 = vpop.f32.mrf.mxu0
      %v1353 = vadd.f32 0.0, %v1352
      %1354 = vmatmul.f32.gmra.mxu0 %v1292
      %v1355 = vpop.f32.mrf.mxu0
      %v1356 = vadd.f32 0.0, %v1355
      %1357 = vdwg.mxu0
      %v1358 = vadd.f32 %v1222, %v1318
      %v1359 = vadd.f32 %v1251, %v1347
      %v1360 = vadd.f32 %v1225, %v1321
      %v1361 = vadd.f32 %v1254, %v1350
      %v1362 = vadd.f32 %v1228, %v1324
      %v1363 = vadd.f32 %v1257, %v1353
      %v1364 = vadd.f32 %v1231, %v1327
      %v1365 = vadd.f32 %v1260, %v1356
      %1366 = vst [vmem:[#allocation1] ss:$2 sm:$0xff] %v1064
      %v1367 = vld.sshfl [vmem:[#allocation1] sm:$0xff pattern:$0x75316420]
      %v1368 = vld.sshfl [vmem:[#allocation1 + $0x8] sm:$0xff pattern:$0x75316420]
      %1371 = vrot.lane.b32.xlu0 %v1367, 1
      %v1372 = vpop.permute.xlu0 %1371
      %1373 = vrot.lane.b32.xlu0 %v1368, 1
      %v1374 = vpop.permute.xlu0 %1373
      %vm1375 = vcmp.lt.s32.totalorder %v1080, 1
      %v1376 = vsel %vm1375, %v1372, %v1374
      %v1377 = vsel %vm1375, %v1374, %v1372
      %v1378 = vperm.slane %v483, 3
      %v1379 = vperm.slane %v484, 3
      %v1380 = vmul.f32 %v1377, %v1378
      %v1381 = vmul.f32 %v1376, %v1379
      %1382 = vrot.lane.b32.xlu0 %v1065, 116
      %v1383 = vpop.permute.xlu0 %1382
      %1384 = vrot.lane.b32.xlu0 %v1066, 116
      %v1385 = vpop.permute.xlu0 %1384
      %1386 = vrot.lane.b32.xlu0 %v1067, 116
      %v1387 = vpop.permute.xlu0 %1386
      %1388 = vrot.lane.b32.xlu0 %v1068, 116
      %v1389 = vpop.permute.xlu0 %1388
      %v1390 = vsel %vm1116, %v1383, 0
      %v1392 = vsel %vm1116, %v1385, 0
      %v1394 = vsel %vm1116, %v1387, 0
      %v1396 = vsel %vm1116, %v1389, 0
      %v1399 = vsel %vm1125, %v1380, 0
      %v1402 = vsel %vm1125, %v1381, 0
      %1404 = vmatpush.msra.mxu0 0.0
      %1405 = vmatpush.msra.mxu0 0.0
      %1406 = vmatpush.msra.mxu0 0.0
      %1407 = vmatpush.msra.mxu0 0.0
      %1408 = vmatpush.msra.mxu0 0.0
      %1409 = vmatpush.msra.mxu0 0.0
      %1410 = vmatpush.msra.mxu0 0.0
      %1411 = vmatpush.msra.mxu0 0.0
      %1412 = vmatpush.msra.mxu0 0.0
      %1413 = vmatpush.msra.mxu0 0.0
      %1414 = vmatpush.msra.mxu0 0.0
      %1415 = vmatpush.msra.mxu0 0.0
      %1416 = vmatpush.msra.mxu0 0.0
      %1417 = vmatpush.msra.mxu0 0.0
      %1418 = vmatpush.msra.mxu0 0.0
      %1419 = vmatpush.msra.mxu0 %v1399
      %1420 = vmatmul.f32.gmra.mxu0 %v1390
      %v1421 = vpop.f32.mrf.mxu0
      %v1422 = vadd.f32 0.0, %v1421
      %1423 = vmatmul.f32.gmra.mxu0 %v1392
      %v1424 = vpop.f32.mrf.mxu0
      %v1425 = vadd.f32 0.0, %v1424
      %1426 = vmatmul.f32.gmra.mxu0 %v1394
      %v1427 = vpop.f32.mrf.mxu0
      %v1428 = vadd.f32 0.0, %v1427
      %1429 = vmatmul.f32.gmra.mxu0 %v1396
      %v1430 = vpop.f32.mrf.mxu0
      %v1431 = vadd.f32 0.0, %v1430
      %1432 = vdwg.mxu0
      %1433 = vmatpush.msra.mxu0 0.0
      %1434 = vmatpush.msra.mxu0 0.0
      %1435 = vmatpush.msra.mxu0 0.0
      %1436 = vmatpush.msra.mxu0 0.0
      %1437 = vmatpush.msra.mxu0 0.0
      %1438 = vmatpush.msra.mxu0 0.0
      %1439 = vmatpush.msra.mxu0 0.0
      %1440 = vmatpush.msra.mxu0 0.0
      %1441 = vmatpush.msra.mxu0 0.0
      %1442 = vmatpush.msra.mxu0 0.0
      %1443 = vmatpush.msra.mxu0 0.0
      %1444 = vmatpush.msra.mxu0 0.0
      %1445 = vmatpush.msra.mxu0 0.0
      %1446 = vmatpush.msra.mxu0 0.0
      %1447 = vmatpush.msra.mxu0 0.0
      %1448 = vmatpush.msra.mxu0 %v1402
      %1449 = vmatmul.f32.gmra.mxu0 %v1390
      %v1450 = vpop.f32.mrf.mxu0
      %v1451 = vadd.f32 0.0, %v1450
      %1452 = vmatmul.f32.gmra.mxu0 %v1392
      %v1453 = vpop.f32.mrf.mxu0
      %v1454 = vadd.f32 0.0, %v1453
      %1455 = vmatmul.f32.gmra.mxu0 %v1394
      %v1456 = vpop.f32.mrf.mxu0
      %v1457 = vadd.f32 0.0, %v1456
      %1458 = vmatmul.f32.gmra.mxu0 %v1396
      %v1459 = vpop.f32.mrf.mxu0
      %v1460 = vadd.f32 0.0, %v1459
      %1461 = vdwg.mxu0
      %v1462 = vadd.f32 %v1358, %v1422
      %v1463 = vadd.f32 %v1359, %v1451
      %v1464 = vadd.f32 %v1360, %v1425
      %v1465 = vadd.f32 %v1361, %v1454
      %v1466 = vadd.f32 %v1362, %v1428
      %v1467 = vadd.f32 %v1363, %v1457
      %v1468 = vadd.f32 %v1364, %v1431
      %v1469 = vadd.f32 %v1365, %v1460
      %1470 = vrot.lane.b32.xlu0 %v1065, 112
      %v1471 = vpop.permute.xlu0 %1470
      %1472 = vrot.lane.b32.xlu0 %v1066, 112
      %v1473 = vpop.permute.xlu0 %1472
      %1474 = vrot.lane.b32.xlu0 %v1067, 112
      %v1475 = vpop.permute.xlu0 %1474
      %1476 = vrot.lane.b32.xlu0 %v1068, 112
      %v1477 = vpop.permute.xlu0 %1476
      %1478 = vst [vmem:[#allocation1] ss:$2 sm:$0xff] %v1064
      %v1479 = vld.sshfl [vmem:[#allocation1] sm:$0xff pattern:$0x75316420]
      %v1480 = vld.sshfl [vmem:[#allocation1 + $0x8] sm:$0xff pattern:$0x75316420]
      %v1481 = vsel %vm1116, %v1471, 0
      %v1483 = vsel %vm1116, %v1473, 0
      %v1485 = vsel %vm1116, %v1475, 0
      %v1487 = vsel %vm1116, %v1477, 0
      %v1489 = vsel %vm1125, %v1479, 0
      %v1491 = vsel %vm1125, %v1480, 0
      %1493 = vmatpush.msra.mxu0 0.0
      %1494 = vmatpush.msra.mxu0 0.0
      %1495 = vmatpush.msra.mxu0 0.0
      %1496 = vmatpush.msra.mxu0 0.0
      %1497 = vmatpush.msra.mxu0 0.0
      %1498 = vmatpush.msra.mxu0 0.0
      %1499 = vmatpush.msra.mxu0 0.0
      %1500 = vmatpush.msra.mxu0 0.0
      %1501 = vmatpush.msra.mxu0 0.0
      %1502 = vmatpush.msra.mxu0 0.0
      %1503 = vmatpush.msra.mxu0 0.0
      %1504 = vmatpush.msra.mxu0 0.0
      %1505 = vmatpush.msra.mxu0 0.0
      %1506 = vmatpush.msra.mxu0 0.0
      %1507 = vmatpush.msra.mxu0 0.0
      %1508 = vmatpush.msra.mxu0 %v1489
      %1509 = vmatmul.f32.gmra.mxu0 %v1481
      %v1510 = vpop.f32.mrf.mxu0
      %v1511 = vadd.f32 0.0, %v1510
      %1512 = vmatmul.f32.gmra.mxu0 %v1483
      %v1513 = vpop.f32.mrf.mxu0
      %v1514 = vadd.f32 0.0, %v1513
      %1515 = vmatmul.f32.gmra.mxu0 %v1485
      %v1516 = vpop.f32.mrf.mxu0
      %v1517 = vadd.f32 0.0, %v1516
      %1518 = vmatmul.f32.gmra.mxu0 %v1487
      %v1519 = vpop.f32.mrf.mxu0
      %v1520 = vadd.f32 0.0, %v1519
      %1521 = vdwg.mxu0
      %1522 = vmatpush.msra.mxu0 0.0
      %1523 = vmatpush.msra.mxu0 0.0
      %1524 = vmatpush.msra.mxu0 0.0
      %1525 = vmatpush.msra.mxu0 0.0
      %1526 = vmatpush.msra.mxu0 0.0
      %1527 = vmatpush.msra.mxu0 0.0
      %1528 = vmatpush.msra.mxu0 0.0
      %1529 = vmatpush.msra.mxu0 0.0
      %1530 = vmatpush.msra.mxu0 0.0
      %1531 = vmatpush.msra.mxu0 0.0
      %1532 = vmatpush.msra.mxu0 0.0
      %1533 = vmatpush.msra.mxu0 0.0
      %1534 = vmatpush.msra.mxu0 0.0
      %1535 = vmatpush.msra.mxu0 0.0
      %1536 = vmatpush.msra.mxu0 0.0
      %1537 = vmatpush.msra.mxu0 %v1491
      %1538 = vmatmul.f32.gmra.mxu0 %v1481
      %v1539 = vpop.f32.mrf.mxu0
      %v1540 = vadd.f32 0.0, %v1539
      %1541 = vmatmul.f32.gmra.mxu0 %v1483
      %v1542 = vpop.f32.mrf.mxu0
      %v1543 = vadd.f32 0.0, %v1542
      %1544 = vmatmul.f32.gmra.mxu0 %v1485
      %v1545 = vpop.f32.mrf.mxu0
      %v1546 = vadd.f32 0.0, %v1545
      %1547 = vmatmul.f32.gmra.mxu0 %v1487
      %v1548 = vpop.f32.mrf.mxu0
      %v1549 = vadd.f32 0.0, %v1548
      %1550 = vdwg.mxu0
      %v1551 = vadd.f32 %v1462, %v1511
      %v1552 = vadd.f32 %v1463, %v1540
      %v1553 = vadd.f32 %v1464, %v1514
      %v1554 = vadd.f32 %v1465, %v1543
      %v1555 = vadd.f32 %v1466, %v1517
      %v1556 = vadd.f32 %v1467, %v1546
      %v1557 = vadd.f32 %v1468, %v1520
      %v1558 = vadd.f32 %v1469, %v1549
      %1559 = vst [vmem:[#allocation1] ss:$2 sm:$0xff] %v1064
      %v1560 = vld.sshfl [vmem:[#allocation1] sm:$0xff pattern:$0x75316420]
      %v1561 = vld.sshfl [vmem:[#allocation1 + $0x8] sm:$0xff pattern:$0x75316420]
      %1564 = vrot.lane.b32.xlu0 %v1560, 127
      %v1565 = vpop.permute.xlu0 %1564
      %1566 = vrot.lane.b32.xlu0 %v1561, 127
      %v1567 = vpop.permute.xlu0 %1566
      %vm1568 = vcmp.lt.s32.totalorder %v1080, 127
      %v1569 = vsel %vm1568, %v1565, %v1567
      %v1570 = vsel %vm1568, %v1567, %v1565
      %v1571 = vperm.slane %v483, 5
      %v1572 = vperm.slane %v484, 5
      %v1573 = vmul.f32 %v1569, %v1571
      %v1574 = vmul.f32 %v1570, %v1572
      %1575 = vrot.lane.b32.xlu0 %v1065, 108
      %v1576 = vpop.permute.xlu0 %1575
      %1577 = vrot.lane.b32.xlu0 %v1066, 108
      %v1578 = vpop.permute.xlu0 %1577
      %1579 = vrot.lane.b32.xlu0 %v1067, 108
      %v1580 = vpop.permute.xlu0 %1579
      %1581 = vrot.lane.b32.xlu0 %v1068, 108
      %v1582 = vpop.permute.xlu0 %1581
      %v1583 = vsel %vm1116, %v1576, 0
      %v1585 = vsel %vm1116, %v1578, 0
      %v1587 = vsel %vm1116, %v1580, 0
      %v1589 = vsel %vm1116, %v1582, 0
      %v1592 = vsel %vm1125, %v1573, 0
      %v1595 = vsel %vm1125, %v1574, 0
      %1597 = vmatpush.msra.mxu0 0.0
      %1598 = vmatpush.msra.mxu0 0.0
      %1599 = vmatpush.msra.mxu0 0.0
      %1600 = vmatpush.msra.mxu0 0.0
      %1601 = vmatpush.msra.mxu0 0.0
      %1602 = vmatpush.msra.mxu0 0.0
      %1603 = vmatpush.msra.mxu0 0.0
      %1604 = vmatpush.msra.mxu0 0.0
      %1605 = vmatpush.msra.mxu0 0.0
      %1606 = vmatpush.msra.mxu0 0.0
      %1607 = vmatpush.msra.mxu0 0.0
      %1608 = vmatpush.msra.mxu0 0.0
      %1609 = vmatpush.msra.mxu0 0.0
      %1610 = vmatpush.msra.mxu0 0.0
      %1611 = vmatpush.msra.mxu0 0.0
      %1612 = vmatpush.msra.mxu0 %v1592
      %1613 = vmatmul.f32.gmra.mxu0 %v1583
      %v1614 = vpop.f32.mrf.mxu0
      %v1615 = vadd.f32 0.0, %v1614
      %1616 = vmatmul.f32.gmra.mxu0 %v1585
      %v1617 = vpop.f32.mrf.mxu0
      %v1618 = vadd.f32 0.0, %v1617
      %1619 = vmatmul.f32.gmra.mxu0 %v1587
      %v1620 = vpop.f32.mrf.mxu0
      %v1621 = vadd.f32 0.0, %v1620
      %1622 = vmatmul.f32.gmra.mxu0 %v1589
      %v1623 = vpop.f32.mrf.mxu0
      %v1624 = vadd.f32 0.0, %v1623
      %1625 = vdwg.mxu0
      %1626 = vmatpush.msra.mxu0 0.0
      %1627 = vmatpush.msra.mxu0 0.0
      %1628 = vmatpush.msra.mxu0 0.0
      %1629 = vmatpush.msra.mxu0 0.0
      %1630 = vmatpush.msra.mxu0 0.0
      %1631 = vmatpush.msra.mxu0 0.0
      %1632 = vmatpush.msra.mxu0 0.0
      %1633 = vmatpush.msra.mxu0 0.0
      %1634 = vmatpush.msra.mxu0 0.0
      %1635 = vmatpush.msra.mxu0 0.0
      %1636 = vmatpush.msra.mxu0 0.0
      %1637 = vmatpush.msra.mxu0 0.0
      %1638 = vmatpush.msra.mxu0 0.0
      %1639 = vmatpush.msra.mxu0 0.0
      %1640 = vmatpush.msra.mxu0 0.0
      %1641 = vmatpush.msra.mxu0 %v1595
      %1642 = vmatmul.f32.gmra.mxu0 %v1583
      %v1643 = vpop.f32.mrf.mxu0
      %v1644 = vadd.f32 0.0, %v1643
      %1645 = vmatmul.f32.gmra.mxu0 %v1585
      %v1646 = vpop.f32.mrf.mxu0
      %v1647 = vadd.f32 0.0, %v1646
      %1648 = vmatmul.f32.gmra.mxu0 %v1587
      %v1649 = vpop.f32.mrf.mxu0
      %v1650 = vadd.f32 0.0, %v1649
      %1651 = vmatmul.f32.gmra.mxu0 %v1589
      %v1652 = vpop.f32.mrf.mxu0
      %v1653 = vadd.f32 0.0, %v1652
      %1654 = vdwg.mxu0
      %v1655 = vadd.f32 %v1551, %v1615
      %v1656 = vadd.f32 %v1552, %v1644
      %v1657 = vadd.f32 %v1553, %v1618
      %v1658 = vadd.f32 %v1554, %v1647
      %v1659 = vadd.f32 %v1555, %v1621
      %v1660 = vadd.f32 %v1556, %v1650
      %v1661 = vadd.f32 %v1557, %v1624
      %v1662 = vadd.f32 %v1558, %v1653
      %1663 = vst [vmem:[#allocation1] ss:$2 sm:$0xff] %v1064
      %v1664 = vld.sshfl [vmem:[#allocation1] sm:$0xff pattern:$0x75316420]
      %v1665 = vld.sshfl [vmem:[#allocation1 + $0x8] sm:$0xff pattern:$0x75316420]
      %1668 = vrot.lane.b32.xlu0 %v1664, 113
      %v1669 = vpop.permute.xlu0 %1668
      %1670 = vrot.lane.b32.xlu0 %v1665, 113
      %v1671 = vpop.permute.xlu0 %1670
      %vm1672 = vcmp.lt.s32.totalorder %v1080, 113
      %v1673 = vsel %vm1672, %v1669, %v1671
      %v1674 = vsel %vm1672, %v1671, %v1669
      %v1675 = vperm.slane %v483, 6
      %v1676 = vperm.slane %v484, 6
      %v1677 = vmul.f32 %v1673, %v1675
      %v1678 = vmul.f32 %v1674, %v1676
      %1679 = vrot.lane.b32.xlu0 %v1065, 104
      %v1680 = vpop.permute.xlu0 %1679
      %1681 = vrot.lane.b32.xlu0 %v1066, 104
      %v1682 = vpop.permute.xlu0 %1681
      %1683 = vrot.lane.b32.xlu0 %v1067, 104
      %v1684 = vpop.permute.xlu0 %1683
      %1685 = vrot.lane.b32.xlu0 %v1068, 104
      %v1686 = vpop.permute.xlu0 %1685
      %v1687 = vsel %vm1116, %v1680, 0
      %v1689 = vsel %vm1116, %v1682, 0
      %v1691 = vsel %vm1116, %v1684, 0
      %v1693 = vsel %vm1116, %v1686, 0
      %v1696 = vsel %vm1125, %v1677, 0
      %v1699 = vsel %vm1125, %v1678, 0
      %1701 = vmatpush.msra.mxu0 0.0
      %1702 = vmatpush.msra.mxu0 0.0
      %1703 = vmatpush.msra.mxu0 0.0
      %1704 = vmatpush.msra.mxu0 0.0
      %1705 = vmatpush.msra.mxu0 0.0
      %1706 = vmatpush.msra.mxu0 0.0
      %1707 = vmatpush.msra.mxu0 0.0
      %1708 = vmatpush.msra.mxu0 0.0
      %1709 = vmatpush.msra.mxu0 0.0
      %1710 = vmatpush.msra.mxu0 0.0
      %1711 = vmatpush.msra.mxu0 0.0
      %1712 = vmatpush.msra.mxu0 0.0
      %1713 = vmatpush.msra.mxu0 0.0
      %1714 = vmatpush.msra.mxu0 0.0
      %1715 = vmatpush.msra.mxu0 0.0
      %1716 = vmatpush.msra.mxu0 %v1696
      %1717 = vmatmul.f32.gmra.mxu0 %v1687
      %v1718 = vpop.f32.mrf.mxu0
      %v1719 = vadd.f32 0.0, %v1718
      %1720 = vmatmul.f32.gmra.mxu0 %v1689
      %v1721 = vpop.f32.mrf.mxu0
      %v1722 = vadd.f32 0.0, %v1721
      %1723 = vmatmul.f32.gmra.mxu0 %v1691
      %v1724 = vpop.f32.mrf.mxu0
      %v1725 = vadd.f32 0.0, %v1724
      %1726 = vmatmul.f32.gmra.mxu0 %v1693
      %v1727 = vpop.f32.mrf.mxu0
      %v1728 = vadd.f32 0.0, %v1727
      %1729 = vdwg.mxu0
      %1730 = vmatpush.msra.mxu0 0.0
      %1731 = vmatpush.msra.mxu0 0.0
      %1732 = vmatpush.msra.mxu0 0.0
      %1733 = vmatpush.msra.mxu0 0.0
      %1734 = vmatpush.msra.mxu0 0.0
      %1735 = vmatpush.msra.mxu0 0.0
      %1736 = vmatpush.msra.mxu0 0.0
      %1737 = vmatpush.msra.mxu0 0.0
      %1738 = vmatpush.msra.mxu0 0.0
      %1739 = vmatpush.msra.mxu0 0.0
      %1740 = vmatpush.msra.mxu0 0.0
      %1741 = vmatpush.msra.mxu0 0.0
      %1742 = vmatpush.msra.mxu0 0.0
      %1743 = vmatpush.msra.mxu0 0.0
      %1744 = vmatpush.msra.mxu0 0.0
      %1745 = vmatpush.msra.mxu0 %v1699
      %1746 = vmatmul.f32.gmra.mxu0 %v1687
      %v1747 = vpop.f32.mrf.mxu0
      %v1748 = vadd.f32 0.0, %v1747
      %1749 = vmatmul.f32.gmra.mxu0 %v1689
      %v1750 = vpop.f32.mrf.mxu0
      %v1751 = vadd.f32 0.0, %v1750
      %1752 = vmatmul.f32.gmra.mxu0 %v1691
      %v1753 = vpop.f32.mrf.mxu0
      %v1754 = vadd.f32 0.0, %v1753
      %1755 = vmatmul.f32.gmra.mxu0 %v1693
      %v1756 = vpop.f32.mrf.mxu0
      %v1757 = vadd.f32 0.0, %v1756
      %1758 = vdwg.mxu0
      %v1759 = vadd.f32 %v1655, %v1719
      %v1760 = vadd.f32 %v1656, %v1748
      %v1761 = vadd.f32 %v1657, %v1722
      %v1762 = vadd.f32 %v1658, %v1751
      %v1763 = vadd.f32 %v1659, %v1725
      %v1764 = vadd.f32 %v1660, %v1754
      %v1765 = vadd.f32 %v1661, %v1728
      %v1766 = vadd.f32 %v1662, %v1757
      %1767 = vst [vmem:[#allocation1] ss:$2 sm:$0xff] %v1064
      %v1768 = vld.sshfl [vmem:[#allocation1] sm:$0xff pattern:$0x75316420]
      %v1769 = vld.sshfl [vmem:[#allocation1 + $0x8] sm:$0xff pattern:$0x75316420]
      %1772 = vrot.lane.b32.xlu0 %v1768, 112
      %v1773 = vpop.permute.xlu0 %1772
      %1774 = vrot.lane.b32.xlu0 %v1769, 112
      %v1775 = vpop.permute.xlu0 %1774
      %vm1776 = vcmp.lt.s32.totalorder %v1080, 112
      %v1777 = vsel %vm1776, %v1773, %v1775
      %v1778 = vsel %vm1776, %v1775, %v1773
      %v1779 = vperm.slane %v483, 7
      %v1780 = vperm.slane %v484, 7
      %v1781 = vmul.f32 %v1777, %v1779
      %v1782 = vmul.f32 %v1778, %v1780
      %1783 = vrot.lane.b32.xlu0 %v1065, 100
      %v1784 = vpop.permute.xlu0 %1783
      %1785 = vrot.lane.b32.xlu0 %v1066, 100
      %v1786 = vpop.permute.xlu0 %1785
      %1787 = vrot.lane.b32.xlu0 %v1067, 100
      %v1788 = vpop.permute.xlu0 %1787
      %1789 = vrot.lane.b32.xlu0 %v1068, 100
      %v1790 = vpop.permute.xlu0 %1789
      %v1791 = vsel %vm1116, %v1784, 0
      %v1793 = vsel %vm1116, %v1786, 0
      %v1795 = vsel %vm1116, %v1788, 0
      %v1797 = vsel %vm1116, %v1790, 0
      %v1800 = vsel %vm1125, %v1781, 0
      %v1803 = vsel %vm1125, %v1782, 0
      %1805 = vmatpush.msra.mxu0 0.0
      %1806 = vmatpush.msra.mxu0 0.0
      %1807 = vmatpush.msra.mxu0 0.0
      %1808 = vmatpush.msra.mxu0 0.0
      %1809 = vmatpush.msra.mxu0 0.0
      %1810 = vmatpush.msra.mxu0 0.0
      %1811 = vmatpush.msra.mxu0 0.0
      %1812 = vmatpush.msra.mxu0 0.0
      %1813 = vmatpush.msra.mxu0 0.0
      %1814 = vmatpush.msra.mxu0 0.0
      %1815 = vmatpush.msra.mxu0 0.0
      %1816 = vmatpush.msra.mxu0 0.0
      %1817 = vmatpush.msra.mxu0 0.0
      %1818 = vmatpush.msra.mxu0 0.0
      %1819 = vmatpush.msra.mxu0 0.0
      %1820 = vmatpush.msra.mxu0 %v1800
      %1821 = vmatmul.f32.gmra.mxu0 %v1791
      %v1822 = vpop.f32.mrf.mxu0
      %v1823 = vadd.f32 0.0, %v1822
      %1824 = vmatmul.f32.gmra.mxu0 %v1793
      %v1825 = vpop.f32.mrf.mxu0
      %v1826 = vadd.f32 0.0, %v1825
      %1827 = vmatmul.f32.gmra.mxu0 %v1795
      %v1828 = vpop.f32.mrf.mxu0
      %v1829 = vadd.f32 0.0, %v1828
      %1830 = vmatmul.f32.gmra.mxu0 %v1797
      %v1831 = vpop.f32.mrf.mxu0
      %v1832 = vadd.f32 0.0, %v1831
      %1833 = vdwg.mxu0
      %1834 = vmatpush.msra.mxu0 0.0
      %1835 = vmatpush.msra.mxu0 0.0
      %1836 = vmatpush.msra.mxu0 0.0
      %1837 = vmatpush.msra.mxu0 0.0
      %1838 = vmatpush.msra.mxu0 0.0
      %1839 = vmatpush.msra.mxu0 0.0
      %1840 = vmatpush.msra.mxu0 0.0
      %1841 = vmatpush.msra.mxu0 0.0
      %1842 = vmatpush.msra.mxu0 0.0
      %1843 = vmatpush.msra.mxu0 0.0
      %1844 = vmatpush.msra.mxu0 0.0
      %1845 = vmatpush.msra.mxu0 0.0
      %1846 = vmatpush.msra.mxu0 0.0
      %1847 = vmatpush.msra.mxu0 0.0
      %1848 = vmatpush.msra.mxu0 0.0
      %1849 = vmatpush.msra.mxu0 %v1803
      %1850 = vmatmul.f32.gmra.mxu0 %v1791
      %v1851 = vpop.f32.mrf.mxu0
      %v1852 = vadd.f32 0.0, %v1851
      %1853 = vmatmul.f32.gmra.mxu0 %v1793
      %v1854 = vpop.f32.mrf.mxu0
      %v1855 = vadd.f32 0.0, %v1854
      %1856 = vmatmul.f32.gmra.mxu0 %v1795
      %v1857 = vpop.f32.mrf.mxu0
      %v1858 = vadd.f32 0.0, %v1857
      %1859 = vmatmul.f32.gmra.mxu0 %v1797
      %v1860 = vpop.f32.mrf.mxu0
      %v1861 = vadd.f32 0.0, %v1860
      %1862 = vdwg.mxu0
      %v1863 = vadd.f32 %v1759, %v1823
      %v1864 = vadd.f32 %v1760, %v1852
      %v1865 = vadd.f32 %v1761, %v1826
      %v1866 = vadd.f32 %v1762, %v1855
      %v1867 = vadd.f32 %v1763, %v1829
      %v1868 = vadd.f32 %v1764, %v1858
      %v1869 = vadd.f32 %v1765, %v1832
      %v1870 = vadd.f32 %v1766, %v1861
      %1871 = vst [vmem:[#allocation1] ss:$2 sm:$0xff] %v1064
      %v1872 = vld.sshfl [vmem:[#allocation1] sm:$0xff pattern:$0x75316420]
      %v1873 = vld.sshfl [vmem:[#allocation1 + $0x8] sm:$0xff pattern:$0x75316420]
      %1876 = vrot.lane.b32.xlu0 %v1872, 111
      %v1877 = vpop.permute.xlu0 %1876
      %1878 = vrot.lane.b32.xlu0 %v1873, 111
      %v1879 = vpop.permute.xlu0 %1878
      %vm1880 = vcmp.lt.s32.totalorder %v1080, 111
      %v1881 = vsel %vm1880, %v1877, %v1879
      %v1882 = vsel %vm1880, %v1879, %v1877
      %v1883 = vperm.slane %v485, 0
      %v1884 = vperm.slane %v486, 0
      %v1885 = vmul.f32 %v1881, %v1883
      %v1886 = vmul.f32 %v1882, %v1884
      %1887 = vrot.lane.b32.xlu0 %v1065, 96
      %v1888 = vpop.permute.xlu0 %1887
      %1889 = vrot.lane.b32.xlu0 %v1066, 96
      %v1890 = vpop.permute.xlu0 %1889
      %1891 = vrot.lane.b32.xlu0 %v1067, 96
      %v1892 = vpop.permute.xlu0 %1891
      %1893 = vrot.lane.b32.xlu0 %v1068, 96
      %v1894 = vpop.permute.xlu0 %1893
      %v1895 = vsel %vm1116, %v1888, 0
      %v1897 = vsel %vm1116, %v1890, 0
      %v1899 = vsel %vm1116, %v1892, 0
      %v1901 = vsel %vm1116, %v1894, 0
      %v1904 = vsel %vm1125, %v1885, 0
      %v1907 = vsel %vm1125, %v1886, 0
      %1909 = vmatpush.msra.mxu0 0.0
      %1910 = vmatpush.msra.mxu0 0.0
      %1911 = vmatpush.msra.mxu0 0.0
      %1912 = vmatpush.msra.mxu0 0.0
      %1913 = vmatpush.msra.mxu0 0.0
      %1914 = vmatpush.msra.mxu0 0.0
      %1915 = vmatpush.msra.mxu0 0.0
      %1916 = vmatpush.msra.mxu0 0.0
      %1917 = vmatpush.msra.mxu0 0.0
      %1918 = vmatpush.msra.mxu0 0.0
      %1919 = vmatpush.msra.mxu0 0.0
      %1920 = vmatpush.msra.mxu0 0.0
      %1921 = vmatpush.msra.mxu0 0.0
      %1922 = vmatpush.msra.mxu0 0.0
      %1923 = vmatpush.msra.mxu0 0.0
      %1924 = vmatpush.msra.mxu0 %v1904
      %1925 = vmatmul.f32.gmra.mxu0 %v1895
      %v1926 = vpop.f32.mrf.mxu0
      %v1927 = vadd.f32 0.0, %v1926
      %1928 = vmatmul.f32.gmra.mxu0 %v1897
      %v1929 = vpop.f32.mrf.mxu0
      %v1930 = vadd.f32 0.0, %v1929
      %1931 = vmatmul.f32.gmra.mxu0 %v1899
      %v1932 = vpop.f32.mrf.mxu0
      %v1933 = vadd.f32 0.0, %v1932
      %1934 = vmatmul.f32.gmra.mxu0 %v1901
      %v1935 = vpop.f32.mrf.mxu0
      %v1936 = vadd.f32 0.0, %v1935
      %1937 = vdwg.mxu0
      %1938 = vmatpush.msra.mxu0 0.0
      %1939 = vmatpush.msra.mxu0 0.0
      %1940 = vmatpush.msra.mxu0 0.0
      %1941 = vmatpush.msra.mxu0 0.0
      %1942 = vmatpush.msra.mxu0 0.0
      %1943 = vmatpush.msra.mxu0 0.0
      %1944 = vmatpush.msra.mxu0 0.0
      %1945 = vmatpush.msra.mxu0 0.0
      %1946 = vmatpush.msra.mxu0 0.0
      %1947 = vmatpush.msra.mxu0 0.0
      %1948 = vmatpush.msra.mxu0 0.0
      %1949 = vmatpush.msra.mxu0 0.0
      %1950 = vmatpush.msra.mxu0 0.0
      %1951 = vmatpush.msra.mxu0 0.0
      %1952 = vmatpush.msra.mxu0 0.0
      %1953 = vmatpush.msra.mxu0 %v1907
      %1954 = vmatmul.f32.gmra.mxu0 %v1895
      %v1955 = vpop.f32.mrf.mxu0
      %v1956 = vadd.f32 0.0, %v1955
      %1957 = vmatmul.f32.gmra.mxu0 %v1897
      %v1958 = vpop.f32.mrf.mxu0
      %v1959 = vadd.f32 0.0, %v1958
      %1960 = vmatmul.f32.gmra.mxu0 %v1899
      %v1961 = vpop.f32.mrf.mxu0
      %v1962 = vadd.f32 0.0, %v1961
      %1963 = vmatmul.f32.gmra.mxu0 %v1901
      %v1964 = vpop.f32.mrf.mxu0
      %v1965 = vadd.f32 0.0, %v1964
      %1966 = vdwg.mxu0
      %v1967 = vadd.f32 %v1863, %v1927
      %v1968 = vadd.f32 %v1864, %v1956
      %v1969 = vadd.f32 %v1865, %v1930
      %v1970 = vadd.f32 %v1866, %v1959
      %v1971 = vadd.f32 %v1867, %v1933
      %v1972 = vadd.f32 %v1868, %v1962
      %v1973 = vadd.f32 %v1869, %v1936
      %v1974 = vadd.f32 %v1870, %v1965
      %v1975 = vld [vmem:[%s7] sm:$0xff]
      %v1976 = vld [vmem:[%s7 + $0x8] sm:$0xff]
      %v1977 = vld [vmem:[%s7 + $0x10] sm:$0xff]
      %v1978 = vld [vmem:[%s7 + $0x18] sm:$0xff]
      %1980 = vset.pattern.permute.xlu0 0
      %1981 = vperm.xlu0 %1980, %v1975
      %v1982 = vpop.permute.xlu0 %1981
      %1985 = vset.pattern.permute.xlu0 0
      %1986 = vperm.xlu0 %1985, %v1976
      %v1987 = vpop.permute.xlu0 %1986
      %1990 = vset.pattern.permute.xlu0 0
      %1991 = vperm.xlu0 %1990, %v1977
      %v1992 = vpop.permute.xlu0 %1991
      %1995 = vset.pattern.permute.xlu0 0
      %1996 = vperm.xlu0 %1995, %v1978
      %v1997 = vpop.permute.xlu0 %1996
      %v1999 = vadd.f32 %v1967, %v1982
      %v2000 = vadd.f32 %v1968, %v1982
      %v2001 = vadd.f32 %v1969, %v1987
      %v2002 = vadd.f32 %v1970, %v1987
      %v2003 = vadd.f32 %v1971, %v1992
      %v2004 = vadd.f32 %v1972, %v1992
      %v2005 = vadd.f32 %v1973, %v1997
      %v2006 = vadd.f32 %v1974, %v1997
      %v2007 = vadd.f32 %v1999, %v2000
      %2008 = vadd.xlane.f32.xlu0 %v2007
      %v2009 = vpop.xlane.xlu0 %2008
      %v2010 = vadd.f32 %v2001, %v2002
      %2011 = vadd.xlane.f32.xlu0 %v2010
      %v2012 = vpop.xlane.xlu0 %2011
      %v2013 = vadd.f32 %v2003, %v2004
      %2014 = vadd.xlane.f32.xlu0 %v2013
      %v2015 = vpop.xlane.xlu0 %2014
      %v2016 = vadd.f32 %v2005, %v2006
      %2017 = vadd.xlane.f32.xlu0 %v2016
      %v2018 = vpop.xlane.xlu0 %2017
      %v2020 = vsel %vm507, %v479, 0
      %v2023 = vsel %vm507, %v480, 0
      %v2026 = vsel %vm507, %v481, 0
      %v2029 = vsel %vm507, %v482, 0
      %2031 = vmatpush.msra.mxu0 0.0
      %2032 = vmatpush.msra.mxu0 0.0
      %2033 = vmatpush.msra.mxu0 0.0
      %2034 = vmatpush.msra.mxu0 0.0
      %2035 = vmatpush.msra.mxu0 0.0
      %2036 = vmatpush.msra.mxu0 0.0
      %2037 = vmatpush.msra.mxu0 0.0
      %2038 = vmatpush.msra.mxu0 0.0
      %2039 = vmatpush.msra.mxu0 0.0
      %2040 = vmatpush.msra.mxu0 0.0
      %2041 = vmatpush.msra.mxu0 0.0
      %2042 = vmatpush.msra.mxu0 0.0
      %2043 = vmatpush.msra.mxu0 %v2018
      %2044 = vmatpush.msra.mxu0 %v2015
      %2045 = vmatpush.msra.mxu0 %v2012
      %2046 = vmatpush.msra.mxu0 %v2009
      %2047 = vmatmul.f32.gmra.mxu0 %v2020
      %v2048 = vpop.f32.mrf.mxu0
      %v2049 = vadd.f32 0.0, %v2048
      %2050 = vmatmul.f32.gmra.mxu0 %v2023
      %v2051 = vpop.f32.mrf.mxu0
      %v2052 = vadd.f32 0.0, %v2051
      %2053 = vmatmul.f32.gmra.mxu0 %v2026
      %v2054 = vpop.f32.mrf.mxu0
      %v2055 = vadd.f32 0.0, %v2054
      %2056 = vmatmul.f32.gmra.mxu0 %v2029
      %v2057 = vpop.f32.mrf.mxu0
      %v2058 = vadd.f32 0.0, %v2057
      %2059 = vdwg.mxu0
      %2061 = vset.pattern.permute.xlu0 0
      %2062 = vperm.xlu0 %2061, %v2049
      %v2063 = vpop.permute.xlu0 %2062
      %2066 = vset.pattern.permute.xlu0 0
      %2067 = vperm.xlu0 %2066, %v2052
      %v2068 = vpop.permute.xlu0 %2067
      %2071 = vset.pattern.permute.xlu0 0
      %2072 = vperm.xlu0 %2071, %v2055
      %v2073 = vpop.permute.xlu0 %2072
      %2076 = vset.pattern.permute.xlu0 0
      %2077 = vperm.xlu0 %2076, %v2058
      %v2078 = vpop.permute.xlu0 %2077
      %v2080 = vsub.f32 %v1999, %v2063
      %v2081 = vsub.f32 %v2000, %v2063
      %v2082 = vsub.f32 %v2001, %v2068
      %v2083 = vsub.f32 %v2002, %v2068
      %v2084 = vsub.f32 %v2003, %v2073
      %v2085 = vsub.f32 %v2004, %v2073
      %v2086 = vsub.f32 %v2005, %v2078
      %v2087 = vsub.f32 %v2006, %v2078
      %v2088 = vmul.f32 %v2080, %v2080
      %v2089 = vmul.f32 %v2081, %v2081
      %v2090 = vmul.f32 %v2082, %v2082
      %v2091 = vmul.f32 %v2083, %v2083
      %v2092 = vmul.f32 %v2084, %v2084
      %v2093 = vmul.f32 %v2085, %v2085
      %v2094 = vmul.f32 %v2086, %v2086
      %v2095 = vmul.f32 %v2087, %v2087
      %v2096 = vadd.f32 %v2088, %v2089
      %2097 = vadd.xlane.f32.xlu0 %v2096
      %v2098 = vpop.xlane.xlu0 %2097
      %v2099 = vadd.f32 %v2090, %v2091
      %2100 = vadd.xlane.f32.xlu0 %v2099
      %v2101 = vpop.xlane.xlu0 %2100
      %v2102 = vadd.f32 %v2092, %v2093
      %2103 = vadd.xlane.f32.xlu0 %v2102
      %v2104 = vpop.xlane.xlu0 %2103
      %v2105 = vadd.f32 %v2094, %v2095
      %2106 = vadd.xlane.f32.xlu0 %v2105
      %v2107 = vpop.xlane.xlu0 %2106
      %2108 = vmatpush.msra.mxu0 0.0
      %2109 = vmatpush.msra.mxu0 0.0
      %2110 = vmatpush.msra.mxu0 0.0
      %2111 = vmatpush.msra.mxu0 0.0
      %2112 = vmatpush.msra.mxu0 0.0
      %2113 = vmatpush.msra.mxu0 0.0
      %2114 = vmatpush.msra.mxu0 0.0
      %2115 = vmatpush.msra.mxu0 0.0
      %2116 = vmatpush.msra.mxu0 0.0
      %2117 = vmatpush.msra.mxu0 0.0
      %2118 = vmatpush.msra.mxu0 0.0
      %2119 = vmatpush.msra.mxu0 0.0
      %2120 = vmatpush.msra.mxu0 %v2107
      %2121 = vmatpush.msra.mxu0 %v2104
      %2122 = vmatpush.msra.mxu0 %v2101
      %2123 = vmatpush.msra.mxu0 %v2098
      %2124 = vmatmul.f32.gmra.mxu0 %v2020
      %v2125 = vpop.f32.mrf.mxu0
      %v2126 = vadd.f32 1e-05, %v2125
      %2127 = vmatmul.f32.gmra.mxu0 %v2023
      %v2128 = vpop.f32.mrf.mxu0
      %v2129 = vadd.f32 1e-05, %v2128
      %2130 = vmatmul.f32.gmra.mxu0 %v2026
      %v2131 = vpop.f32.mrf.mxu0
      %v2132 = vadd.f32 1e-05, %v2131
      %2133 = vmatmul.f32.gmra.mxu0 %v2029
      %v2134 = vpop.f32.mrf.mxu0
      %v2135 = vadd.f32 1e-05, %v2134
      %2136 = vdwg.mxu0
      %v2137 = vrsqrt.pop %v2126
      %v2138 = vmul.f32 %v2137, %v2126
      %v2139 = vmul.f32 %v2138, %v2137
      %v2140 = vmul.f32 0.5, %v2139
      %v2141 = vsub.f32 1.5, %v2140
      %v2142 = vmul.f32 %v2137, %v2141
      %vm2143 = vweird.f32 %v2126
      %vm2144 = vweird.f32 %v2137
      %vm2145 = vmor %vm2143, %vm2144
      %v2146 = vsel %vm2145, %v2137, %v2142
      %v2147 = vrsqrt.pop %v2129
      %v2148 = vmul.f32 %v2147, %v2129
      %v2149 = vmul.f32 %v2148, %v2147
      %v2150 = vmul.f32 0.5, %v2149
      %v2151 = vsub.f32 1.5, %v2150
      %v2152 = vmul.f32 %v2147, %v2151
      %vm2153 = vweird.f32 %v2129
      %vm2154 = vweird.f32 %v2147
      %vm2155 = vmor %vm2153, %vm2154
      %v2156 = vsel %vm2155, %v2147, %v2152
      %v2157 = vrsqrt.pop %v2132
      %v2158 = vmul.f32 %v2157, %v2132
      %v2159 = vmul.f32 %v2158, %v2157
      %v2160 = vmul.f32 0.5, %v2159
      %v2161 = vsub.f32 1.5, %v2160
      %v2162 = vmul.f32 %v2157, %v2161
      %vm2163 = vweird.f32 %v2132
      %vm2164 = vweird.f32 %v2157
      %vm2165 = vmor %vm2163, %vm2164
      %v2166 = vsel %vm2165, %v2157, %v2162
      %v2167 = vrsqrt.pop %v2135
      %v2168 = vmul.f32 %v2167, %v2135
      %v2169 = vmul.f32 %v2168, %v2167
      %v2170 = vmul.f32 0.5, %v2169
      %v2171 = vsub.f32 1.5, %v2170
      %v2172 = vmul.f32 %v2167, %v2171
      %vm2173 = vweird.f32 %v2135
      %vm2174 = vweird.f32 %v2167
      %vm2175 = vmor %vm2173, %vm2174
      %v2176 = vsel %vm2175, %v2167, %v2172
      %2177 = vrot.lane.b32.xlu0 %v1975, 127
      %v2178 = vpop.permute.xlu0 %2177
      %2179 = vrot.lane.b32.xlu0 %v1976, 127
      %v2180 = vpop.permute.xlu0 %2179
      %2181 = vrot.lane.b32.xlu0 %v1977, 127
      %v2182 = vpop.permute.xlu0 %2181
      %2183 = vrot.lane.b32.xlu0 %v1978, 127
      %v2184 = vpop.permute.xlu0 %2183
      %v2189 = vmul.f32 %v2146, %v2178
      %v2190 = vmul.f32 %v2156, %v2180
      %v2191 = vmul.f32 %v2166, %v2182
      %v2192 = vmul.f32 %v2176, %v2184
      %2194 = vset.pattern.permute.xlu0 0
      %2195 = vperm.xlu0 %2194, %v2189
      %v2196 = vpop.permute.xlu0 %2195
      %2199 = vset.pattern.permute.xlu0 0
      %2200 = vperm.xlu0 %2199, %v2190
      %v2201 = vpop.permute.xlu0 %2200
      %2204 = vset.pattern.permute.xlu0 0
      %2205 = vperm.xlu0 %2204, %v2191
      %v2206 = vpop.permute.xlu0 %2205
      %2209 = vset.pattern.permute.xlu0 0
      %2210 = vperm.xlu0 %2209, %v2192
      %v2211 = vpop.permute.xlu0 %2210
      %v2213 = vmul.f32 %v2080, %v2196
      %v2214 = vmul.f32 %v2081, %v2196
      %v2215 = vmul.f32 %v2082, %v2201
      %v2216 = vmul.f32 %v2083, %v2201
      %v2217 = vmul.f32 %v2084, %v2206
      %v2218 = vmul.f32 %v2085, %v2206
      %v2219 = vmul.f32 %v2086, %v2211
      %v2220 = vmul.f32 %v2087, %v2211
      %2221 = vset.pattern.permute.xlu0 2
      %2222 = vperm.xlu0 %2221, %v1975
      %v2223 = vpop.permute.xlu0 %2222
      %2225 = vset.pattern.permute.xlu0 2
      %2226 = vperm.xlu0 %2225, %v1976
      %v2227 = vpop.permute.xlu0 %2226
      %2229 = vset.pattern.permute.xlu0 2
      %2230 = vperm.xlu0 %2229, %v1977
      %v2231 = vpop.permute.xlu0 %2230
      %2233 = vset.pattern.permute.xlu0 2
      %2234 = vperm.xlu0 %2233, %v1978
      %v2235 = vpop.permute.xlu0 %2234
      %v2237 = vadd.f32 %v2213, %v2223
      %v2238 = vadd.f32 %v2214, %v2223
      %v2239 = vadd.f32 %v2215, %v2227
      %v2240 = vadd.f32 %v2216, %v2227
      %v2241 = vadd.f32 %v2217, %v2231
      %v2242 = vadd.f32 %v2218, %v2231
      %v2243 = vadd.f32 %v2219, %v2235
      %v2244 = vadd.f32 %v2220, %v2235
      %v2245 = vsub.f32 0.0, %v2237
      %v2246 = vsub.f32 0.0, %v2238
      %v2247 = vsub.f32 0.0, %v2239
      %v2248 = vsub.f32 0.0, %v2240
      %v2249 = vsub.f32 0.0, %v2241
      %v2250 = vsub.f32 0.0, %v2242
      %v2251 = vsub.f32 0.0, %v2243
      %v2252 = vsub.f32 0.0, %v2244
      %v2253 = vmul.f32 %v2245, 1.442695
      %v2254 = vpow.pop %v2253
      %v2255 = vmul.f32 %v2246, 1.442695
      %v2256 = vpow.pop %v2255
      %v2257 = vmul.f32 %v2247, 1.442695
      %v2258 = vpow.pop %v2257
      %v2259 = vmul.f32 %v2248, 1.442695
      %v2260 = vpow.pop %v2259
      %v2261 = vmul.f32 %v2249, 1.442695
      %v2262 = vpow.pop %v2261
      %v2263 = vmul.f32 %v2250, 1.442695
      %v2264 = vpow.pop %v2263
      %v2265 = vmul.f32 %v2251, 1.442695
      %v2266 = vpow.pop %v2265
      %v2267 = vmul.f32 %v2252, 1.442695
      %v2268 = vpow.pop %v2267
      %v2269 = vadd.f32 %v2254, 1.0
      %v2270 = vadd.f32 %v2256, 1.0
      %v2271 = vadd.f32 %v2258, 1.0
      %v2272 = vadd.f32 %v2260, 1.0
      %v2273 = vadd.f32 %v2262, 1.0
      %v2274 = vadd.f32 %v2264, 1.0
      %v2275 = vadd.f32 %v2266, 1.0
      %v2276 = vadd.f32 %v2268, 1.0
      %v2277 = vrcp.pop %v2269
      %v2278 = vmul.f32 %v2269, %v2277
      %v2279 = vsub.f32 1.0, %v2278
      %v2280 = vmul.f32 %v2277, %v2279
      %v2281 = vadd.f32 %v2277, %v2280
      %vm2282 = vweird.f32 %v2269
      %vm2283 = vweird.f32 %v2277
      %vm2284 = vmor %vm2282, %vm2283
      %v2285 = vsel %vm2284, %v2277, %v2281
      %v2286 = vand.u32 2147483647, %v2269
      %vm2287 = vcmp.eq.f32.partialorder %v2286, 8.507059e+37
      %v2288 = vand.u32 %v2269, 2147483648
      %v2289 = vor.u32 1.1754944e-38, %v2288
      %v2290 = vsel %vm2287, %v2289, %v2285
      %v2291 = vmul.f32 1.0, %v2290
      %v2292 = vrcp.pop %v2270
      %v2293 = vmul.f32 %v2270, %v2292
      %v2294 = vsub.f32 1.0, %v2293
      %v2295 = vmul.f32 %v2292, %v2294
      %v2296 = vadd.f32 %v2292, %v2295
      %vm2297 = vweird.f32 %v2270
      %vm2298 = vweird.f32 %v2292
      %vm2299 = vmor %vm2297, %vm2298
      %v2300 = vsel %vm2299, %v2292, %v2296
      %v2301 = vand.u32 2147483647, %v2270
      %vm2302 = vcmp.eq.f32.partialorder %v2301, 8.507059e+37
      %v2303 = vand.u32 %v2270, 2147483648
      %v2304 = vor.u32 1.1754944e-38, %v2303
      %v2305 = vsel %vm2302, %v2304, %v2300
      %v2306 = vmul.f32 1.0, %v2305
      %v2307 = vrcp.pop %v2271
      %v2308 = vmul.f32 %v2271, %v2307
      %v2309 = vsub.f32 1.0, %v2308
      %v2310 = vmul.f32 %v2307, %v2309
      %v2311 = vadd.f32 %v2307, %v2310
      %vm2312 = vweird.f32 %v2271
      %vm2313 = vweird.f32 %v2307
      %vm2314 = vmor %vm2312, %vm2313
      %v2315 = vsel %vm2314, %v2307, %v2311
      %v2316 = vand.u32 2147483647, %v2271
      %vm2317 = vcmp.eq.f32.partialorder %v2316, 8.507059e+37
      %v2318 = vand.u32 %v2271, 2147483648
      %v2319 = vor.u32 1.1754944e-38, %v2318
      %v2320 = vsel %vm2317, %v2319, %v2315
      %v2321 = vmul.f32 1.0, %v2320
      %v2322 = vrcp.pop %v2272
      %v2323 = vmul.f32 %v2272, %v2322
      %v2324 = vsub.f32 1.0, %v2323
      %v2325 = vmul.f32 %v2322, %v2324
      %v2326 = vadd.f32 %v2322, %v2325
      %vm2327 = vweird.f32 %v2272
      %vm2328 = vweird.f32 %v2322
      %vm2329 = vmor %vm2327, %vm2328
      %v2330 = vsel %vm2329, %v2322, %v2326
      %v2331 = vand.u32 2147483647, %v2272
      %vm2332 = vcmp.eq.f32.partialorder %v2331, 8.507059e+37
      %v2333 = vand.u32 %v2272, 2147483648
      %v2334 = vor.u32 1.1754944e-38, %v2333
      %v2335 = vsel %vm2332, %v2334, %v2330
      %v2336 = vmul.f32 1.0, %v2335
      %v2337 = vrcp.pop %v2273
      %v2338 = vmul.f32 %v2273, %v2337
      %v2339 = vsub.f32 1.0, %v2338
      %v2340 = vmul.f32 %v2337, %v2339
      %v2341 = vadd.f32 %v2337, %v2340
      %vm2342 = vweird.f32 %v2273
      %vm2343 = vweird.f32 %v2337
      %vm2344 = vmor %vm2342, %vm2343
      %v2345 = vsel %vm2344, %v2337, %v2341
      %v2346 = vand.u32 2147483647, %v2273
      %vm2347 = vcmp.eq.f32.partialorder %v2346, 8.507059e+37
      %v2348 = vand.u32 %v2273, 2147483648
      %v2349 = vor.u32 1.1754944e-38, %v2348
      %v2350 = vsel %vm2347, %v2349, %v2345
      %v2351 = vmul.f32 1.0, %v2350
      %v2352 = vrcp.pop %v2274
      %v2353 = vmul.f32 %v2274, %v2352
      %v2354 = vsub.f32 1.0, %v2353
      %v2355 = vmul.f32 %v2352, %v2354
      %v2356 = vadd.f32 %v2352, %v2355
      %vm2357 = vweird.f32 %v2274
      %vm2358 = vweird.f32 %v2352
      %vm2359 = vmor %vm2357, %vm2358
      %v2360 = vsel %vm2359, %v2352, %v2356
      %v2361 = vand.u32 2147483647, %v2274
      %vm2362 = vcmp.eq.f32.partialorder %v2361, 8.507059e+37
      %v2363 = vand.u32 %v2274, 2147483648
      %v2364 = vor.u32 1.1754944e-38, %v2363
      %v2365 = vsel %vm2362, %v2364, %v2360
      %v2366 = vmul.f32 1.0, %v2365
      %v2367 = vrcp.pop %v2275
      %v2368 = vmul.f32 %v2275, %v2367
      %v2369 = vsub.f32 1.0, %v2368
      %v2370 = vmul.f32 %v2367, %v2369
      %v2371 = vadd.f32 %v2367, %v2370
      %vm2372 = vweird.f32 %v2275
      %vm2373 = vweird.f32 %v2367
      %vm2374 = vmor %vm2372, %vm2373
      %v2375 = vsel %vm2374, %v2367, %v2371
      %v2376 = vand.u32 2147483647, %v2275
      %vm2377 = vcmp.eq.f32.partialorder %v2376, 8.507059e+37
      %v2378 = vand.u32 %v2275, 2147483648
      %v2379 = vor.u32 1.1754944e-38, %v2378
      %v2380 = vsel %vm2377, %v2379, %v2375
      %v2381 = vmul.f32 1.0, %v2380
      %v2382 = vrcp.pop %v2276
      %v2383 = vmul.f32 %v2276, %v2382
      %v2384 = vsub.f32 1.0, %v2383
      %v2385 = vmul.f32 %v2382, %v2384
      %v2386 = vadd.f32 %v2382, %v2385
      %vm2387 = vweird.f32 %v2276
      %vm2388 = vweird.f32 %v2382
      %vm2389 = vmor %vm2387, %vm2388
      %v2390 = vsel %vm2389, %v2382, %v2386
      %v2391 = vand.u32 2147483647, %v2276
      %vm2392 = vcmp.eq.f32.partialorder %v2391, 8.507059e+37
      %v2393 = vand.u32 %v2276, 2147483648
      %v2394 = vor.u32 1.1754944e-38, %v2393
      %v2395 = vsel %vm2392, %v2394, %v2390
      %v2396 = vmul.f32 1.0, %v2395
      %v2397 = vmul.f32 %v2237, %v2291
      %v2398 = vmul.f32 %v2238, %v2306
      %v2399 = vmul.f32 %v2239, %v2321
      %v2400 = vmul.f32 %v2240, %v2336
      %v2401 = vmul.f32 %v2241, %v2351
      %v2402 = vmul.f32 %v2242, %v2366
      %v2403 = vmul.f32 %v2243, %v2381
      %v2404 = vmul.f32 %v2244, %v2396
      %v2405 = vld [vmem:[%s11] sm:$0xff]
      %v2406 = vld [vmem:[%s11 + $0x8] sm:$0xf]
      %v2407 = vld [vmem:[%s11 + $0xc] sm:$0xff]
      %v2408 = vld [vmem:[%s11 + $0x14] sm:$0xf]
      %v2409 = vld [vmem:[%s11 + $0x18] sm:$0xff]
      %v2410 = vld [vmem:[%s11 + $0x20] sm:$0xf]
      %v2411 = vld [vmem:[%s11 + $0x24] sm:$0xff]
      %v2412 = vld [vmem:[%s11 + $0x2c] sm:$0xf]
      %2413 = vrot.lane.b32.xlu0 %v2397, 17
      %v2414 = vpop.permute.xlu0 %2413
      %2415 = vrot.lane.b32.xlu0 %v2399, 17
      %v2416 = vpop.permute.xlu0 %2415
      %2417 = vrot.lane.b32.xlu0 %v2401, 17
      %v2418 = vpop.permute.xlu0 %2417
      %2419 = vrot.lane.b32.xlu0 %v2403, 17
      %v2420 = vpop.permute.xlu0 %2419
      %2421 = vrot.lane.b32.xlu0 %v2398, 17
      %v2422 = vpop.permute.xlu0 %2421
      %2423 = vrot.lane.b32.xlu0 %v2400, 17
      %v2424 = vpop.permute.xlu0 %2423
      %2425 = vrot.lane.b32.xlu0 %v2402, 17
      %v2426 = vpop.permute.xlu0 %2425
      %2427 = vrot.lane.b32.xlu0 %v2404, 17
      %v2428 = vpop.permute.xlu0 %2427
      %v2429 = vsel %vm1081, %v2414, %v2422
      %v2430 = vsel %vm1081, %v2416, %v2424
      %v2431 = vsel %vm1081, %v2418, %v2426
      %v2432 = vsel %vm1081, %v2420, %v2428
      %v2433 = vsel %vm1081, %v2422, %v2414
      %v2434 = vsel %vm1081, %v2424, %v2416
      %v2435 = vsel %vm1081, %v2426, %v2418
      %v2436 = vsel %vm1081, %v2428, %v2420
      %v2437 = vmul.f32 %v2433, %v1084
      %v2438 = vmul.f32 %v2429, %v1085
      %v2439 = vmul.f32 %v2434, %v1084
      %v2440 = vmul.f32 %v2430, %v1085
      %v2441 = vmul.f32 %v2435, %v1084
      %v2442 = vmul.f32 %v2431, %v1085
      %v2443 = vmul.f32 %v2436, %v1084
      %v2444 = vmul.f32 %v2432, %v1085
      %v2445 = vpack.c.bf16 %v2438, %v2437
      %v2446 = vpack.c.bf16 %v2440, %v2439
      %v2447 = vpack.c.bf16 %v2442, %v2441
      %v2448 = vpack.c.bf16 %v2444, %v2443
      %2449 = vrot.lane.b32.xlu0 %v2397, 16
      %v2450 = vpop.permute.xlu0 %2449
      %2451 = vrot.lane.b32.xlu0 %v2399, 16
      %v2452 = vpop.permute.xlu0 %2451
      %2453 = vrot.lane.b32.xlu0 %v2401, 16
      %v2454 = vpop.permute.xlu0 %2453
      %2455 = vrot.lane.b32.xlu0 %v2403, 16
      %v2456 = vpop.permute.xlu0 %2455
      %2457 = vrot.lane.b32.xlu0 %v2398, 16
      %v2458 = vpop.permute.xlu0 %2457
      %2459 = vrot.lane.b32.xlu0 %v2400, 16
      %v2460 = vpop.permute.xlu0 %2459
      %2461 = vrot.lane.b32.xlu0 %v2402, 16
      %v2462 = vpop.permute.xlu0 %2461
      %2463 = vrot.lane.b32.xlu0 %v2404, 16
      %v2464 = vpop.permute.xlu0 %2463
      %v2465 = vsel %vm1097, %v2450, %v2458
      %v2466 = vsel %vm1097, %v2452, %v2460
      %v2467 = vsel %vm1097, %v2454, %v2462
      %v2468 = vsel %vm1097, %v2456, %v2464
      %v2469 = vsel %vm1097, %v2458, %v2450
      %v2470 = vsel %vm1097, %v2460, %v2452
      %v2471 = vsel %vm1097, %v2462, %v2454
      %v2472 = vsel %vm1097, %v2464, %v2456
      %v2473 = vmul.f32 %v2469, %v1100
      %v2474 = vmul.f32 %v2465, %v1101
      %v2475 = vmul.f32 %v2470, %v1100
      %v2476 = vmul.f32 %v2466, %v1101
      %v2477 = vmul.f32 %v2471, %v1100
      %v2478 = vmul.f32 %v2467, %v1101
      %v2479 = vmul.f32 %v2472, %v1100
      %v2480 = vmul.f32 %v2468, %v1101
      %v2481 = vpack.c.bf16 %v2474, %v2473
      %v2482 = vpack.c.bf16 %v2476, %v2475
      %v2483 = vpack.c.bf16 %v2478, %v2477
      %v2484 = vpack.c.bf16 %v2480, %v2479
      %2485 = vrot.lane.b32.xlu0 %v2397, 15
      %v2486 = vpop.permute.xlu0 %2485
      %2487 = vrot.lane.b32.xlu0 %v2399, 15
      %v2488 = vpop.permute.xlu0 %2487
      %2489 = vrot.lane.b32.xlu0 %v2401, 15
      %v2490 = vpop.permute.xlu0 %2489
      %2491 = vrot.lane.b32.xlu0 %v2403, 15
      %v2492 = vpop.permute.xlu0 %2491
      %2493 = vrot.lane.b32.xlu0 %v2398, 15
      %v2494 = vpop.permute.xlu0 %2493
      %2495 = vrot.lane.b32.xlu0 %v2400, 15
      %v2496 = vpop.permute.xlu0 %2495
      %2497 = vrot.lane.b32.xlu0 %v2402, 15
      %v2498 = vpop.permute.xlu0 %2497
      %2499 = vrot.lane.b32.xlu0 %v2404, 15
      %v2500 = vpop.permute.xlu0 %2499
      %v2501 = vsel %vm1271, %v2486, %v2494
      %v2502 = vsel %vm1271, %v2488, %v2496
      %v2503 = vsel %vm1271, %v2490, %v2498
      %v2504 = vsel %vm1271, %v2492, %v2500
      %v2505 = vsel %vm1271, %v2494, %v2486
      %v2506 = vsel %vm1271, %v2496, %v2488
      %v2507 = vsel %vm1271, %v2498, %v2490
      %v2508 = vsel %vm1271, %v2500, %v2492
      %v2509 = vmul.f32 %v2505, %v1274
      %v2510 = vmul.f32 %v2501, %v1275
      %v2511 = vmul.f32 %v2506, %v1274
      %v2512 = vmul.f32 %v2502, %v1275
      %v2513 = vmul.f32 %v2507, %v1274
      %v2514 = vmul.f32 %v2503, %v1275
      %v2515 = vmul.f32 %v2508, %v1274
      %v2516 = vmul.f32 %v2504, %v1275
      %v2517 = vpack.c.bf16 %v2510, %v2509
      %v2518 = vpack.c.bf16 %v2512, %v2511
      %v2519 = vpack.c.bf16 %v2514, %v2513
      %v2520 = vpack.c.bf16 %v2516, %v2515
      %2521 = vrot.lane.b32.xlu0 %v2397, 1
      %v2522 = vpop.permute.xlu0 %2521
      %2523 = vrot.lane.b32.xlu0 %v2399, 1
      %v2524 = vpop.permute.xlu0 %2523
      %2525 = vrot.lane.b32.xlu0 %v2401, 1
      %v2526 = vpop.permute.xlu0 %2525
      %2527 = vrot.lane.b32.xlu0 %v2403, 1
      %v2528 = vpop.permute.xlu0 %2527
      %2529 = vrot.lane.b32.xlu0 %v2398, 1
      %v2530 = vpop.permute.xlu0 %2529
      %2531 = vrot.lane.b32.xlu0 %v2400, 1
      %v2532 = vpop.permute.xlu0 %2531
      %2533 = vrot.lane.b32.xlu0 %v2402, 1
      %v2534 = vpop.permute.xlu0 %2533
      %2535 = vrot.lane.b32.xlu0 %v2404, 1
      %v2536 = vpop.permute.xlu0 %2535
      %v2537 = vsel %vm1375, %v2522, %v2530
      %v2538 = vsel %vm1375, %v2524, %v2532
      %v2539 = vsel %vm1375, %v2526, %v2534
      %v2540 = vsel %vm1375, %v2528, %v2536
      %v2541 = vsel %vm1375, %v2530, %v2522
      %v2542 = vsel %vm1375, %v2532, %v2524
      %v2543 = vsel %vm1375, %v2534, %v2526
      %v2544 = vsel %vm1375, %v2536, %v2528
      %v2545 = vmul.f32 %v2541, %v1378
      %v2546 = vmul.f32 %v2537, %v1379
      %v2547 = vmul.f32 %v2542, %v1378
      %v2548 = vmul.f32 %v2538, %v1379
      %v2549 = vmul.f32 %v2543, %v1378
      %v2550 = vmul.f32 %v2539, %v1379
      %v2551 = vmul.f32 %v2544, %v1378
      %v2552 = vmul.f32 %v2540, %v1379
      %v2553 = vpack.c.bf16 %v2546, %v2545
      %v2554 = vpack.c.bf16 %v2548, %v2547
      %v2555 = vpack.c.bf16 %v2550, %v2549
      %v2556 = vpack.c.bf16 %v2552, %v2551
      %v2557 = vpack.c.bf16 %v2398, %v2397
      %v2558 = vpack.c.bf16 %v2400, %v2399
      %v2559 = vpack.c.bf16 %v2402, %v2401
      %v2560 = vpack.c.bf16 %v2404, %v2403
      %2561 = vrot.lane.b32.xlu0 %v2397, 127
      %v2562 = vpop.permute.xlu0 %2561
      %2563 = vrot.lane.b32.xlu0 %v2399, 127
      %v2564 = vpop.permute.xlu0 %2563
      %2565 = vrot.lane.b32.xlu0 %v2401, 127
      %v2566 = vpop.permute.xlu0 %2565
      %2567 = vrot.lane.b32.xlu0 %v2403, 127
      %v2568 = vpop.permute.xlu0 %2567
      %2569 = vrot.lane.b32.xlu0 %v2398, 127
      %v2570 = vpop.permute.xlu0 %2569
      %2571 = vrot.lane.b32.xlu0 %v2400, 127
      %v2572 = vpop.permute.xlu0 %2571
      %2573 = vrot.lane.b32.xlu0 %v2402, 127
      %v2574 = vpop.permute.xlu0 %2573
      %2575 = vrot.lane.b32.xlu0 %v2404, 127
      %v2576 = vpop.permute.xlu0 %2575
      %v2577 = vsel %vm1568, %v2562, %v2570
      %v2578 = vsel %vm1568, %v2564, %v2572
      %v2579 = vsel %vm1568, %v2566, %v2574
      %v2580 = vsel %vm1568, %v2568, %v2576
      %v2581 = vsel %vm1568, %v2570, %v2562
      %v2582 = vsel %vm1568, %v2572, %v2564
      %v2583 = vsel %vm1568, %v2574, %v2566
      %v2584 = vsel %vm1568, %v2576, %v2568
      %v2585 = vmul.f32 %v2577, %v1571
      %v2586 = vmul.f32 %v2581, %v1572
      %v2587 = vmul.f32 %v2578, %v1571
      %v2588 = vmul.f32 %v2582, %v1572
      %v2589 = vmul.f32 %v2579, %v1571
      %v2590 = vmul.f32 %v2583, %v1572
      %v2591 = vmul.f32 %v2580, %v1571
      %v2592 = vmul.f32 %v2584, %v1572
      %v2593 = vpack.c.bf16 %v2586, %v2585
      %v2594 = vpack.c.bf16 %v2588, %v2587
      %v2595 = vpack.c.bf16 %v2590, %v2589
      %v2596 = vpack.c.bf16 %v2592, %v2591
      %2597 = vrot.lane.b32.xlu0 %v2397, 113
      %v2598 = vpop.permute.xlu0 %2597
      %2599 = vrot.lane.b32.xlu0 %v2399, 113
      %v2600 = vpop.permute.xlu0 %2599
      %2601 = vrot.lane.b32.xlu0 %v2401, 113
      %v2602 = vpop.permute.xlu0 %2601
      %2603 = vrot.lane.b32.xlu0 %v2403, 113
      %v2604 = vpop.permute.xlu0 %2603
      %2605 = vrot.lane.b32.xlu0 %v2398, 113
      %v2606 = vpop.permute.xlu0 %2605
      %2607 = vrot.lane.b32.xlu0 %v2400, 113
      %v2608 = vpop.permute.xlu0 %2607
      %2609 = vrot.lane.b32.xlu0 %v2402, 113
      %v2610 = vpop.permute.xlu0 %2609
      %2611 = vrot.lane.b32.xlu0 %v2404, 113
      %v2612 = vpop.permute.xlu0 %2611
      %v2613 = vsel %vm1672, %v2598, %v2606
      %v2614 = vsel %vm1672, %v2600, %v2608
      %v2615 = vsel %vm1672, %v2602, %v2610
      %v2616 = vsel %vm1672, %v2604, %v2612
      %v2617 = vsel %vm1672, %v2606, %v2598
      %v2618 = vsel %vm1672, %v2608, %v2600
      %v2619 = vsel %vm1672, %v2610, %v2602
      %v2620 = vsel %vm1672, %v2612, %v2604
      %v2621 = vmul.f32 %v2613, %v1675
      %v2622 = vmul.f32 %v2617, %v1676
      %v2623 = vmul.f32 %v2614, %v1675
      %v2624 = vmul.f32 %v2618, %v1676
      %v2625 = vmul.f32 %v2615, %v1675
      %v2626 = vmul.f32 %v2619, %v1676
      %v2627 = vmul.f32 %v2616, %v1675
      %v2628 = vmul.f32 %v2620, %v1676
      %v2629 = vpack.c.bf16 %v2622, %v2621
      %v2630 = vpack.c.bf16 %v2624, %v2623
      %v2631 = vpack.c.bf16 %v2626, %v2625
      %v2632 = vpack.c.bf16 %v2628, %v2627
      %2633 = vrot.lane.b32.xlu0 %v2397, 112
      %v2634 = vpop.permute.xlu0 %2633
      %2635 = vrot.lane.b32.xlu0 %v2399, 112
      %v2636 = vpop.permute.xlu0 %2635
      %2637 = vrot.lane.b32.xlu0 %v2401, 112
      %v2638 = vpop.permute.xlu0 %2637
      %2639 = vrot.lane.b32.xlu0 %v2403, 112
      %v2640 = vpop.permute.xlu0 %2639
      %2641 = vrot.lane.b32.xlu0 %v2398, 112
      %v2642 = vpop.permute.xlu0 %2641
      %2643 = vrot.lane.b32.xlu0 %v2400, 112
      %v2644 = vpop.permute.xlu0 %2643
      %2645 = vrot.lane.b32.xlu0 %v2402, 112
      %v2646 = vpop.permute.xlu0 %2645
      %2647 = vrot.lane.b32.xlu0 %v2404, 112
      %v2648 = vpop.permute.xlu0 %2647
      %v2649 = vsel %vm1776, %v2634, %v2642
      %v2650 = vsel %vm1776, %v2636, %v2644
      %v2651 = vsel %vm1776, %v2638, %v2646
      %v2652 = vsel %vm1776, %v2640, %v2648
      %v2653 = vsel %vm1776, %v2642, %v2634
      %v2654 = vsel %vm1776, %v2644, %v2636
      %v2655 = vsel %vm1776, %v2646, %v2638
      %v2656 = vsel %vm1776, %v2648, %v2640
      %v2657 = vmul.f32 %v2649, %v1779
      %v2658 = vmul.f32 %v2653, %v1780
      %v2659 = vmul.f32 %v2650, %v1779
      %v2660 = vmul.f32 %v2654, %v1780
      %v2661 = vmul.f32 %v2651, %v1779
      %v2662 = vmul.f32 %v2655, %v1780
      %v2663 = vmul.f32 %v2652, %v1779
      %v2664 = vmul.f32 %v2656, %v1780
      %v2665 = vpack.c.bf16 %v2658, %v2657
      %v2666 = vpack.c.bf16 %v2660, %v2659
      %v2667 = vpack.c.bf16 %v2662, %v2661
      %v2668 = vpack.c.bf16 %v2664, %v2663
      %2669 = vrot.lane.b32.xlu0 %v2397, 111
      %v2670 = vpop.permute.xlu0 %2669
      %2671 = vrot.lane.b32.xlu0 %v2399, 111
      %v2672 = vpop.permute.xlu0 %2671
      %2673 = vrot.lane.b32.xlu0 %v2401, 111
      %v2674 = vpop.permute.xlu0 %2673
      %2675 = vrot.lane.b32.xlu0 %v2403, 111
      %v2676 = vpop.permute.xlu0 %2675
      %2677 = vrot.lane.b32.xlu0 %v2398, 111
      %v2678 = vpop.permute.xlu0 %2677
      %2679 = vrot.lane.b32.xlu0 %v2400, 111
      %v2680 = vpop.permute.xlu0 %2679
      %2681 = vrot.lane.b32.xlu0 %v2402, 111
      %v2682 = vpop.permute.xlu0 %2681
      %2683 = vrot.lane.b32.xlu0 %v2404, 111
      %v2684 = vpop.permute.xlu0 %2683
      %v2685 = vsel %vm1880, %v2670, %v2678
      %v2686 = vsel %vm1880, %v2672, %v2680
      %v2687 = vsel %vm1880, %v2674, %v2682
      %v2688 = vsel %vm1880, %v2676, %v2684
      %v2689 = vsel %vm1880, %v2678, %v2670
      %v2690 = vsel %vm1880, %v2680, %v2672
      %v2691 = vsel %vm1880, %v2682, %v2674
      %v2692 = vsel %vm1880, %v2684, %v2676
      %v2693 = vmul.f32 %v2685, %v1883
      %v2694 = vmul.f32 %v2689, %v1884
      %v2695 = vmul.f32 %v2686, %v1883
      %v2696 = vmul.f32 %v2690, %v1884
      %v2697 = vmul.f32 %v2687, %v1883
      %v2698 = vmul.f32 %v2691, %v1884
      %v2699 = vmul.f32 %v2688, %v1883
      %v2700 = vmul.f32 %v2692, %v1884
      %v2701 = vpack.c.bf16 %v2694, %v2693
      %v2702 = vpack.c.bf16 %v2696, %v2695
      %v2703 = vpack.c.bf16 %v2698, %v2697
      %v2704 = vpack.c.bf16 %v2700, %v2699
      %v2709 = vunpack.c.l.b16 %v2445
      %v2710 = vunpack.c.h.b16 %v2445
      %v2711 = vunpack.c.l.b16 %v2446
      %v2712 = vunpack.c.h.b16 %v2446
      %v2713 = vunpack.c.l.b16 %v2447
      %v2714 = vunpack.c.h.b16 %v2447
      %v2715 = vunpack.c.l.b16 %v2448
      %v2716 = vunpack.c.h.b16 %v2448
      %v2717 = vpack.c.b16 %v2711, %v2709
      %v2718 = vpack.c.b16 %v2712, %v2710
      %v2719 = vpack.c.b16 %v2715, %v2713
      %v2720 = vpack.c.b16 %v2716, %v2714
      %v2729 = vunpack.c.l.b16 %v2481
      %v2730 = vunpack.c.h.b16 %v2481
      %v2731 = vunpack.c.l.b16 %v2482
      %v2732 = vunpack.c.h.b16 %v2482
      %v2733 = vunpack.c.l.b16 %v2483
      %v2734 = vunpack.c.h.b16 %v2483
      %v2735 = vunpack.c.l.b16 %v2484
      %v2736 = vunpack.c.h.b16 %v2484
      %v2737 = vpack.c.b16 %v2731, %v2729
      %v2738 = vpack.c.b16 %v2732, %v2730
      %v2739 = vpack.c.b16 %v2735, %v2733
      %v2740 = vpack.c.b16 %v2736, %v2734
      %v2749 = vunpack.c.l.b16 %v2517
      %v2750 = vunpack.c.h.b16 %v2517
      %v2751 = vunpack.c.l.b16 %v2518
      %v2752 = vunpack.c.h.b16 %v2518
      %v2753 = vunpack.c.l.b16 %v2519
      %v2754 = vunpack.c.h.b16 %v2519
      %v2755 = vunpack.c.l.b16 %v2520
      %v2756 = vunpack.c.h.b16 %v2520
      %v2757 = vpack.c.b16 %v2751, %v2749
      %v2758 = vpack.c.b16 %v2752, %v2750
      %v2759 = vpack.c.b16 %v2755, %v2753
      %v2760 = vpack.c.b16 %v2756, %v2754
      %v2769 = vunpack.c.l.b16 %v2553
      %v2770 = vunpack.c.h.b16 %v2553
      %v2771 = vunpack.c.l.b16 %v2554
      %v2772 = vunpack.c.h.b16 %v2554
      %v2773 = vunpack.c.l.b16 %v2555
      %v2774 = vunpack.c.h.b16 %v2555
      %v2775 = vunpack.c.l.b16 %v2556
      %v2776 = vunpack.c.h.b16 %v2556
      %v2777 = vpack.c.b16 %v2771, %v2769
      %v2778 = vpack.c.b16 %v2772, %v2770
      %v2779 = vpack.c.b16 %v2775, %v2773
      %v2780 = vpack.c.b16 %v2776, %v2774
      %v2789 = vunpack.c.l.b16 %v2557
      %v2790 = vunpack.c.h.b16 %v2557
      %v2791 = vunpack.c.l.b16 %v2558
      %v2792 = vunpack.c.h.b16 %v2558
      %v2793 = vunpack.c.l.b16 %v2559
      %v2794 = vunpack.c.h.b16 %v2559
      %v2795 = vunpack.c.l.b16 %v2560
      %v2796 = vunpack.c.h.b16 %v2560
      %v2797 = vpack.c.b16 %v2791, %v2789
      %v2798 = vpack.c.b16 %v2792, %v2790
      %v2799 = vpack.c.b16 %v2795, %v2793
      %v2800 = vpack.c.b16 %v2796, %v2794
      %v2809 = vunpack.c.l.b16 %v2593
      %v2810 = vunpack.c.h.b16 %v2593
      %v2811 = vunpack.c.l.b16 %v2594
      %v2812 = vunpack.c.h.b16 %v2594
      %v2813 = vunpack.c.l.b16 %v2595
      %v2814 = vunpack.c.h.b16 %v2595
      %v2815 = vunpack.c.l.b16 %v2596
      %v2816 = vunpack.c.h.b16 %v2596
      %v2817 = vpack.c.b16 %v2811, %v2809
      %v2818 = vpack.c.b16 %v2812, %v2810
      %v2819 = vpack.c.b16 %v2815, %v2813
      %v2820 = vpack.c.b16 %v2816, %v2814
      %v2829 = vunpack.c.l.b16 %v2629
      %v2830 = vunpack.c.h.b16 %v2629
      %v2831 = vunpack.c.l.b16 %v2630
      %v2832 = vunpack.c.h.b16 %v2630
      %v2833 = vunpack.c.l.b16 %v2631
      %v2834 = vunpack.c.h.b16 %v2631
      %v2835 = vunpack.c.l.b16 %v2632
      %v2836 = vunpack.c.h.b16 %v2632
      %v2837 = vpack.c.b16 %v2831, %v2829
      %v2838 = vpack.c.b16 %v2832, %v2830
      %v2839 = vpack.c.b16 %v2835, %v2833
      %v2840 = vpack.c.b16 %v2836, %v2834
      %v2849 = vunpack.c.l.b16 %v2665
      %v2850 = vunpack.c.h.b16 %v2665
      %v2851 = vunpack.c.l.b16 %v2666
      %v2852 = vunpack.c.h.b16 %v2666
      %v2853 = vunpack.c.l.b16 %v2667
      %v2854 = vunpack.c.h.b16 %v2667
      %v2855 = vunpack.c.l.b16 %v2668
      %v2856 = vunpack.c.h.b16 %v2668
      %v2857 = vpack.c.b16 %v2851, %v2849
      %v2858 = vpack.c.b16 %v2852, %v2850
      %v2859 = vpack.c.b16 %v2855, %v2853
      %v2860 = vpack.c.b16 %v2856, %v2854
      %v2869 = vunpack.c.l.b16 %v2701
      %v2870 = vunpack.c.h.b16 %v2701
      %v2871 = vunpack.c.l.b16 %v2702
      %v2872 = vunpack.c.h.b16 %v2702
      %v2873 = vunpack.c.l.b16 %v2703
      %v2874 = vunpack.c.h.b16 %v2703
      %v2875 = vunpack.c.l.b16 %v2704
      %v2876 = vunpack.c.h.b16 %v2704
      %v2877 = vpack.c.b16 %v2871, %v2869
      %v2878 = vpack.c.b16 %v2872, %v2870
      %v2879 = vpack.c.b16 %v2875, %v2873
      %v2880 = vpack.c.b16 %v2876, %v2874
      %2885 = vset.pattern.permute.xlu0 3
      %2886 = vperm.xlu0 %2885, %v1975
      %v2887 = vpop.permute.xlu0 %2886
      %2889 = vset.pattern.permute.xlu0 3
      %2890 = vperm.xlu0 %2889, %v1976
      %v2891 = vpop.permute.xlu0 %2890
      %2893 = vset.pattern.permute.xlu0 3
      %2894 = vperm.xlu0 %2893, %v1977
      %v2895 = vpop.permute.xlu0 %2894
      %2897 = vset.pattern.permute.xlu0 3
      %2898 = vperm.xlu0 %2897, %v1978
      %v2899 = vpop.permute.xlu0 %2898
      %v2909 = vunpack.c.l.b16 %v2405
      %v2910 = vunpack.c.h.b16 %v2405
      %v2911 = vunpack.c.l.b16 %v2406
      %v2912 = vunpack.c.l.b16 %v2407
      %v2913 = vunpack.c.h.b16 %v2407
      %v2914 = vunpack.c.l.b16 %v2408
      %v2915 = vunpack.c.l.b16 %v2409
      %v2916 = vunpack.c.h.b16 %v2409
      %v2917 = vunpack.c.l.b16 %v2410
      %v2918 = vunpack.c.l.b16 %v2411
      %v2919 = vunpack.c.h.b16 %v2411
      %v2920 = vunpack.c.l.b16 %v2412
      %v2921 = vpack.c.b16 %v2912, %v2909
      %v2922 = vpack.c.b16 %v2913, %v2910
      %v2923 = vpack.c.b16 %v2914, %v2911
      %v2924 = vpack.c.b16 %v2918, %v2915
      %v2925 = vpack.c.b16 %v2919, %v2916
      %v2926 = vpack.c.b16 %v2920, %v2917
      %v2932 = vsel %vm507, %v2923, 0
      %v2935 = vsel %vm507, %v2926, 0
      %2937 = vmatpush.bf16.msra.mxu0 %v2779
      %2938 = vmatpush.bf16.msra.mxu0 %v2777
      %2939 = vmatpush.bf16.msra.mxu0 %v2759
      %2940 = vmatpush.bf16.msra.mxu0 %v2757
      %2941 = vmatpush.bf16.msra.mxu0 %v2739
      %2942 = vmatpush.bf16.msra.mxu0 %v2737
      %2943 = vmatpush.bf16.msra.mxu0 %v2719
      %2944 = vmatpush.bf16.msra.mxu0 %v2717
      %2945 = vmatmul.bf16.gmra.mxu0 %v2921
      %v2946 = vpop.f32.mrf.mxu0
      %v2947 = vadd.f32 %v2887, %v2946
      %v2948 = vpop.f32.mrf.mxu0
      %v2949 = vadd.f32 %v2891, %v2948
      %2950 = vmatmul.bf16.gmra.mxu0 %v2924
      %v2951 = vpop.f32.mrf.mxu0
      %v2952 = vadd.f32 %v2895, %v2951
      %v2953 = vpop.f32.mrf.mxu0
      %v2954 = vadd.f32 %v2899, %v2953
      %2955 = vdwg.mxu0
      %2956 = vmatpush.bf16.msra.mxu0 %v2859
      %2957 = vmatpush.bf16.msra.mxu0 %v2857
      %2958 = vmatpush.bf16.msra.mxu0 %v2839
      %2959 = vmatpush.bf16.msra.mxu0 %v2837
      %2960 = vmatpush.bf16.msra.mxu0 %v2819
      %2961 = vmatpush.bf16.msra.mxu0 %v2817
      %2962 = vmatpush.bf16.msra.mxu0 %v2799
      %2963 = vmatpush.bf16.msra.mxu0 %v2797
      %2964 = vmatmul.bf16.gmra.mxu0 %v2922
      %v2965 = vpop.f32.mrf.mxu0
      %v2966 = vadd.f32 %v2947, %v2965
      %v2967 = vpop.f32.mrf.mxu0
      %v2968 = vadd.f32 %v2949, %v2967
      %2969 = vmatmul.bf16.gmra.mxu0 %v2925
      %v2970 = vpop.f32.mrf.mxu0
      %v2971 = vadd.f32 %v2952, %v2970
      %v2972 = vpop.f32.mrf.mxu0
      %v2973 = vadd.f32 %v2954, %v2972
      %2974 = vdwg.mxu0
      %2975 = vmatpush.bf16.msra.mxu0 0
      %2976 = vmatpush.bf16.msra.mxu0 0
      %2977 = vmatpush.bf16.msra.mxu0 0
      %2978 = vmatpush.bf16.msra.mxu0 0
      %2979 = vmatpush.bf16.msra.mxu0 0
      %2980 = vmatpush.bf16.msra.mxu0 0
      %2981 = vmatpush.bf16.msra.mxu0 %v2879
      %2982 = vmatpush.bf16.msra.mxu0 %v2877
      %2983 = vmatmul.bf16.gmra.mxu0 %v2932
      %v2984 = vpop.f32.mrf.mxu0
      %v2985 = vadd.f32 %v2966, %v2984
      %v2986 = vpop.f32.mrf.mxu0
      %v2987 = vadd.f32 %v2968, %v2986
      %2988 = vmatmul.bf16.gmra.mxu0 %v2935
      %v2989 = vpop.f32.mrf.mxu0
      %v2990 = vadd.f32 %v2971, %v2989
      %v2991 = vpop.f32.mrf.mxu0
      %v2992 = vadd.f32 %v2973, %v2991
      %2993 = vdwg.mxu0
      %2994 = vmatpush.bf16.msra.mxu0 %v2780
      %2995 = vmatpush.bf16.msra.mxu0 %v2778
      %2996 = vmatpush.bf16.msra.mxu0 %v2760
      %2997 = vmatpush.bf16.msra.mxu0 %v2758
      %2998 = vmatpush.bf16.msra.mxu0 %v2740
      %2999 = vmatpush.bf16.msra.mxu0 %v2738
      %3000 = vmatpush.bf16.msra.mxu0 %v2720
      %3001 = vmatpush.bf16.msra.mxu0 %v2718
      %3002 = vmatmul.bf16.gmra.mxu0 %v2921
      %v3003 = vpop.f32.mrf.mxu0
      %v3004 = vadd.f32 %v2887, %v3003
      %v3005 = vpop.f32.mrf.mxu0
      %v3006 = vadd.f32 %v2891, %v3005
      %3007 = vmatmul.bf16.gmra.mxu0 %v2924
      %v3008 = vpop.f32.mrf.mxu0
      %v3009 = vadd.f32 %v2895, %v3008
      %v3010 = vpop.f32.mrf.mxu0
      %v3011 = vadd.f32 %v2899, %v3010
      %3012 = vdwg.mxu0
      %3013 = vmatpush.bf16.msra.mxu0 %v2860
      %3014 = vmatpush.bf16.msra.mxu0 %v2858
      %3015 = vmatpush.bf16.msra.mxu0 %v2840
      %3016 = vmatpush.bf16.msra.mxu0 %v2838
      %3017 = vmatpush.bf16.msra.mxu0 %v2820
      %3018 = vmatpush.bf16.msra.mxu0 %v2818
      %3019 = vmatpush.bf16.msra.mxu0 %v2800
      %3020 = vmatpush.bf16.msra.mxu0 %v2798
      %3021 = vmatmul.bf16.gmra.mxu0 %v2922
      %v3022 = vpop.f32.mrf.mxu0
      %v3023 = vadd.f32 %v3004, %v3022
      %v3024 = vpop.f32.mrf.mxu0
      %v3025 = vadd.f32 %v3006, %v3024
      %3026 = vmatmul.bf16.gmra.mxu0 %v2925
      %v3027 = vpop.f32.mrf.mxu0
      %v3028 = vadd.f32 %v3009, %v3027
      %v3029 = vpop.f32.mrf.mxu0
      %v3030 = vadd.f32 %v3011, %v3029
      %3031 = vdwg.mxu0
      %3032 = vmatpush.bf16.msra.mxu0 0
      %3033 = vmatpush.bf16.msra.mxu0 0
      %3034 = vmatpush.bf16.msra.mxu0 0
      %3035 = vmatpush.bf16.msra.mxu0 0
      %3036 = vmatpush.bf16.msra.mxu0 0
      %3037 = vmatpush.bf16.msra.mxu0 0
      %3038 = vmatpush.bf16.msra.mxu0 %v2880
      %3039 = vmatpush.bf16.msra.mxu0 %v2878
      %3040 = vmatmul.bf16.gmra.mxu0 %v2932
      %v3041 = vpop.f32.mrf.mxu0
      %v3042 = vadd.f32 %v3023, %v3041
      %v3043 = vpop.f32.mrf.mxu0
      %v3044 = vadd.f32 %v3025, %v3043
      %3045 = vmatmul.bf16.gmra.mxu0 %v2935
      %v3046 = vpop.f32.mrf.mxu0
      %v3047 = vadd.f32 %v3028, %v3046
      %v3048 = vpop.f32.mrf.mxu0
      %v3049 = vadd.f32 %v3030, %v3048
      %3050 = vdwg.mxu0
      %3052 = vset.pattern.permute.xlu0 0
      %3053 = vperm.xlu0 %3052, %v1053
      %v3054 = vpop.permute.xlu0 %3053
      %3057 = vset.pattern.permute.xlu0 0
      %3058 = vperm.xlu0 %3057, %v1056
      %v3059 = vpop.permute.xlu0 %3058
      %3062 = vset.pattern.permute.xlu0 0
      %3063 = vperm.xlu0 %3062, %v1059
      %v3064 = vpop.permute.xlu0 %3063
      %3067 = vset.pattern.permute.xlu0 0
      %3068 = vperm.xlu0 %3067, %v1062
      %v3069 = vpop.permute.xlu0 %3068
      %v3071 = vadd.f32 %v2985, %v3054
      %v3072 = vadd.f32 %v3042, %v3054
      %v3073 = vadd.f32 %v2987, %v3059
      %v3074 = vadd.f32 %v3044, %v3059
      %v3075 = vadd.f32 %v2990, %v3064
      %v3076 = vadd.f32 %v3047, %v3064
      %v3077 = vadd.f32 %v2992, %v3069
      %v3078 = vadd.f32 %v3049, %v3069
      %v3079 = vadd.f32 %v3071, %v3072
      %3080 = vadd.xlane.f32.xlu0 %v3079
      %v3081 = vpop.xlane.xlu0 %3080
      %v3082 = vadd.f32 %v3073, %v3074
      %3083 = vadd.xlane.f32.xlu0 %v3082
      %v3084 = vpop.xlane.xlu0 %3083
      %v3085 = vadd.f32 %v3075, %v3076
      %3086 = vadd.xlane.f32.xlu0 %v3085
      %v3087 = vpop.xlane.xlu0 %3086
      %v3088 = vadd.f32 %v3077, %v3078
      %3089 = vadd.xlane.f32.xlu0 %v3088
      %v3090 = vpop.xlane.xlu0 %3089
      %3091 = vmatpush.msra.mxu0 0.0
      %3092 = vmatpush.msra.mxu0 0.0
      %3093 = vmatpush.msra.mxu0 0.0
      %3094 = vmatpush.msra.mxu0 0.0
      %3095 = vmatpush.msra.mxu0 0.0
      %3096 = vmatpush.msra.mxu0 0.0
      %3097 = vmatpush.msra.mxu0 0.0
      %3098 = vmatpush.msra.mxu0 0.0
      %3099 = vmatpush.msra.mxu0 0.0
      %3100 = vmatpush.msra.mxu0 0.0
      %3101 = vmatpush.msra.mxu0 0.0
      %3102 = vmatpush.msra.mxu0 0.0
      %3103 = vmatpush.msra.mxu0 %v3090
      %3104 = vmatpush.msra.mxu0 %v3087
      %3105 = vmatpush.msra.mxu0 %v3084
      %3106 = vmatpush.msra.mxu0 %v3081
      %3107 = vmatmul.f32.gmra.mxu0 %v2020
      %v3108 = vpop.f32.mrf.mxu0
      %v3109 = vadd.f32 0.0, %v3108
      %3110 = vmatmul.f32.gmra.mxu0 %v2023
      %v3111 = vpop.f32.mrf.mxu0
      %v3112 = vadd.f32 0.0, %v3111
      %3113 = vmatmul.f32.gmra.mxu0 %v2026
      %v3114 = vpop.f32.mrf.mxu0
      %v3115 = vadd.f32 0.0, %v3114
      %3116 = vmatmul.f32.gmra.mxu0 %v2029
      %v3117 = vpop.f32.mrf.mxu0
      %v3118 = vadd.f32 0.0, %v3117
      %3119 = vdwg.mxu0
      %3121 = vset.pattern.permute.xlu0 0
      %3122 = vperm.xlu0 %3121, %v3109
      %v3123 = vpop.permute.xlu0 %3122
      %3126 = vset.pattern.permute.xlu0 0
      %3127 = vperm.xlu0 %3126, %v3112
      %v3128 = vpop.permute.xlu0 %3127
      %3131 = vset.pattern.permute.xlu0 0
      %3132 = vperm.xlu0 %3131, %v3115
      %v3133 = vpop.permute.xlu0 %3132
      %3136 = vset.pattern.permute.xlu0 0
      %3137 = vperm.xlu0 %3136, %v3118
      %v3138 = vpop.permute.xlu0 %3137
      %v3140 = vsub.f32 %v3071, %v3123
      %v3141 = vsub.f32 %v3072, %v3123
      %v3142 = vsub.f32 %v3073, %v3128
      %v3143 = vsub.f32 %v3074, %v3128
      %v3144 = vsub.f32 %v3075, %v3133
      %v3145 = vsub.f32 %v3076, %v3133
      %v3146 = vsub.f32 %v3077, %v3138
      %v3147 = vsub.f32 %v3078, %v3138
      %v3148 = vmul.f32 %v3140, %v3140
      %v3149 = vmul.f32 %v3141, %v3141
      %v3150 = vmul.f32 %v3142, %v3142
      %v3151 = vmul.f32 %v3143, %v3143
      %v3152 = vmul.f32 %v3144, %v3144
      %v3153 = vmul.f32 %v3145, %v3145
      %v3154 = vmul.f32 %v3146, %v3146
      %v3155 = vmul.f32 %v3147, %v3147
      %v3156 = vadd.f32 %v3148, %v3149
      %3157 = vadd.xlane.f32.xlu0 %v3156
      %v3158 = vpop.xlane.xlu0 %3157
      %v3159 = vadd.f32 %v3150, %v3151
      %3160 = vadd.xlane.f32.xlu0 %v3159
      %v3161 = vpop.xlane.xlu0 %3160
      %v3162 = vadd.f32 %v3152, %v3153
      %3163 = vadd.xlane.f32.xlu0 %v3162
      %v3164 = vpop.xlane.xlu0 %3163
      %v3165 = vadd.f32 %v3154, %v3155
      %3166 = vadd.xlane.f32.xlu0 %v3165
      %v3167 = vpop.xlane.xlu0 %3166
      %3168 = vmatpush.msra.mxu0 0.0
      %3169 = vmatpush.msra.mxu0 0.0
      %3170 = vmatpush.msra.mxu0 0.0
      %3171 = vmatpush.msra.mxu0 0.0
      %3172 = vmatpush.msra.mxu0 0.0
      %3173 = vmatpush.msra.mxu0 0.0
      %3174 = vmatpush.msra.mxu0 0.0
      %3175 = vmatpush.msra.mxu0 0.0
      %3176 = vmatpush.msra.mxu0 0.0
      %3177 = vmatpush.msra.mxu0 0.0
      %3178 = vmatpush.msra.mxu0 0.0
      %3179 = vmatpush.msra.mxu0 0.0
      %3180 = vmatpush.msra.mxu0 %v3167
      %3181 = vmatpush.msra.mxu0 %v3164
      %3182 = vmatpush.msra.mxu0 %v3161
      %3183 = vmatpush.msra.mxu0 %v3158
      %3184 = vmatmul.f32.gmra.mxu0 %v2020
      %v3185 = vpop.f32.mrf.mxu0
      %v3186 = vadd.f32 1e-05, %v3185
      %3187 = vmatmul.f32.gmra.mxu0 %v2023
      %v3188 = vpop.f32.mrf.mxu0
      %v3189 = vadd.f32 1e-05, %v3188
      %3190 = vmatmul.f32.gmra.mxu0 %v2026
      %v3191 = vpop.f32.mrf.mxu0
      %v3192 = vadd.f32 1e-05, %v3191
      %3193 = vmatmul.f32.gmra.mxu0 %v2029
      %v3194 = vpop.f32.mrf.mxu0
      %v3195 = vadd.f32 1e-05, %v3194
      %3196 = vdwg.mxu0
      %v3197 = vrsqrt.pop %v3186
      %v3198 = vmul.f32 %v3197, %v3186
      %v3199 = vmul.f32 %v3198, %v3197
      %v3200 = vmul.f32 0.5, %v3199
      %v3201 = vsub.f32 1.5, %v3200
      %v3202 = vmul.f32 %v3197, %v3201
      %vm3203 = vweird.f32 %v3186
      %vm3204 = vweird.f32 %v3197
      %vm3205 = vmor %vm3203, %vm3204
      %v3206 = vsel %vm3205, %v3197, %v3202
      %v3207 = vrsqrt.pop %v3189
      %v3208 = vmul.f32 %v3207, %v3189
      %v3209 = vmul.f32 %v3208, %v3207
      %v3210 = vmul.f32 0.5, %v3209
      %v3211 = vsub.f32 1.5, %v3210
      %v3212 = vmul.f32 %v3207, %v3211
      %vm3213 = vweird.f32 %v3189
      %vm3214 = vweird.f32 %v3207
      %vm3215 = vmor %vm3213, %vm3214
      %v3216 = vsel %vm3215, %v3207, %v3212
      %v3217 = vrsqrt.pop %v3192
      %v3218 = vmul.f32 %v3217, %v3192
      %v3219 = vmul.f32 %v3218, %v3217
      %v3220 = vmul.f32 0.5, %v3219
      %v3221 = vsub.f32 1.5, %v3220
      %v3222 = vmul.f32 %v3217, %v3221
      %vm3223 = vweird.f32 %v3192
      %vm3224 = vweird.f32 %v3217
      %vm3225 = vmor %vm3223, %vm3224
      %v3226 = vsel %vm3225, %v3217, %v3222
      %v3227 = vrsqrt.pop %v3195
      %v3228 = vmul.f32 %v3227, %v3195
      %v3229 = vmul.f32 %v3228, %v3227
      %v3230 = vmul.f32 0.5, %v3229
      %v3231 = vsub.f32 1.5, %v3230
      %v3232 = vmul.f32 %v3227, %v3231
      %vm3233 = vweird.f32 %v3195
      %vm3234 = vweird.f32 %v3227
      %vm3235 = vmor %vm3233, %vm3234
      %v3236 = vsel %vm3235, %v3227, %v3232
      %3237 = vrot.lane.b32.xlu0 %v1975, 123
      %v3238 = vpop.permute.xlu0 %3237
      %3239 = vrot.lane.b32.xlu0 %v1976, 123
      %v3240 = vpop.permute.xlu0 %3239
      %3241 = vrot.lane.b32.xlu0 %v1977, 123
      %v3242 = vpop.permute.xlu0 %3241
      %3243 = vrot.lane.b32.xlu0 %v1978, 123
      %v3244 = vpop.permute.xlu0 %3243
      %v3249 = vmul.f32 %v3206, %v3238
      %v3250 = vmul.f32 %v3216, %v3240
      %v3251 = vmul.f32 %v3226, %v3242
      %v3252 = vmul.f32 %v3236, %v3244
      %3254 = vset.pattern.permute.xlu0 0
      %3255 = vperm.xlu0 %3254, %v3249
      %v3256 = vpop.permute.xlu0 %3255
      %3259 = vset.pattern.permute.xlu0 0
      %3260 = vperm.xlu0 %3259, %v3250
      %v3261 = vpop.permute.xlu0 %3260
      %3264 = vset.pattern.permute.xlu0 0
      %3265 = vperm.xlu0 %3264, %v3251
      %v3266 = vpop.permute.xlu0 %3265
      %3269 = vset.pattern.permute.xlu0 0
      %3270 = vperm.xlu0 %3269, %v3252
      %v3271 = vpop.permute.xlu0 %3270
      %v3273 = vmul.f32 %v3140, %v3256
      %v3274 = vmul.f32 %v3141, %v3256
      %v3275 = vmul.f32 %v3142, %v3261
      %v3276 = vmul.f32 %v3143, %v3261
      %v3277 = vmul.f32 %v3144, %v3266
      %v3278 = vmul.f32 %v3145, %v3266
      %v3279 = vmul.f32 %v3146, %v3271
      %v3280 = vmul.f32 %v3147, %v3271
      %3281 = vset.pattern.permute.xlu0 6
      %3282 = vperm.xlu0 %3281, %v1975
      %v3283 = vpop.permute.xlu0 %3282
      %3285 = vset.pattern.permute.xlu0 6
      %3286 = vperm.xlu0 %3285, %v1976
      %v3287 = vpop.permute.xlu0 %3286
      %3289 = vset.pattern.permute.xlu0 6
      %3290 = vperm.xlu0 %3289, %v1977
      %v3291 = vpop.permute.xlu0 %3290
      %3293 = vset.pattern.permute.xlu0 6
      %3294 = vperm.xlu0 %3293, %v1978
      %v3295 = vpop.permute.xlu0 %3294
      %v3297 = vadd.f32 %v3273, %v3283
      %v3298 = vadd.f32 %v3274, %v3283
      %v3299 = vadd.f32 %v3275, %v3287
      %v3300 = vadd.f32 %v3276, %v3287
      %v3301 = vadd.f32 %v3277, %v3291
      %v3302 = vadd.f32 %v3278, %v3291
      %v3303 = vadd.f32 %v3279, %v3295
      %v3304 = vadd.f32 %v3280, %v3295
      %v3305 = vsub.f32 0.0, %v3297
      %v3306 = vsub.f32 0.0, %v3298
      %v3307 = vsub.f32 0.0, %v3299
      %v3308 = vsub.f32 0.0, %v3300
      %v3309 = vsub.f32 0.0, %v3301
      %v3310 = vsub.f32 0.0, %v3302
      %v3311 = vsub.f32 0.0, %v3303
      %v3312 = vsub.f32 0.0, %v3304
      %v3313 = vmul.f32 %v3305, 1.442695
      %v3314 = vpow.pop %v3313
      %v3315 = vmul.f32 %v3306, 1.442695
      %v3316 = vpow.pop %v3315
      %v3317 = vmul.f32 %v3307, 1.442695
      %v3318 = vpow.pop %v3317
      %v3319 = vmul.f32 %v3308, 1.442695
      %v3320 = vpow.pop %v3319
      %v3321 = vmul.f32 %v3309, 1.442695
      %v3322 = vpow.pop %v3321
      %v3323 = vmul.f32 %v3310, 1.442695
      %v3324 = vpow.pop %v3323
      %v3325 = vmul.f32 %v3311, 1.442695
      %v3326 = vpow.pop %v3325
      %v3327 = vmul.f32 %v3312, 1.442695
      %v3328 = vpow.pop %v3327
      %v3329 = vadd.f32 %v3314, 1.0
      %v3330 = vadd.f32 %v3316, 1.0
      %v3331 = vadd.f32 %v3318, 1.0
      %v3332 = vadd.f32 %v3320, 1.0
      %v3333 = vadd.f32 %v3322, 1.0
      %v3334 = vadd.f32 %v3324, 1.0
      %v3335 = vadd.f32 %v3326, 1.0
      %v3336 = vadd.f32 %v3328, 1.0
      %v3337 = vrcp.pop %v3329
      %v3338 = vmul.f32 %v3329, %v3337
      %v3339 = vsub.f32 1.0, %v3338
      %v3340 = vmul.f32 %v3337, %v3339
      %v3341 = vadd.f32 %v3337, %v3340
      %vm3342 = vweird.f32 %v3329
      %vm3343 = vweird.f32 %v3337
      %vm3344 = vmor %vm3342, %vm3343
      %v3345 = vsel %vm3344, %v3337, %v3341
      %v3346 = vand.u32 2147483647, %v3329
      %vm3347 = vcmp.eq.f32.partialorder %v3346, 8.507059e+37
      %v3348 = vand.u32 %v3329, 2147483648
      %v3349 = vor.u32 1.1754944e-38, %v3348
      %v3350 = vsel %vm3347, %v3349, %v3345
      %v3351 = vmul.f32 1.0, %v3350
      %v3352 = vrcp.pop %v3330
      %v3353 = vmul.f32 %v3330, %v3352
      %v3354 = vsub.f32 1.0, %v3353
      %v3355 = vmul.f32 %v3352, %v3354
      %v3356 = vadd.f32 %v3352, %v3355
      %vm3357 = vweird.f32 %v3330
      %vm3358 = vweird.f32 %v3352
      %vm3359 = vmor %vm3357, %vm3358
      %v3360 = vsel %vm3359, %v3352, %v3356
      %v3361 = vand.u32 2147483647, %v3330
      %vm3362 = vcmp.eq.f32.partialorder %v3361, 8.507059e+37
      %v3363 = vand.u32 %v3330, 2147483648
      %v3364 = vor.u32 1.1754944e-38, %v3363
      %v3365 = vsel %vm3362, %v3364, %v3360
      %v3366 = vmul.f32 1.0, %v3365
      %v3367 = vrcp.pop %v3331
      %v3368 = vmul.f32 %v3331, %v3367
      %v3369 = vsub.f32 1.0, %v3368
      %v3370 = vmul.f32 %v3367, %v3369
      %v3371 = vadd.f32 %v3367, %v3370
      %vm3372 = vweird.f32 %v3331
      %vm3373 = vweird.f32 %v3367
      %vm3374 = vmor %vm3372, %vm3373
      %v3375 = vsel %vm3374, %v3367, %v3371
      %v3376 = vand.u32 2147483647, %v3331
      %vm3377 = vcmp.eq.f32.partialorder %v3376, 8.507059e+37
      %v3378 = vand.u32 %v3331, 2147483648
      %v3379 = vor.u32 1.1754944e-38, %v3378
      %v3380 = vsel %vm3377, %v3379, %v3375
      %v3381 = vmul.f32 1.0, %v3380
      %v3382 = vrcp.pop %v3332
      %v3383 = vmul.f32 %v3332, %v3382
      %v3384 = vsub.f32 1.0, %v3383
      %v3385 = vmul.f32 %v3382, %v3384
      %v3386 = vadd.f32 %v3382, %v3385
      %vm3387 = vweird.f32 %v3332
      %vm3388 = vweird.f32 %v3382
      %vm3389 = vmor %vm3387, %vm3388
      %v3390 = vsel %vm3389, %v3382, %v3386
      %v3391 = vand.u32 2147483647, %v3332
      %vm3392 = vcmp.eq.f32.partialorder %v3391, 8.507059e+37
      %v3393 = vand.u32 %v3332, 2147483648
      %v3394 = vor.u32 1.1754944e-38, %v3393
      %v3395 = vsel %vm3392, %v3394, %v3390
      %v3396 = vmul.f32 1.0, %v3395
      %v3397 = vrcp.pop %v3333
      %v3398 = vmul.f32 %v3333, %v3397
      %v3399 = vsub.f32 1.0, %v3398
      %v3400 = vmul.f32 %v3397, %v3399
      %v3401 = vadd.f32 %v3397, %v3400
      %vm3402 = vweird.f32 %v3333
      %vm3403 = vweird.f32 %v3397
      %vm3404 = vmor %vm3402, %vm3403
      %v3405 = vsel %vm3404, %v3397, %v3401
      %v3406 = vand.u32 2147483647, %v3333
      %vm3407 = vcmp.eq.f32.partialorder %v3406, 8.507059e+37
      %v3408 = vand.u32 %v3333, 2147483648
      %v3409 = vor.u32 1.1754944e-38, %v3408
      %v3410 = vsel %vm3407, %v3409, %v3405
      %v3411 = vmul.f32 1.0, %v3410
      %v3412 = vrcp.pop %v3334
      %v3413 = vmul.f32 %v3334, %v3412
      %v3414 = vsub.f32 1.0, %v3413
      %v3415 = vmul.f32 %v3412, %v3414
      %v3416 = vadd.f32 %v3412, %v3415
      %vm3417 = vweird.f32 %v3334
      %vm3418 = vweird.f32 %v3412
      %vm3419 = vmor %vm3417, %vm3418
      %v3420 = vsel %vm3419, %v3412, %v3416
      %v3421 = vand.u32 2147483647, %v3334
      %vm3422 = vcmp.eq.f32.partialorder %v3421, 8.507059e+37
      %v3423 = vand.u32 %v3334, 2147483648
      %v3424 = vor.u32 1.1754944e-38, %v3423
      %v3425 = vsel %vm3422, %v3424, %v3420
      %v3426 = vmul.f32 1.0, %v3425
      %v3427 = vrcp.pop %v3335
      %v3428 = vmul.f32 %v3335, %v3427
      %v3429 = vsub.f32 1.0, %v3428
      %v3430 = vmul.f32 %v3427, %v3429
      %v3431 = vadd.f32 %v3427, %v3430
      %vm3432 = vweird.f32 %v3335
      %vm3433 = vweird.f32 %v3427
      %vm3434 = vmor %vm3432, %vm3433
      %v3435 = vsel %vm3434, %v3427, %v3431
      %v3436 = vand.u32 2147483647, %v3335
      %vm3437 = vcmp.eq.f32.partialorder %v3436, 8.507059e+37
      %v3438 = vand.u32 %v3335, 2147483648
      %v3439 = vor.u32 1.1754944e-38, %v3438
      %v3440 = vsel %vm3437, %v3439, %v3435
      %v3441 = vmul.f32 1.0, %v3440
      %v3442 = vrcp.pop %v3336
      %v3443 = vmul.f32 %v3336, %v3442
      %v3444 = vsub.f32 1.0, %v3443
      %v3445 = vmul.f32 %v3442, %v3444
      %v3446 = vadd.f32 %v3442, %v3445
      %vm3447 = vweird.f32 %v3336
      %vm3448 = vweird.f32 %v3442
      %vm3449 = vmor %vm3447, %vm3448
      %v3450 = vsel %vm3449, %v3442, %v3446
      %v3451 = vand.u32 2147483647, %v3336
      %vm3452 = vcmp.eq.f32.partialorder %v3451, 8.507059e+37
      %v3453 = vand.u32 %v3336, 2147483648
      %v3454 = vor.u32 1.1754944e-38, %v3453
      %v3455 = vsel %vm3452, %v3454, %v3450
      %v3456 = vmul.f32 1.0, %v3455
      %v3457 = vmul.f32 %v3297, %v3351
      %v3458 = vmul.f32 %v3298, %v3366
      %v3459 = vmul.f32 %v3299, %v3381
      %v3460 = vmul.f32 %v3300, %v3396
      %v3461 = vmul.f32 %v3301, %v3411
      %v3462 = vmul.f32 %v3302, %v3426
      %v3463 = vmul.f32 %v3303, %v3441
      %v3464 = vmul.f32 %v3304, %v3456
      %v3465 = vld [vmem:[%s11 + $0x30] sm:$0xff]
      %v3466 = vld [vmem:[%s11 + $0x38] sm:$0xf]
      %v3467 = vld [vmem:[%s11 + $0x3c] sm:$0xff]
      %v3468 = vld [vmem:[%s11 + $0x44] sm:$0xf]
      %v3469 = vld [vmem:[%s11 + $0x48] sm:$0xff]
      %v3470 = vld [vmem:[%s11 + $0x50] sm:$0xf]
      %v3471 = vld [vmem:[%s11 + $0x54] sm:$0xff]
      %v3472 = vld [vmem:[%s11 + $0x5c] sm:$0xf]
      %3473 = vrot.lane.b32.xlu0 %v3457, 17
      %v3474 = vpop.permute.xlu0 %3473
      %3475 = vrot.lane.b32.xlu0 %v3459, 17
      %v3476 = vpop.permute.xlu0 %3475
      %3477 = vrot.lane.b32.xlu0 %v3461, 17
      %v3478 = vpop.permute.xlu0 %3477
      %3479 = vrot.lane.b32.xlu0 %v3463, 17
      %v3480 = vpop.permute.xlu0 %3479
      %3481 = vrot.lane.b32.xlu0 %v3458, 17
      %v3482 = vpop.permute.xlu0 %3481
      %3483 = vrot.lane.b32.xlu0 %v3460, 17
      %v3484 = vpop.permute.xlu0 %3483
      %3485 = vrot.lane.b32.xlu0 %v3462, 17
      %v3486 = vpop.permute.xlu0 %3485
      %3487 = vrot.lane.b32.xlu0 %v3464, 17
      %v3488 = vpop.permute.xlu0 %3487
      %v3489 = vsel %vm1081, %v3474, %v3482
      %v3490 = vsel %vm1081, %v3476, %v3484
      %v3491 = vsel %vm1081, %v3478, %v3486
      %v3492 = vsel %vm1081, %v3480, %v3488
      %v3493 = vsel %vm1081, %v3482, %v3474
      %v3494 = vsel %vm1081, %v3484, %v3476
      %v3495 = vsel %vm1081, %v3486, %v3478
      %v3496 = vsel %vm1081, %v3488, %v3480
      %v3497 = vmul.f32 %v3493, %v1084
      %v3498 = vmul.f32 %v3489, %v1085
      %v3499 = vmul.f32 %v3494, %v1084
      %v3500 = vmul.f32 %v3490, %v1085
      %v3501 = vmul.f32 %v3495, %v1084
      %v3502 = vmul.f32 %v3491, %v1085
      %v3503 = vmul.f32 %v3496, %v1084
      %v3504 = vmul.f32 %v3492, %v1085
      %v3505 = vpack.c.bf16 %v3498, %v3497
      %v3506 = vpack.c.bf16 %v3500, %v3499
      %v3507 = vpack.c.bf16 %v3502, %v3501
      %v3508 = vpack.c.bf16 %v3504, %v3503
      %3509 = vrot.lane.b32.xlu0 %v3457, 16
      %v3510 = vpop.permute.xlu0 %3509
      %3511 = vrot.lane.b32.xlu0 %v3459, 16
      %v3512 = vpop.permute.xlu0 %3511
      %3513 = vrot.lane.b32.xlu0 %v3461, 16
      %v3514 = vpop.permute.xlu0 %3513
      %3515 = vrot.lane.b32.xlu0 %v3463, 16
      %v3516 = vpop.permute.xlu0 %3515
      %3517 = vrot.lane.b32.xlu0 %v3458, 16
      %v3518 = vpop.permute.xlu0 %3517
      %3519 = vrot.lane.b32.xlu0 %v3460, 16
      %v3520 = vpop.permute.xlu0 %3519
      %3521 = vrot.lane.b32.xlu0 %v3462, 16
      %v3522 = vpop.permute.xlu0 %3521
      %3523 = vrot.lane.b32.xlu0 %v3464, 16
      %v3524 = vpop.permute.xlu0 %3523
      %v3525 = vsel %vm1097, %v3510, %v3518
      %v3526 = vsel %vm1097, %v3512, %v3520
      %v3527 = vsel %vm1097, %v3514, %v3522
      %v3528 = vsel %vm1097, %v3516, %v3524
      %v3529 = vsel %vm1097, %v3518, %v3510
      %v3530 = vsel %vm1097, %v3520, %v3512
      %v3531 = vsel %vm1097, %v3522, %v3514
      %v3532 = vsel %vm1097, %v3524, %v3516
      %v3533 = vmul.f32 %v3529, %v1100
      %v3534 = vmul.f32 %v3525, %v1101
      %v3535 = vmul.f32 %v3530, %v1100
      %v3536 = vmul.f32 %v3526, %v1101
      %v3537 = vmul.f32 %v3531, %v1100
      %v3538 = vmul.f32 %v3527, %v1101
      %v3539 = vmul.f32 %v3532, %v1100
      %v3540 = vmul.f32 %v3528, %v1101
      %v3541 = vpack.c.bf16 %v3534, %v3533
      %v3542 = vpack.c.bf16 %v3536, %v3535
      %v3543 = vpack.c.bf16 %v3538, %v3537
      %v3544 = vpack.c.bf16 %v3540, %v3539
      %3545 = vrot.lane.b32.xlu0 %v3457, 15
      %v3546 = vpop.permute.xlu0 %3545
      %3547 = vrot.lane.b32.xlu0 %v3459, 15
      %v3548 = vpop.permute.xlu0 %3547
      %3549 = vrot.lane.b32.xlu0 %v3461, 15
      %v3550 = vpop.permute.xlu0 %3549
      %3551 = vrot.lane.b32.xlu0 %v3463, 15
      %v3552 = vpop.permute.xlu0 %3551
      %3553 = vrot.lane.b32.xlu0 %v3458, 15
      %v3554 = vpop.permute.xlu0 %3553
      %3555 = vrot.lane.b32.xlu0 %v3460, 15
      %v3556 = vpop.permute.xlu0 %3555
      %3557 = vrot.lane.b32.xlu0 %v3462, 15
      %v3558 = vpop.permute.xlu0 %3557
      %3559 = vrot.lane.b32.xlu0 %v3464, 15
      %v3560 = vpop.permute.xlu0 %3559
      %v3561 = vsel %vm1271, %v3546, %v3554
      %v3562 = vsel %vm1271, %v3548, %v3556
      %v3563 = vsel %vm1271, %v3550, %v3558
      %v3564 = vsel %vm1271, %v3552, %v3560
      %v3565 = vsel %vm1271, %v3554, %v3546
      %v3566 = vsel %vm1271, %v3556, %v3548
      %v3567 = vsel %vm1271, %v3558, %v3550
      %v3568 = vsel %vm1271, %v3560, %v3552
      %v3569 = vmul.f32 %v3565, %v1274
      %v3570 = vmul.f32 %v3561, %v1275
      %v3571 = vmul.f32 %v3566, %v1274
      %v3572 = vmul.f32 %v3562, %v1275
      %v3573 = vmul.f32 %v3567, %v1274
      %v3574 = vmul.f32 %v3563, %v1275
      %v3575 = vmul.f32 %v3568, %v1274
      %v3576 = vmul.f32 %v3564, %v1275
      %v3577 = vpack.c.bf16 %v3570, %v3569
      %v3578 = vpack.c.bf16 %v3572, %v3571
      %v3579 = vpack.c.bf16 %v3574, %v3573
      %v3580 = vpack.c.bf16 %v3576, %v3575
      %3581 = vrot.lane.b32.xlu0 %v3457, 1
      %v3582 = vpop.permute.xlu0 %3581
      %3583 = vrot.lane.b32.xlu0 %v3459, 1
      %v3584 = vpop.permute.xlu0 %3583
      %3585 = vrot.lane.b32.xlu0 %v3461, 1
      %v3586 = vpop.permute.xlu0 %3585
      %3587 = vrot.lane.b32.xlu0 %v3463, 1
      %v3588 = vpop.permute.xlu0 %3587
      %3589 = vrot.lane.b32.xlu0 %v3458, 1
      %v3590 = vpop.permute.xlu0 %3589
      %3591 = vrot.lane.b32.xlu0 %v3460, 1
      %v3592 = vpop.permute.xlu0 %3591
      %3593 = vrot.lane.b32.xlu0 %v3462, 1
      %v3594 = vpop.permute.xlu0 %3593
      %3595 = vrot.lane.b32.xlu0 %v3464, 1
      %v3596 = vpop.permute.xlu0 %3595
      %v3597 = vsel %vm1375, %v3582, %v3590
      %v3598 = vsel %vm1375, %v3584, %v3592
      %v3599 = vsel %vm1375, %v3586, %v3594
      %v3600 = vsel %vm1375, %v3588, %v3596
      %v3601 = vsel %vm1375, %v3590, %v3582
      %v3602 = vsel %vm1375, %v3592, %v3584
      %v3603 = vsel %vm1375, %v3594, %v3586
      %v3604 = vsel %vm1375, %v3596, %v3588
      %v3605 = vmul.f32 %v3601, %v1378
      %v3606 = vmul.f32 %v3597, %v1379
      %v3607 = vmul.f32 %v3602, %v1378
      %v3608 = vmul.f32 %v3598, %v1379
      %v3609 = vmul.f32 %v3603, %v1378
      %v3610 = vmul.f32 %v3599, %v1379
      %v3611 = vmul.f32 %v3604, %v1378
      %v3612 = vmul.f32 %v3600, %v1379
      %v3613 = vpack.c.bf16 %v3606, %v3605
      %v3614 = vpack.c.bf16 %v3608, %v3607
      %v3615 = vpack.c.bf16 %v3610, %v3609
      %v3616 = vpack.c.bf16 %v3612, %v3611
      %v3617 = vpack.c.bf16 %v3458, %v3457
      %v3618 = vpack.c.bf16 %v3460, %v3459
      %v3619 = vpack.c.bf16 %v3462, %v3461
      %v3620 = vpack.c.bf16 %v3464, %v3463
      %3621 = vrot.lane.b32.xlu0 %v3457, 127
      %v3622 = vpop.permute.xlu0 %3621
      %3623 = vrot.lane.b32.xlu0 %v3459, 127
      %v3624 = vpop.permute.xlu0 %3623
      %3625 = vrot.lane.b32.xlu0 %v3461, 127
      %v3626 = vpop.permute.xlu0 %3625
      %3627 = vrot.lane.b32.xlu0 %v3463, 127
      %v3628 = vpop.permute.xlu0 %3627
      %3629 = vrot.lane.b32.xlu0 %v3458, 127
      %v3630 = vpop.permute.xlu0 %3629
      %3631 = vrot.lane.b32.xlu0 %v3460, 127
      %v3632 = vpop.permute.xlu0 %3631
      %3633 = vrot.lane.b32.xlu0 %v3462, 127
      %v3634 = vpop.permute.xlu0 %3633
      %3635 = vrot.lane.b32.xlu0 %v3464, 127
      %v3636 = vpop.permute.xlu0 %3635
      %v3637 = vsel %vm1568, %v3622, %v3630
      %v3638 = vsel %vm1568, %v3624, %v3632
      %v3639 = vsel %vm1568, %v3626, %v3634
      %v3640 = vsel %vm1568, %v3628, %v3636
      %v3641 = vsel %vm1568, %v3630, %v3622
      %v3642 = vsel %vm1568, %v3632, %v3624
      %v3643 = vsel %vm1568, %v3634, %v3626
      %v3644 = vsel %vm1568, %v3636, %v3628
      %v3645 = vmul.f32 %v3637, %v1571
      %v3646 = vmul.f32 %v3641, %v1572
      %v3647 = vmul.f32 %v3638, %v1571
      %v3648 = vmul.f32 %v3642, %v1572
      %v3649 = vmul.f32 %v3639, %v1571
      %v3650 = vmul.f32 %v3643, %v1572
      %v3651 = vmul.f32 %v3640, %v1571
      %v3652 = vmul.f32 %v3644, %v1572
      %v3653 = vpack.c.bf16 %v3646, %v3645
      %v3654 = vpack.c.bf16 %v3648, %v3647
      %v3655 = vpack.c.bf16 %v3650, %v3649
      %v3656 = vpack.c.bf16 %v3652, %v3651
      %3657 = vrot.lane.b32.xlu0 %v3457, 113
      %v3658 = vpop.permute.xlu0 %3657
      %3659 = vrot.lane.b32.xlu0 %v3459, 113
      %v3660 = vpop.permute.xlu0 %3659
      %3661 = vrot.lane.b32.xlu0 %v3461, 113
      %v3662 = vpop.permute.xlu0 %3661
      %3663 = vrot.lane.b32.xlu0 %v3463, 113
      %v3664 = vpop.permute.xlu0 %3663
      %3665 = vrot.lane.b32.xlu0 %v3458, 113
      %v3666 = vpop.permute.xlu0 %3665
      %3667 = vrot.lane.b32.xlu0 %v3460, 113
      %v3668 = vpop.permute.xlu0 %3667
      %3669 = vrot.lane.b32.xlu0 %v3462, 113
      %v3670 = vpop.permute.xlu0 %3669
      %3671 = vrot.lane.b32.xlu0 %v3464, 113
      %v3672 = vpop.permute.xlu0 %3671
      %v3673 = vsel %vm1672, %v3658, %v3666
      %v3674 = vsel %vm1672, %v3660, %v3668
      %v3675 = vsel %vm1672, %v3662, %v3670
      %v3676 = vsel %vm1672, %v3664, %v3672
      %v3677 = vsel %vm1672, %v3666, %v3658
      %v3678 = vsel %vm1672, %v3668, %v3660
      %v3679 = vsel %vm1672, %v3670, %v3662
      %v3680 = vsel %vm1672, %v3672, %v3664
      %v3681 = vmul.f32 %v3673, %v1675
      %v3682 = vmul.f32 %v3677, %v1676
      %v3683 = vmul.f32 %v3674, %v1675
      %v3684 = vmul.f32 %v3678, %v1676
      %v3685 = vmul.f32 %v3675, %v1675
      %v3686 = vmul.f32 %v3679, %v1676
      %v3687 = vmul.f32 %v3676, %v1675
      %v3688 = vmul.f32 %v3680, %v1676
      %v3689 = vpack.c.bf16 %v3682, %v3681
      %v3690 = vpack.c.bf16 %v3684, %v3683
      %v3691 = vpack.c.bf16 %v3686, %v3685
      %v3692 = vpack.c.bf16 %v3688, %v3687
      %3693 = vrot.lane.b32.xlu0 %v3457, 112
      %v3694 = vpop.permute.xlu0 %3693
      %3695 = vrot.lane.b32.xlu0 %v3459, 112
      %v3696 = vpop.permute.xlu0 %3695
      %3697 = vrot.lane.b32.xlu0 %v3461, 112
      %v3698 = vpop.permute.xlu0 %3697
      %3699 = vrot.lane.b32.xlu0 %v3463, 112
      %v3700 = vpop.permute.xlu0 %3699
      %3701 = vrot.lane.b32.xlu0 %v3458, 112
      %v3702 = vpop.permute.xlu0 %3701
      %3703 = vrot.lane.b32.xlu0 %v3460, 112
      %v3704 = vpop.permute.xlu0 %3703
      %3705 = vrot.lane.b32.xlu0 %v3462, 112
      %v3706 = vpop.permute.xlu0 %3705
      %3707 = vrot.lane.b32.xlu0 %v3464, 112
      %v3708 = vpop.permute.xlu0 %3707
      %v3709 = vsel %vm1776, %v3694, %v3702
      %v3710 = vsel %vm1776, %v3696, %v3704
      %v3711 = vsel %vm1776, %v3698, %v3706
      %v3712 = vsel %vm1776, %v3700, %v3708
      %v3713 = vsel %vm1776, %v3702, %v3694
      %v3714 = vsel %vm1776, %v3704, %v3696
      %v3715 = vsel %vm1776, %v3706, %v3698
      %v3716 = vsel %vm1776, %v3708, %v3700
      %v3717 = vmul.f32 %v3709, %v1779
      %v3718 = vmul.f32 %v3713, %v1780
      %v3719 = vmul.f32 %v3710, %v1779
      %v3720 = vmul.f32 %v3714, %v1780
      %v3721 = vmul.f32 %v3711, %v1779
      %v3722 = vmul.f32 %v3715, %v1780
      %v3723 = vmul.f32 %v3712, %v1779
      %v3724 = vmul.f32 %v3716, %v1780
      %v3725 = vpack.c.bf16 %v3718, %v3717
      %v3726 = vpack.c.bf16 %v3720, %v3719
      %v3727 = vpack.c.bf16 %v3722, %v3721
      %v3728 = vpack.c.bf16 %v3724, %v3723
      %3729 = vrot.lane.b32.xlu0 %v3457, 111
      %v3730 = vpop.permute.xlu0 %3729
      %3731 = vrot.lane.b32.xlu0 %v3459, 111
      %v3732 = vpop.permute.xlu0 %3731
      %3733 = vrot.lane.b32.xlu0 %v3461, 111
      %v3734 = vpop.permute.xlu0 %3733
      %3735 = vrot.lane.b32.xlu0 %v3463, 111
      %v3736 = vpop.permute.xlu0 %3735
      %3737 = vrot.lane.b32.xlu0 %v3458, 111
      %v3738 = vpop.permute.xlu0 %3737
      %3739 = vrot.lane.b32.xlu0 %v3460, 111
      %v3740 = vpop.permute.xlu0 %3739
      %3741 = vrot.lane.b32.xlu0 %v3462, 111
      %v3742 = vpop.permute.xlu0 %3741
      %3743 = vrot.lane.b32.xlu0 %v3464, 111
      %v3744 = vpop.permute.xlu0 %3743
      %v3745 = vsel %vm1880, %v3730, %v3738
      %v3746 = vsel %vm1880, %v3732, %v3740
      %v3747 = vsel %vm1880, %v3734, %v3742
      %v3748 = vsel %vm1880, %v3736, %v3744
      %v3749 = vsel %vm1880, %v3738, %v3730
      %v3750 = vsel %vm1880, %v3740, %v3732
      %v3751 = vsel %vm1880, %v3742, %v3734
      %v3752 = vsel %vm1880, %v3744, %v3736
      %v3753 = vmul.f32 %v3745, %v1883
      %v3754 = vmul.f32 %v3749, %v1884
      %v3755 = vmul.f32 %v3746, %v1883
      %v3756 = vmul.f32 %v3750, %v1884
      %v3757 = vmul.f32 %v3747, %v1883
      %v3758 = vmul.f32 %v3751, %v1884
      %v3759 = vmul.f32 %v3748, %v1883
      %v3760 = vmul.f32 %v3752, %v1884
      %v3761 = vpack.c.bf16 %v3754, %v3753
      %v3762 = vpack.c.bf16 %v3756, %v3755
      %v3763 = vpack.c.bf16 %v3758, %v3757
      %v3764 = vpack.c.bf16 %v3760, %v3759
      %v3769 = vunpack.c.l.b16 %v3505
      %v3770 = vunpack.c.h.b16 %v3505
      %v3771 = vunpack.c.l.b16 %v3506
      %v3772 = vunpack.c.h.b16 %v3506
      %v3773 = vunpack.c.l.b16 %v3507
      %v3774 = vunpack.c.h.b16 %v3507
      %v3775 = vunpack.c.l.b16 %v3508
      %v3776 = vunpack.c.h.b16 %v3508
      %v3777 = vpack.c.b16 %v3771, %v3769
      %v3778 = vpack.c.b16 %v3772, %v3770
      %v3779 = vpack.c.b16 %v3775, %v3773
      %v3780 = vpack.c.b16 %v3776, %v3774
      %v3789 = vunpack.c.l.b16 %v3541
      %v3790 = vunpack.c.h.b16 %v3541
      %v3791 = vunpack.c.l.b16 %v3542
      %v3792 = vunpack.c.h.b16 %v3542
      %v3793 = vunpack.c.l.b16 %v3543
      %v3794 = vunpack.c.h.b16 %v3543
      %v3795 = vunpack.c.l.b16 %v3544
      %v3796 = vunpack.c.h.b16 %v3544
      %v3797 = vpack.c.b16 %v3791, %v3789
      %v3798 = vpack.c.b16 %v3792, %v3790
      %v3799 = vpack.c.b16 %v3795, %v3793
      %v3800 = vpack.c.b16 %v3796, %v3794
      %v3809 = vunpack.c.l.b16 %v3577
      %v3810 = vunpack.c.h.b16 %v3577
      %v3811 = vunpack.c.l.b16 %v3578
      %v3812 = vunpack.c.h.b16 %v3578
      %v3813 = vunpack.c.l.b16 %v3579
      %v3814 = vunpack.c.h.b16 %v3579
      %v3815 = vunpack.c.l.b16 %v3580
      %v3816 = vunpack.c.h.b16 %v3580
      %v3817 = vpack.c.b16 %v3811, %v3809
      %v3818 = vpack.c.b16 %v3812, %v3810
      %v3819 = vpack.c.b16 %v3815, %v3813
      %v3820 = vpack.c.b16 %v3816, %v3814
      %v3829 = vunpack.c.l.b16 %v3613
      %v3830 = vunpack.c.h.b16 %v3613
      %v3831 = vunpack.c.l.b16 %v3614
      %v3832 = vunpack.c.h.b16 %v3614
      %v3833 = vunpack.c.l.b16 %v3615
      %v3834 = vunpack.c.h.b16 %v3615
      %v3835 = vunpack.c.l.b16 %v3616
      %v3836 = vunpack.c.h.b16 %v3616
      %v3837 = vpack.c.b16 %v3831, %v3829
      %v3838 = vpack.c.b16 %v3832, %v3830
      %v3839 = vpack.c.b16 %v3835, %v3833
      %v3840 = vpack.c.b16 %v3836, %v3834
      %v3849 = vunpack.c.l.b16 %v3617
      %v3850 = vunpack.c.h.b16 %v3617
      %v3851 = vunpack.c.l.b16 %v3618
      %v3852 = vunpack.c.h.b16 %v3618
      %v3853 = vunpack.c.l.b16 %v3619
      %v3854 = vunpack.c.h.b16 %v3619
      %v3855 = vunpack.c.l.b16 %v3620
      %v3856 = vunpack.c.h.b16 %v3620
      %v3857 = vpack.c.b16 %v3851, %v3849
      %v3858 = vpack.c.b16 %v3852, %v3850
      %v3859 = vpack.c.b16 %v3855, %v3853
      %v3860 = vpack.c.b16 %v3856, %v3854
      %v3869 = vunpack.c.l.b16 %v3653
      %v3870 = vunpack.c.h.b16 %v3653
      %v3871 = vunpack.c.l.b16 %v3654
      %v3872 = vunpack.c.h.b16 %v3654
      %v3873 = vunpack.c.l.b16 %v3655
      %v3874 = vunpack.c.h.b16 %v3655
      %v3875 = vunpack.c.l.b16 %v3656
      %v3876 = vunpack.c.h.b16 %v3656
      %v3877 = vpack.c.b16 %v3871, %v3869
      %v3878 = vpack.c.b16 %v3872, %v3870
      %v3879 = vpack.c.b16 %v3875, %v3873
      %v3880 = vpack.c.b16 %v3876, %v3874
      %v3889 = vunpack.c.l.b16 %v3689
      %v3890 = vunpack.c.h.b16 %v3689
      %v3891 = vunpack.c.l.b16 %v3690
      %v3892 = vunpack.c.h.b16 %v3690
      %v3893 = vunpack.c.l.b16 %v3691
      %v3894 = vunpack.c.h.b16 %v3691
      %v3895 = vunpack.c.l.b16 %v3692
      %v3896 = vunpack.c.h.b16 %v3692
      %v3897 = vpack.c.b16 %v3891, %v3889
      %v3898 = vpack.c.b16 %v3892, %v3890
      %v3899 = vpack.c.b16 %v3895, %v3893
      %v3900 = vpack.c.b16 %v3896, %v3894
      %v3909 = vunpack.c.l.b16 %v3725
      %v3910 = vunpack.c.h.b16 %v3725
      %v3911 = vunpack.c.l.b16 %v3726
      %v3912 = vunpack.c.h.b16 %v3726
      %v3913 = vunpack.c.l.b16 %v3727
      %v3914 = vunpack.c.h.b16 %v3727
      %v3915 = vunpack.c.l.b16 %v3728
      %v3916 = vunpack.c.h.b16 %v3728
      %v3917 = vpack.c.b16 %v3911, %v3909
      %v3918 = vpack.c.b16 %v3912, %v3910
      %v3919 = vpack.c.b16 %v3915, %v3913
      %v3920 = vpack.c.b16 %v3916, %v3914
      %v3929 = vunpack.c.l.b16 %v3761
      %v3930 = vunpack.c.h.b16 %v3761
      %v3931 = vunpack.c.l.b16 %v3762
      %v3932 = vunpack.c.h.b16 %v3762
      %v3933 = vunpack.c.l.b16 %v3763
      %v3934 = vunpack.c.h.b16 %v3763
      %v3935 = vunpack.c.l.b16 %v3764
      %v3936 = vunpack.c.h.b16 %v3764
      %v3937 = vpack.c.b16 %v3931, %v3929
      %v3938 = vpack.c.b16 %v3932, %v3930
      %v3939 = vpack.c.b16 %v3935, %v3933
      %v3940 = vpack.c.b16 %v3936, %v3934
      %3945 = vset.pattern.permute.xlu0 7
      %3946 = vperm.xlu0 %3945, %v1975
      %v3947 = vpop.permute.xlu0 %3946
      %3949 = vset.pattern.permute.xlu0 7
      %3950 = vperm.xlu0 %3949, %v1976
      %v3951 = vpop.permute.xlu0 %3950
      %3953 = vset.pattern.permute.xlu0 7
      %3954 = vperm.xlu0 %3953, %v1977
      %v3955 = vpop.permute.xlu0 %3954
      %3957 = vset.pattern.permute.xlu0 7
      %3958 = vperm.xlu0 %3957, %v1978
      %v3959 = vpop.permute.xlu0 %3958
      %v3969 = vunpack.c.l.b16 %v3465
      %v3970 = vunpack.c.h.b16 %v3465
      %v3971 = vunpack.c.l.b16 %v3466
      %v3972 = vunpack.c.l.b16 %v3467
      %v3973 = vunpack.c.h.b16 %v3467
      %v3974 = vunpack.c.l.b16 %v3468
      %v3975 = vunpack.c.l.b16 %v3469
      %v3976 = vunpack.c.h.b16 %v3469
      %v3977 = vunpack.c.l.b16 %v3470
      %v3978 = vunpack.c.l.b16 %v3471
      %v3979 = vunpack.c.h.b16 %v3471
      %v3980 = vunpack.c.l.b16 %v3472
      %v3981 = vpack.c.b16 %v3972, %v3969
      %v3982 = vpack.c.b16 %v3973, %v3970
      %v3983 = vpack.c.b16 %v3974, %v3971
      %v3984 = vpack.c.b16 %v3978, %v3975
      %v3985 = vpack.c.b16 %v3979, %v3976
      %v3986 = vpack.c.b16 %v3980, %v3977
      %v3992 = vsel %vm507, %v3983, 0
      %v3995 = vsel %vm507, %v3986, 0
      %3997 = vmatpush.bf16.msra.mxu0 %v3839
      %3998 = vmatpush.bf16.msra.mxu0 %v3837
      %3999 = vmatpush.bf16.msra.mxu0 %v3819
      %4000 = vmatpush.bf16.msra.mxu0 %v3817
      %4001 = vmatpush.bf16.msra.mxu0 %v3799
      %4002 = vmatpush.bf16.msra.mxu0 %v3797
      %4003 = vmatpush.bf16.msra.mxu0 %v3779
      %4004 = vmatpush.bf16.msra.mxu0 %v3777
      %4005 = vmatmul.bf16.gmra.mxu0 %v3981
      %v4006 = vpop.f32.mrf.mxu0
      %v4007 = vadd.f32 %v3947, %v4006
      %v4008 = vpop.f32.mrf.mxu0
      %v4009 = vadd.f32 %v3951, %v4008
      %4010 = vmatmul.bf16.gmra.mxu0 %v3984
      %v4011 = vpop.f32.mrf.mxu0
      %v4012 = vadd.f32 %v3955, %v4011
      %v4013 = vpop.f32.mrf.mxu0
      %v4014 = vadd.f32 %v3959, %v4013
      %4015 = vdwg.mxu0
      %4016 = vmatpush.bf16.msra.mxu0 %v3919
      %4017 = vmatpush.bf16.msra.mxu0 %v3917
      %4018 = vmatpush.bf16.msra.mxu0 %v3899
      %4019 = vmatpush.bf16.msra.mxu0 %v3897
      %4020 = vmatpush.bf16.msra.mxu0 %v3879
      %4021 = vmatpush.bf16.msra.mxu0 %v3877
      %4022 = vmatpush.bf16.msra.mxu0 %v3859
      %4023 = vmatpush.bf16.msra.mxu0 %v3857
      %4024 = vmatmul.bf16.gmra.mxu0 %v3982
      %v4025 = vpop.f32.mrf.mxu0
      %v4026 = vadd.f32 %v4007, %v4025
      %v4027 = vpop.f32.mrf.mxu0
      %v4028 = vadd.f32 %v4009, %v4027
      %4029 = vmatmul.bf16.gmra.mxu0 %v3985
      %v4030 = vpop.f32.mrf.mxu0
      %v4031 = vadd.f32 %v4012, %v4030
      %v4032 = vpop.f32.mrf.mxu0
      %v4033 = vadd.f32 %v4014, %v4032
      %4034 = vdwg.mxu0
      %4035 = vmatpush.bf16.msra.mxu0 0
      %4036 = vmatpush.bf16.msra.mxu0 0
      %4037 = vmatpush.bf16.msra.mxu0 0
      %4038 = vmatpush.bf16.msra.mxu0 0
      %4039 = vmatpush.bf16.msra.mxu0 0
      %4040 = vmatpush.bf16.msra.mxu0 0
      %4041 = vmatpush.bf16.msra.mxu0 %v3939
      %4042 = vmatpush.bf16.msra.mxu0 %v3937
      %4043 = vmatmul.bf16.gmra.mxu0 %v3992
      %v4044 = vpop.f32.mrf.mxu0
      %v4045 = vadd.f32 %v4026, %v4044
      %v4046 = vpop.f32.mrf.mxu0
      %v4047 = vadd.f32 %v4028, %v4046
      %4048 = vmatmul.bf16.gmra.mxu0 %v3995
      %v4049 = vpop.f32.mrf.mxu0
      %v4050 = vadd.f32 %v4031, %v4049
      %v4051 = vpop.f32.mrf.mxu0
      %v4052 = vadd.f32 %v4033, %v4051
      %4053 = vdwg.mxu0
      %4054 = vmatpush.bf16.msra.mxu0 %v3840
      %4055 = vmatpush.bf16.msra.mxu0 %v3838
      %4056 = vmatpush.bf16.msra.mxu0 %v3820
      %4057 = vmatpush.bf16.msra.mxu0 %v3818
      %4058 = vmatpush.bf16.msra.mxu0 %v3800
      %4059 = vmatpush.bf16.msra.mxu0 %v3798
      %4060 = vmatpush.bf16.msra.mxu0 %v3780
      %4061 = vmatpush.bf16.msra.mxu0 %v3778
      %4062 = vmatmul.bf16.gmra.mxu0 %v3981
      %v4063 = vpop.f32.mrf.mxu0
      %v4064 = vadd.f32 %v3947, %v4063
      %v4065 = vpop.f32.mrf.mxu0
      %v4066 = vadd.f32 %v3951, %v4065
      %4067 = vmatmul.bf16.gmra.mxu0 %v3984
      %v4068 = vpop.f32.mrf.mxu0
      %v4069 = vadd.f32 %v3955, %v4068
      %v4070 = vpop.f32.mrf.mxu0
      %v4071 = vadd.f32 %v3959, %v4070
      %4072 = vdwg.mxu0
      %4073 = vmatpush.bf16.msra.mxu0 %v3920
      %4074 = vmatpush.bf16.msra.mxu0 %v3918
      %4075 = vmatpush.bf16.msra.mxu0 %v3900
      %4076 = vmatpush.bf16.msra.mxu0 %v3898
      %4077 = vmatpush.bf16.msra.mxu0 %v3880
      %4078 = vmatpush.bf16.msra.mxu0 %v3878
      %4079 = vmatpush.bf16.msra.mxu0 %v3860
      %4080 = vmatpush.bf16.msra.mxu0 %v3858
      %4081 = vmatmul.bf16.gmra.mxu0 %v3982
      %v4082 = vpop.f32.mrf.mxu0
      %v4083 = vadd.f32 %v4064, %v4082
      %v4084 = vpop.f32.mrf.mxu0
      %v4085 = vadd.f32 %v4066, %v4084
      %4086 = vmatmul.bf16.gmra.mxu0 %v3985
      %v4087 = vpop.f32.mrf.mxu0
      %v4088 = vadd.f32 %v4069, %v4087
      %v4089 = vpop.f32.mrf.mxu0
      %v4090 = vadd.f32 %v4071, %v4089
      %4091 = vdwg.mxu0
      %4092 = vmatpush.bf16.msra.mxu0 0
      %4093 = vmatpush.bf16.msra.mxu0 0
      %4094 = vmatpush.bf16.msra.mxu0 0
      %4095 = vmatpush.bf16.msra.mxu0 0
      %4096 = vmatpush.bf16.msra.mxu0 0
      %4097 = vmatpush.bf16.msra.mxu0 0
      %4098 = vmatpush.bf16.msra.mxu0 %v3940
      %4099 = vmatpush.bf16.msra.mxu0 %v3938
      %4100 = vmatmul.bf16.gmra.mxu0 %v3992
      %v4101 = vpop.f32.mrf.mxu0
      %v4102 = vadd.f32 %v4083, %v4101
      %v4103 = vpop.f32.mrf.mxu0
      %v4104 = vadd.f32 %v4085, %v4103
      %4105 = vmatmul.bf16.gmra.mxu0 %v3995
      %v4106 = vpop.f32.mrf.mxu0
      %v4107 = vadd.f32 %v4088, %v4106
      %v4108 = vpop.f32.mrf.mxu0
      %v4109 = vadd.f32 %v4090, %v4108
      %4110 = vdwg.mxu0
      %v4111 = vadd.f32 %v1999, %v4045
      %v4112 = vadd.f32 %v2000, %v4102
      %v4113 = vadd.f32 %v2001, %v4047
      %v4114 = vadd.f32 %v2002, %v4104
      %v4115 = vadd.f32 %v2003, %v4050
      %v4116 = vadd.f32 %v2004, %v4107
      %v4117 = vadd.f32 %v2005, %v4052
      %v4118 = vadd.f32 %v2006, %v4109
      %v4119 = vadd.f32 %v4111, %v4112
      %4120 = vadd.xlane.f32.xlu0 %v4119
      %v4121 = vpop.xlane.xlu0 %4120
      %v4122 = vadd.f32 %v4113, %v4114
      %4123 = vadd.xlane.f32.xlu0 %v4122
      %v4124 = vpop.xlane.xlu0 %4123
      %v4125 = vadd.f32 %v4115, %v4116
      %4126 = vadd.xlane.f32.xlu0 %v4125
      %v4127 = vpop.xlane.xlu0 %4126
      %v4128 = vadd.f32 %v4117, %v4118
      %4129 = vadd.xlane.f32.xlu0 %v4128
      %v4130 = vpop.xlane.xlu0 %4129
      %4131 = vmatpush.msra.mxu0 0.0
      %4132 = vmatpush.msra.mxu0 0.0
      %4133 = vmatpush.msra.mxu0 0.0
      %4134 = vmatpush.msra.mxu0 0.0
      %4135 = vmatpush.msra.mxu0 0.0
      %4136 = vmatpush.msra.mxu0 0.0
      %4137 = vmatpush.msra.mxu0 0.0
      %4138 = vmatpush.msra.mxu0 0.0
      %4139 = vmatpush.msra.mxu0 0.0
      %4140 = vmatpush.msra.mxu0 0.0
      %4141 = vmatpush.msra.mxu0 0.0
      %4142 = vmatpush.msra.mxu0 0.0
      %4143 = vmatpush.msra.mxu0 %v4130
      %4144 = vmatpush.msra.mxu0 %v4127
      %4145 = vmatpush.msra.mxu0 %v4124
      %4146 = vmatpush.msra.mxu0 %v4121
      %4147 = vmatmul.f32.gmra.mxu0 %v2020
      %v4148 = vpop.f32.mrf.mxu0
      %v4149 = vadd.f32 0.0, %v4148
      %4150 = vmatmul.f32.gmra.mxu0 %v2023
      %v4151 = vpop.f32.mrf.mxu0
      %v4152 = vadd.f32 0.0, %v4151
      %4153 = vmatmul.f32.gmra.mxu0 %v2026
      %v4154 = vpop.f32.mrf.mxu0
      %v4155 = vadd.f32 0.0, %v4154
      %4156 = vmatmul.f32.gmra.mxu0 %v2029
      %v4157 = vpop.f32.mrf.mxu0
      %v4158 = vadd.f32 0.0, %v4157
      %4159 = vdwg.mxu0
      %4161 = vset.pattern.permute.xlu0 0
      %4162 = vperm.xlu0 %4161, %v4149
      %v4163 = vpop.permute.xlu0 %4162
      %4166 = vset.pattern.permute.xlu0 0
      %4167 = vperm.xlu0 %4166, %v4152
      %v4168 = vpop.permute.xlu0 %4167
      %4171 = vset.pattern.permute.xlu0 0
      %4172 = vperm.xlu0 %4171, %v4155
      %v4173 = vpop.permute.xlu0 %4172
      %4176 = vset.pattern.permute.xlu0 0
      %4177 = vperm.xlu0 %4176, %v4158
      %v4178 = vpop.permute.xlu0 %4177
      %v4180 = vsub.f32 %v4111, %v4163
      %v4181 = vsub.f32 %v4112, %v4163
      %v4182 = vsub.f32 %v4113, %v4168
      %v4183 = vsub.f32 %v4114, %v4168
      %v4184 = vsub.f32 %v4115, %v4173
      %v4185 = vsub.f32 %v4116, %v4173
      %v4186 = vsub.f32 %v4117, %v4178
      %v4187 = vsub.f32 %v4118, %v4178
      %v4188 = vmul.f32 %v4180, %v4180
      %v4189 = vmul.f32 %v4181, %v4181
      %v4190 = vmul.f32 %v4182, %v4182
      %v4191 = vmul.f32 %v4183, %v4183
      %v4192 = vmul.f32 %v4184, %v4184
      %v4193 = vmul.f32 %v4185, %v4185
      %v4194 = vmul.f32 %v4186, %v4186
      %v4195 = vmul.f32 %v4187, %v4187
      %v4196 = vadd.f32 %v4188, %v4189
      %4197 = vadd.xlane.f32.xlu0 %v4196
      %v4198 = vpop.xlane.xlu0 %4197
      %v4199 = vadd.f32 %v4190, %v4191
      %4200 = vadd.xlane.f32.xlu0 %v4199
      %v4201 = vpop.xlane.xlu0 %4200
      %v4202 = vadd.f32 %v4192, %v4193
      %4203 = vadd.xlane.f32.xlu0 %v4202
      %v4204 = vpop.xlane.xlu0 %4203
      %v4205 = vadd.f32 %v4194, %v4195
      %4206 = vadd.xlane.f32.xlu0 %v4205
      %v4207 = vpop.xlane.xlu0 %4206
      %4208 = vmatpush.msra.mxu0 0.0
      %4209 = vmatpush.msra.mxu0 0.0
      %4210 = vmatpush.msra.mxu0 0.0
      %4211 = vmatpush.msra.mxu0 0.0
      %4212 = vmatpush.msra.mxu0 0.0
      %4213 = vmatpush.msra.mxu0 0.0
      %4214 = vmatpush.msra.mxu0 0.0
      %4215 = vmatpush.msra.mxu0 0.0
      %4216 = vmatpush.msra.mxu0 0.0
      %4217 = vmatpush.msra.mxu0 0.0
      %4218 = vmatpush.msra.mxu0 0.0
      %4219 = vmatpush.msra.mxu0 0.0
      %4220 = vmatpush.msra.mxu0 %v4207
      %4221 = vmatpush.msra.mxu0 %v4204
      %4222 = vmatpush.msra.mxu0 %v4201
      %4223 = vmatpush.msra.mxu0 %v4198
      %4224 = vmatmul.f32.gmra.mxu0 %v2020
      %v4225 = vpop.f32.mrf.mxu0
      %v4226 = vadd.f32 1e-05, %v4225
      %4227 = vmatmul.f32.gmra.mxu0 %v2023
      %v4228 = vpop.f32.mrf.mxu0
      %v4229 = vadd.f32 1e-05, %v4228
      %4230 = vmatmul.f32.gmra.mxu0 %v2026
      %v4231 = vpop.f32.mrf.mxu0
      %v4232 = vadd.f32 1e-05, %v4231
      %4233 = vmatmul.f32.gmra.mxu0 %v2029
      %v4234 = vpop.f32.mrf.mxu0
      %v4235 = vadd.f32 1e-05, %v4234
      %4236 = vdwg.mxu0
      %v4237 = vrsqrt.pop %v4226
      %v4238 = vmul.f32 %v4237, %v4226
      %v4239 = vmul.f32 %v4238, %v4237
      %v4240 = vmul.f32 0.5, %v4239
      %v4241 = vsub.f32 1.5, %v4240
      %v4242 = vmul.f32 %v4237, %v4241
      %vm4243 = vweird.f32 %v4226
      %vm4244 = vweird.f32 %v4237
      %vm4245 = vmor %vm4243, %vm4244
      %v4246 = vsel %vm4245, %v4237, %v4242
      %v4247 = vrsqrt.pop %v4229
      %v4248 = vmul.f32 %v4247, %v4229
      %v4249 = vmul.f32 %v4248, %v4247
      %v4250 = vmul.f32 0.5, %v4249
      %v4251 = vsub.f32 1.5, %v4250
      %v4252 = vmul.f32 %v4247, %v4251
      %vm4253 = vweird.f32 %v4229
      %vm4254 = vweird.f32 %v4247
      %vm4255 = vmor %vm4253, %vm4254
      %v4256 = vsel %vm4255, %v4247, %v4252
      %v4257 = vrsqrt.pop %v4232
      %v4258 = vmul.f32 %v4257, %v4232
      %v4259 = vmul.f32 %v4258, %v4257
      %v4260 = vmul.f32 0.5, %v4259
      %v4261 = vsub.f32 1.5, %v4260
      %v4262 = vmul.f32 %v4257, %v4261
      %vm4263 = vweird.f32 %v4232
      %vm4264 = vweird.f32 %v4257
      %vm4265 = vmor %vm4263, %vm4264
      %v4266 = vsel %vm4265, %v4257, %v4262
      %v4267 = vrsqrt.pop %v4235
      %v4268 = vmul.f32 %v4267, %v4235
      %v4269 = vmul.f32 %v4268, %v4267
      %v4270 = vmul.f32 0.5, %v4269
      %v4271 = vsub.f32 1.5, %v4270
      %v4272 = vmul.f32 %v4267, %v4271
      %vm4273 = vweird.f32 %v4235
      %vm4274 = vweird.f32 %v4267
      %vm4275 = vmor %vm4273, %vm4274
      %v4276 = vsel %vm4275, %v4267, %v4272
      %4277 = vrot.lane.b32.xlu0 %v1975, 120
      %v4278 = vpop.permute.xlu0 %4277
      %4279 = vrot.lane.b32.xlu0 %v1976, 120
      %v4280 = vpop.permute.xlu0 %4279
      %4281 = vrot.lane.b32.xlu0 %v1977, 120
      %v4282 = vpop.permute.xlu0 %4281
      %4283 = vrot.lane.b32.xlu0 %v1978, 120
      %v4284 = vpop.permute.xlu0 %4283
      %v4289 = vmul.f32 %v4246, %v4278
      %v4290 = vmul.f32 %v4256, %v4280
      %v4291 = vmul.f32 %v4266, %v4282
      %v4292 = vmul.f32 %v4276, %v4284
      %4294 = vset.pattern.permute.xlu0 0
      %4295 = vperm.xlu0 %4294, %v4289
      %v4296 = vpop.permute.xlu0 %4295
      %4299 = vset.pattern.permute.xlu0 0
      %4300 = vperm.xlu0 %4299, %v4290
      %v4301 = vpop.permute.xlu0 %4300
      %4304 = vset.pattern.permute.xlu0 0
      %4305 = vperm.xlu0 %4304, %v4291
      %v4306 = vpop.permute.xlu0 %4305
      %4309 = vset.pattern.permute.xlu0 0
      %4310 = vperm.xlu0 %4309, %v4292
      %v4311 = vpop.permute.xlu0 %4310
      %v4313 = vmul.f32 %v4180, %v4296
      %v4314 = vmul.f32 %v4181, %v4296
      %v4315 = vmul.f32 %v4182, %v4301
      %v4316 = vmul.f32 %v4183, %v4301
      %v4317 = vmul.f32 %v4184, %v4306
      %v4318 = vmul.f32 %v4185, %v4306
      %v4319 = vmul.f32 %v4186, %v4311
      %v4320 = vmul.f32 %v4187, %v4311
      %4321 = vset.pattern.permute.xlu0 9
      %4322 = vperm.xlu0 %4321, %v1975
      %v4323 = vpop.permute.xlu0 %4322
      %4325 = vset.pattern.permute.xlu0 9
      %4326 = vperm.xlu0 %4325, %v1976
      %v4327 = vpop.permute.xlu0 %4326
      %4329 = vset.pattern.permute.xlu0 9
      %4330 = vperm.xlu0 %4329, %v1977
      %v4331 = vpop.permute.xlu0 %4330
      %4333 = vset.pattern.permute.xlu0 9
      %4334 = vperm.xlu0 %4333, %v1978
      %v4335 = vpop.permute.xlu0 %4334
      %v4337 = vadd.f32 %v4313, %v4323
      %v4338 = vadd.f32 %v4314, %v4323
      %v4339 = vadd.f32 %v4315, %v4327
      %v4340 = vadd.f32 %v4316, %v4327
      %v4341 = vadd.f32 %v4317, %v4331
      %v4342 = vadd.f32 %v4318, %v4331
      %v4343 = vadd.f32 %v4319, %v4335
      %v4344 = vadd.f32 %v4320, %v4335
      %v4345 = vld [vmem:[%s472] sm:$0xff]
      %v4346 = vld [vmem:[%s12] sm:$0xf]
      %v4347 = vld [vmem:[%s12 + $0x4] sm:$0xf]
      %v4348 = vld [vmem:[%s12 + $0x8] sm:$0xf]
      %v4349 = vld [vmem:[%s12 + $0xc] sm:$0xf]
      %v4350 = vpack.c.bf16 %v4339, %v4337
      %v4351 = vpack.c.bf16 %v4340, %v4338
      %v4352 = vpack.c.bf16 %v4343, %v4341
      %v4353 = vpack.c.bf16 %v4344, %v4342
      %v4358 = vunpack.c.l.b16 %v4346
      %v4359 = vunpack.c.l.b16 %v4347
      %v4360 = vunpack.c.l.b16 %v4348
      %v4361 = vunpack.c.l.b16 %v4349
      %v4362 = vpack.c.b16 %v4359, %v4358
      %v4363 = vpack.c.b16 %v4361, %v4360
      %v4365 = vsel %vm507, %v4362, 0
      %v4368 = vsel %vm507, %v4363, 0
      %4370 = vmatpush.bf16.msra.mxu0 0
      %4371 = vmatpush.bf16.msra.mxu0 0
      %4372 = vmatpush.bf16.msra.mxu0 0
      %4373 = vmatpush.bf16.msra.mxu0 0
      %4374 = vmatpush.bf16.msra.mxu0 0
      %4375 = vmatpush.bf16.msra.mxu0 0
      %4376 = vmatpush.bf16.msra.mxu0 %v4352
      %4377 = vmatpush.bf16.msra.mxu0 %v4350
      %4378 = vmatmul.bf16.gmra.mxu0 %v4365
      %v4379 = vpop.f32.mrf.mxu0
      %v4380 = vadd.f32 0.0, %v4379
      %v4381 = vpop.f32.mrf.mxu0
      %v4382 = vadd.f32 0.0, %v4381
      %4383 = vmatmul.bf16.gmra.mxu0 %v4368
      %v4384 = vpop.f32.mrf.mxu0
      %v4385 = vadd.f32 0.0, %v4384
      %v4386 = vpop.f32.mrf.mxu0
      %v4387 = vadd.f32 0.0, %v4386
      %4388 = vdwg.mxu0
      %4389 = vmatpush.bf16.msra.mxu0 0
      %4390 = vmatpush.bf16.msra.mxu0 0
      %4391 = vmatpush.bf16.msra.mxu0 0
      %4392 = vmatpush.bf16.msra.mxu0 0
      %4393 = vmatpush.bf16.msra.mxu0 0
      %4394 = vmatpush.bf16.msra.mxu0 0
      %4395 = vmatpush.bf16.msra.mxu0 %v4353
      %4396 = vmatpush.bf16.msra.mxu0 %v4351
      %4397 = vmatmul.bf16.gmra.mxu0 %v4365
      %v4398 = vpop.f32.mrf.mxu0
      %v4399 = vadd.f32 0.0, %v4398
      %v4400 = vpop.f32.mrf.mxu0
      %v4401 = vadd.f32 0.0, %v4400
      %4402 = vmatmul.bf16.gmra.mxu0 %v4368
      %v4403 = vpop.f32.mrf.mxu0
      %v4404 = vadd.f32 0.0, %v4403
      %v4405 = vpop.f32.mrf.mxu0
      %v4406 = vadd.f32 0.0, %v4405
      %4407 = vdwg.mxu0
      %v4408 = vpack.c.bf16 %v4345, %v4345
      %v4409 = vld [vmem:[%s12 + $0x20] sm:$0xf]
      %v4410 = vld [vmem:[%s12 + $0x24] sm:$0xf]
      %v4411 = vld [vmem:[%s12 + $0x28] sm:$0xf]
      %v4412 = vld [vmem:[%s12 + $0x2c] sm:$0xf]
      %v4417 = vunpack.c.l.b16 %v4409
      %v4418 = vunpack.c.l.b16 %v4410
      %v4419 = vunpack.c.l.b16 %v4411
      %v4420 = vunpack.c.l.b16 %v4412
      %v4421 = vpack.c.b16 %v4418, %v4417
      %v4422 = vpack.c.b16 %v4420, %v4419
      %v4426 = vsel %vm507, %v4408, 0
      %4428 = vmatpush.bf16.msra.mxu0 0
      %4429 = vmatpush.bf16.msra.mxu0 0
      %4430 = vmatpush.bf16.msra.mxu0 0
      %4431 = vmatpush.bf16.msra.mxu0 0
      %4432 = vmatpush.bf16.msra.mxu0 0
      %4433 = vmatpush.bf16.msra.mxu0 0
      %4434 = vmatpush.bf16.msra.mxu0 %v4422
      %4435 = vmatpush.bf16.msra.mxu0 %v4421
      %4436 = vmatmul.bf16.gmra.mxu0 %v4426
      %v4437 = vpop.f32.mrf.mxu0
      %v4438 = vadd.f32 0.0, %v4437
      %v4439 = vpop.f32.mrf.mxu0
      %4440 = vdwg.mxu0
      %v4441 = vpack.c.bf16 %v4438, %v4438
      %v4442 = vpack.c.bf16 %v4382, %v4380
      %v4443 = vpack.c.bf16 %v4401, %v4399
      %v4444 = vpack.c.bf16 %v4387, %v4385
      %v4445 = vpack.c.bf16 %v4406, %v4404
      %v4447 = vsel %vm507, %v4441, 0
      %4449 = vmatpush.bf16.msra.mxu0 0
      %4450 = vmatpush.bf16.msra.mxu0 0
      %4451 = vmatpush.bf16.msra.mxu0 0
      %4452 = vmatpush.bf16.msra.mxu0 0
      %4453 = vmatpush.bf16.msra.mxu0 0
      %4454 = vmatpush.bf16.msra.mxu0 0
      %4455 = vmatpush.bf16.msra.mxu0 %v4444
      %4456 = vmatpush.bf16.msra.mxu0 %v4442
      %4457 = vmatmul.bf16.gmra.mxu0 %v4447
      %v4458 = vpop.f32.mrf.mxu0
      %v4459 = vadd.f32 0.0, %v4458
      %v4460 = vpop.f32.mrf.mxu0
      %4461 = vdwg.mxu0
      %4462 = vmatpush.bf16.msra.mxu0 0
      %4463 = vmatpush.bf16.msra.mxu0 0
      %4464 = vmatpush.bf16.msra.mxu0 0
      %4465 = vmatpush.bf16.msra.mxu0 0
      %4466 = vmatpush.bf16.msra.mxu0 0
      %4467 = vmatpush.bf16.msra.mxu0 0
      %4468 = vmatpush.bf16.msra.mxu0 %v4445
      %4469 = vmatpush.bf16.msra.mxu0 %v4443
      %4470 = vmatmul.bf16.gmra.mxu0 %v4447
      %v4471 = vpop.f32.mrf.mxu0
      %v4472 = vadd.f32 0.0, %v4471
      %v4473 = vpop.f32.mrf.mxu0
      %4474 = vdwg.mxu0
      %v4475 = vrot.slane %v4459, 4
      %v4476 = vmax.f32 %v4459, %v4475
      %v4477 = vrot.slane %v4476, 2
      %v4478 = vmax.f32 %v4476, %v4477
      %v4479 = vrot.slane %v4478, 1
      %v4480 = vmax.f32 %v4478, %v4479
      %v4481 = vrot.slane %v4472, 4
      %v4482 = vmax.f32 %v4472, %v4481
      %v4483 = vrot.slane %v4482, 2
      %v4484 = vmax.f32 %v4482, %v4483
      %v4485 = vrot.slane %v4484, 1
      %v4486 = vmax.f32 %v4484, %v4485
      %v4487 = vsub.f32 %v4459, %v4480
      %v4488 = vsub.f32 %v4472, %v4486
      %v4489 = vmul.f32 %v4487, 1.442695
      %v4490 = vpow.pop %v4489
      %v4491 = vmul.f32 %v4488, 1.442695
      %v4492 = vpow.pop %v4491
      %v4493 = vrot.slane %v4490, 4
      %v4494 = vadd.f32 %v4490, %v4493
      %v4495 = vrot.slane %v4494, 2
      %v4496 = vadd.f32 %v4494, %v4495
      %v4497 = vrot.slane %v4496, 1
      %v4498 = vadd.f32 %v4496, %v4497
      %v4499 = vrot.slane %v4492, 4
      %v4500 = vadd.f32 %v4492, %v4499
      %v4501 = vrot.slane %v4500, 2
      %v4502 = vadd.f32 %v4500, %v4501
      %v4503 = vrot.slane %v4502, 1
      %v4504 = vadd.f32 %v4502, %v4503
      %v4505 = vrcp.pop %v4498
      %v4506 = vmul.f32 %v4498, %v4505
      %v4507 = vsub.f32 1.0, %v4506
      %v4508 = vmul.f32 %v4505, %v4507
      %v4509 = vadd.f32 %v4505, %v4508
      %vm4510 = vweird.f32 %v4498
      %vm4511 = vweird.f32 %v4505
      %vm4512 = vmor %vm4510, %vm4511
      %v4513 = vsel %vm4512, %v4505, %v4509
      %v4514 = vand.u32 2147483647, %v4498
      %vm4515 = vcmp.eq.f32.partialorder %v4514, 8.507059e+37
      %v4516 = vand.u32 %v4498, 2147483648
      %v4517 = vor.u32 1.1754944e-38, %v4516
      %v4518 = vsel %vm4515, %v4517, %v4513
      %v4519 = vrcp.pop %v4504
      %v4520 = vmul.f32 %v4504, %v4519
      %v4521 = vsub.f32 1.0, %v4520
      %v4522 = vmul.f32 %v4519, %v4521
      %v4523 = vadd.f32 %v4519, %v4522
      %vm4524 = vweird.f32 %v4504
      %vm4525 = vweird.f32 %v4519
      %vm4526 = vmor %vm4524, %vm4525
      %v4527 = vsel %vm4526, %v4519, %v4523
      %v4528 = vand.u32 2147483647, %v4504
      %vm4529 = vcmp.eq.f32.partialorder %v4528, 8.507059e+37
      %v4530 = vand.u32 %v4504, 2147483648
      %v4531 = vor.u32 1.1754944e-38, %v4530
      %v4532 = vsel %vm4529, %v4531, %v4527
      %v4533 = vmul.f32 %v4490, %v4518
      %v4534 = vmul.f32 %v4492, %v4532
      %4536 = vrot.lane.b32.xlu0 %v4438, 96
      %v4537 = vpop.permute.xlu0 %4536
      %4539 = vxpose.xlu0.b32.start [1/16] %v4537, 128
      %4540 = vxpose.xlu0.b32.cont [2/16] 0.0, 128
      %4541 = vxpose.xlu0.b32.cont [3/16] 0.0, 128
      %4542 = vxpose.xlu0.b32.cont [4/16] 0.0, 128
      %4543 = vxpose.xlu0.b32.cont [5/16] 0.0, 128
      %4544 = vxpose.xlu0.b32.cont [6/16] 0.0, 128
      %4545 = vxpose.xlu0.b32.cont [7/16] 0.0, 128
      %4546 = vxpose.xlu0.b32.cont [8/16] 0.0, 128
      %4547 = vxpose.xlu0.b32.cont [9/16] 0.0, 128
      %4548 = vxpose.xlu0.b32.cont [10/16] 0.0, 128
      %4549 = vxpose.xlu0.b32.cont [11/16] 0.0, 128
      %4550 = vxpose.xlu0.b32.cont [12/16] 0.0, 128
      %4551 = vxpose.xlu0.b32.cont [13/16] 0.0, 128
      %4552 = vxpose.xlu0.b32.cont [14/16] 0.0, 128
      %4553 = vxpose.xlu0.b32.cont [15/16] 0.0, 128
      %4554 = vxpose.xlu0.b32.end [16/16] 0.0, 128
      %v4555 = vpop.trf.xlu0
      %v4556 = vpop.trf.xlu0
      %v4557 = vpop.trf.xlu0
      %v4558 = vpop.trf.xlu0
      %v4559 = vpop.trf.xlu0
      %v4560 = vpop.trf.xlu0
      %v4561 = vpop.trf.xlu0
      %v4562 = vpop.trf.xlu0
      %v4563 = vpop.trf.xlu0
      %v4564 = vpop.trf.xlu0
      %v4565 = vpop.trf.xlu0
      %v4566 = vpop.trf.xlu0
      %v4567 = vpop.trf.xlu0
      %v4568 = vpop.trf.xlu0
      %v4569 = vpop.trf.xlu0
      %v4570 = vpop.trf.xlu0
      %v4571 = vpack.c.bf16 %v4556, %v4555
      %v4572 = vpack.c.bf16 %v4558, %v4557
      %v4573 = vpack.c.bf16 %v4533, %v4533
      %v4574 = vpack.c.bf16 %v4534, %v4534
      %vm4575 = vcmask 64512
      %v4577 = vsel %vm4575, %v4571, 0
      %v4580 = vsel %vm4575, %v4572, 0
      %v4583 = vsel %vm1125, %v4573, 0
      %v4586 = vsel %vm1125, %v4574, 0
      %4588 = vmatpush.bf16.msra.mxu0 0
      %4589 = vmatpush.bf16.msra.mxu0 0
      %4590 = vmatpush.bf16.msra.mxu0 0
      %4591 = vmatpush.bf16.msra.mxu0 0
      %4592 = vmatpush.bf16.msra.mxu0 0
      %4593 = vmatpush.bf16.msra.mxu0 0
      %4594 = vmatpush.bf16.msra.mxu0 0
      %4595 = vmatpush.bf16.msra.mxu0 %v4583
      %4596 = vmatmul.bf16.gmra.mxu0 %v4577
      %v4597 = vpop.f32.mrf.mxu0
      %v4598 = vadd.f32 0.0, %v4597
      %v4599 = vpop.f32.mrf.mxu0
      %v4600 = vadd.f32 0.0, %v4599
      %4601 = vmatmul.bf16.gmra.mxu0 %v4580
      %v4602 = vpop.f32.mrf.mxu0
      %v4603 = vadd.f32 0.0, %v4602
      %v4604 = vpop.f32.mrf.mxu0
      %v4605 = vadd.f32 0.0, %v4604
      %4606 = vdwg.mxu0
      %4607 = vmatpush.bf16.msra.mxu0 0
      %4608 = vmatpush.bf16.msra.mxu0 0
      %4609 = vmatpush.bf16.msra.mxu0 0
      %4610 = vmatpush.bf16.msra.mxu0 0
      %4611 = vmatpush.bf16.msra.mxu0 0
      %4612 = vmatpush.bf16.msra.mxu0 0
      %4613 = vmatpush.bf16.msra.mxu0 0
      %4614 = vmatpush.bf16.msra.mxu0 %v4586
      %4615 = vmatmul.bf16.gmra.mxu0 %v4577
      %v4616 = vpop.f32.mrf.mxu0
      %v4617 = vadd.f32 0.0, %v4616
      %v4618 = vpop.f32.mrf.mxu0
      %v4619 = vadd.f32 0.0, %v4618
      %4620 = vmatmul.bf16.gmra.mxu0 %v4580
      %v4621 = vpop.f32.mrf.mxu0
      %v4622 = vadd.f32 0.0, %v4621
      %v4623 = vpop.f32.mrf.mxu0
      %v4624 = vadd.f32 0.0, %v4623
      %4625 = vdwg.mxu0
      %v4626 = vld [vmem:[%s12 + $0x10] sm:$0xf]
      %v4627 = vld [vmem:[%s12 + $0x14] sm:$0xf]
      %v4628 = vld [vmem:[%s12 + $0x18] sm:$0xf]
      %v4629 = vld [vmem:[%s12 + $0x1c] sm:$0xf]
      %v4630 = vpack.c.bf16 %v4600, %v4598
      %v4631 = vpack.c.bf16 %v4619, %v4617
      %v4632 = vpack.c.bf16 %v4605, %v4603
      %v4633 = vpack.c.bf16 %v4624, %v4622
      %v4638 = vunpack.c.l.b16 %v4626
      %v4639 = vunpack.c.l.b16 %v4627
      %v4640 = vunpack.c.l.b16 %v4628
      %v4641 = vunpack.c.l.b16 %v4629
      %v4642 = vpack.c.b16 %v4639, %v4638
      %v4643 = vpack.c.b16 %v4641, %v4640
      %v4645 = vsel %vm507, %v4642, 0
      %v4648 = vsel %vm507, %v4643, 0
      %4650 = vmatpush.bf16.msra.mxu0 0
      %4651 = vmatpush.bf16.msra.mxu0 0
      %4652 = vmatpush.bf16.msra.mxu0 0
      %4653 = vmatpush.bf16.msra.mxu0 0
      %4654 = vmatpush.bf16.msra.mxu0 0
      %4655 = vmatpush.bf16.msra.mxu0 0
      %4656 = vmatpush.bf16.msra.mxu0 %v4632
      %4657 = vmatpush.bf16.msra.mxu0 %v4630
      %4658 = vmatmul.bf16.gmra.mxu0 %v4645
      %v4659 = vpop.f32.mrf.mxu0
      %v4660 = vadd.f32 0.0, %v4659
      %v4661 = vpop.f32.mrf.mxu0
      %v4662 = vadd.f32 0.0, %v4661
      %4663 = vmatmul.bf16.gmra.mxu0 %v4648
      %v4664 = vpop.f32.mrf.mxu0
      %v4665 = vadd.f32 0.0, %v4664
      %v4666 = vpop.f32.mrf.mxu0
      %v4667 = vadd.f32 0.0, %v4666
      %4668 = vdwg.mxu0
      %4669 = vmatpush.bf16.msra.mxu0 0
      %4670 = vmatpush.bf16.msra.mxu0 0
      %4671 = vmatpush.bf16.msra.mxu0 0
      %4672 = vmatpush.bf16.msra.mxu0 0
      %4673 = vmatpush.bf16.msra.mxu0 0
      %4674 = vmatpush.bf16.msra.mxu0 0
      %4675 = vmatpush.bf16.msra.mxu0 %v4633
      %4676 = vmatpush.bf16.msra.mxu0 %v4631
      %4677 = vmatmul.bf16.gmra.mxu0 %v4645
      %v4678 = vpop.f32.mrf.mxu0
      %v4679 = vadd.f32 0.0, %v4678
      %v4680 = vpop.f32.mrf.mxu0
      %v4681 = vadd.f32 0.0, %v4680
      %4682 = vmatmul.bf16.gmra.mxu0 %v4648
      %v4683 = vpop.f32.mrf.mxu0
      %v4684 = vadd.f32 0.0, %v4683
      %v4685 = vpop.f32.mrf.mxu0
      %v4686 = vadd.f32 0.0, %v4685
      %4687 = vdwg.mxu0
      %v4688 = vadd.f32 %v4111, %v4660
      %v4689 = vadd.f32 %v4112, %v4679
      %v4690 = vadd.f32 %v4113, %v4662
      %v4691 = vadd.f32 %v4114, %v4681
      %v4692 = vadd.f32 %v4115, %v4665
      %v4693 = vadd.f32 %v4116, %v4684
      %v4694 = vadd.f32 %v4117, %v4667
      %v4695 = vadd.f32 %v4118, %v4686
      %v4696 = vadd.f32 %v4688, %v4689
      %4697 = vadd.xlane.f32.xlu0 %v4696
      %v4698 = vpop.xlane.xlu0 %4697
      %v4699 = vadd.f32 %v4690, %v4691
      %4700 = vadd.xlane.f32.xlu0 %v4699
      %v4701 = vpop.xlane.xlu0 %4700
      %v4702 = vadd.f32 %v4692, %v4693
      %4703 = vadd.xlane.f32.xlu0 %v4702
      %v4704 = vpop.xlane.xlu0 %4703
      %v4705 = vadd.f32 %v4694, %v4695
      %4706 = vadd.xlane.f32.xlu0 %v4705
      %v4707 = vpop.xlane.xlu0 %4706
      %4708 = vmatpush.msra.mxu0 0.0
      %4709 = vmatpush.msra.mxu0 0.0
      %4710 = vmatpush.msra.mxu0 0.0
      %4711 = vmatpush.msra.mxu0 0.0
      %4712 = vmatpush.msra.mxu0 0.0
      %4713 = vmatpush.msra.mxu0 0.0
      %4714 = vmatpush.msra.mxu0 0.0
      %4715 = vmatpush.msra.mxu0 0.0
      %4716 = vmatpush.msra.mxu0 0.0
      %4717 = vmatpush.msra.mxu0 0.0
      %4718 = vmatpush.msra.mxu0 0.0
      %4719 = vmatpush.msra.mxu0 0.0
      %4720 = vmatpush.msra.mxu0 %v4707
      %4721 = vmatpush.msra.mxu0 %v4704
      %4722 = vmatpush.msra.mxu0 %v4701
      %4723 = vmatpush.msra.mxu0 %v4698
      %4724 = vmatmul.f32.gmra.mxu0 %v2020
      %v4725 = vpop.f32.mrf.mxu0
      %v4726 = vadd.f32 0.0, %v4725
      %4727 = vmatmul.f32.gmra.mxu0 %v2023
      %v4728 = vpop.f32.mrf.mxu0
      %v4729 = vadd.f32 0.0, %v4728
      %4730 = vmatmul.f32.gmra.mxu0 %v2026
      %v4731 = vpop.f32.mrf.mxu0
      %v4732 = vadd.f32 0.0, %v4731
      %4733 = vmatmul.f32.gmra.mxu0 %v2029
      %v4734 = vpop.f32.mrf.mxu0
      %v4735 = vadd.f32 0.0, %v4734
      %4736 = vdwg.mxu0
      %4738 = vset.pattern.permute.xlu0 0
      %4739 = vperm.xlu0 %4738, %v4726
      %v4740 = vpop.permute.xlu0 %4739
      %4743 = vset.pattern.permute.xlu0 0
      %4744 = vperm.xlu0 %4743, %v4729
      %v4745 = vpop.permute.xlu0 %4744
      %4748 = vset.pattern.permute.xlu0 0
      %4749 = vperm.xlu0 %4748, %v4732
      %v4750 = vpop.permute.xlu0 %4749
      %4753 = vset.pattern.permute.xlu0 0
      %4754 = vperm.xlu0 %4753, %v4735
      %v4755 = vpop.permute.xlu0 %4754
      %v4757 = vsub.f32 %v4688, %v4740
      %v4758 = vsub.f32 %v4689, %v4740
      %v4759 = vsub.f32 %v4690, %v4745
      %v4760 = vsub.f32 %v4691, %v4745
      %v4761 = vsub.f32 %v4692, %v4750
      %v4762 = vsub.f32 %v4693, %v4750
      %v4763 = vsub.f32 %v4694, %v4755
      %v4764 = vsub.f32 %v4695, %v4755
      %v4765 = vmul.f32 %v4757, %v4757
      %v4766 = vmul.f32 %v4758, %v4758
      %v4767 = vmul.f32 %v4759, %v4759
      %v4768 = vmul.f32 %v4760, %v4760
      %v4769 = vmul.f32 %v4761, %v4761
      %v4770 = vmul.f32 %v4762, %v4762
      %v4771 = vmul.f32 %v4763, %v4763
      %v4772 = vmul.f32 %v4764, %v4764
      %v4773 = vadd.f32 %v4765, %v4766
      %4774 = vadd.xlane.f32.xlu0 %v4773
      %v4775 = vpop.xlane.xlu0 %4774
      %v4776 = vadd.f32 %v4767, %v4768
      %4777 = vadd.xlane.f32.xlu0 %v4776
      %v4778 = vpop.xlane.xlu0 %4777
      %v4779 = vadd.f32 %v4769, %v4770
      %4780 = vadd.xlane.f32.xlu0 %v4779
      %v4781 = vpop.xlane.xlu0 %4780
      %v4782 = vadd.f32 %v4771, %v4772
      %4783 = vadd.xlane.f32.xlu0 %v4782
      %v4784 = vpop.xlane.xlu0 %4783
      %4785 = vmatpush.msra.mxu0 0.0
      %4786 = vmatpush.msra.mxu0 0.0
      %4787 = vmatpush.msra.mxu0 0.0
      %4788 = vmatpush.msra.mxu0 0.0
      %4789 = vmatpush.msra.mxu0 0.0
      %4790 = vmatpush.msra.mxu0 0.0
      %4791 = vmatpush.msra.mxu0 0.0
      %4792 = vmatpush.msra.mxu0 0.0
      %4793 = vmatpush.msra.mxu0 0.0
      %4794 = vmatpush.msra.mxu0 0.0
      %4795 = vmatpush.msra.mxu0 0.0
      %4796 = vmatpush.msra.mxu0 0.0
      %4797 = vmatpush.msra.mxu0 %v4784
      %4798 = vmatpush.msra.mxu0 %v4781
      %4799 = vmatpush.msra.mxu0 %v4778
      %4800 = vmatpush.msra.mxu0 %v4775
      %4801 = vmatmul.f32.gmra.mxu0 %v2020
      %v4802 = vpop.f32.mrf.mxu0
      %v4803 = vadd.f32 1e-05, %v4802
      %4804 = vmatmul.f32.gmra.mxu0 %v2023
      %v4805 = vpop.f32.mrf.mxu0
      %v4806 = vadd.f32 1e-05, %v4805
      %4807 = vmatmul.f32.gmra.mxu0 %v2026
      %v4808 = vpop.f32.mrf.mxu0
      %v4809 = vadd.f32 1e-05, %v4808
      %4810 = vmatmul.f32.gmra.mxu0 %v2029
      %v4811 = vpop.f32.mrf.mxu0
      %v4812 = vadd.f32 1e-05, %v4811
      %4813 = vdwg.mxu0
      %v4814 = vrsqrt.pop %v4803
      %v4815 = vmul.f32 %v4814, %v4803
      %v4816 = vmul.f32 %v4815, %v4814
      %v4817 = vmul.f32 0.5, %v4816
      %v4818 = vsub.f32 1.5, %v4817
      %v4819 = vmul.f32 %v4814, %v4818
      %vm4820 = vweird.f32 %v4803
      %vm4821 = vweird.f32 %v4814
      %vm4822 = vmor %vm4820, %vm4821
      %v4823 = vsel %vm4822, %v4814, %v4819
      %v4824 = vrsqrt.pop %v4806
      %v4825 = vmul.f32 %v4824, %v4806
      %v4826 = vmul.f32 %v4825, %v4824
      %v4827 = vmul.f32 0.5, %v4826
      %v4828 = vsub.f32 1.5, %v4827
      %v4829 = vmul.f32 %v4824, %v4828
      %vm4830 = vweird.f32 %v4806
      %vm4831 = vweird.f32 %v4824
      %vm4832 = vmor %vm4830, %vm4831
      %v4833 = vsel %vm4832, %v4824, %v4829
      %v4834 = vrsqrt.pop %v4809
      %v4835 = vmul.f32 %v4834, %v4809
      %v4836 = vmul.f32 %v4835, %v4834
      %v4837 = vmul.f32 0.5, %v4836
      %v4838 = vsub.f32 1.5, %v4837
      %v4839 = vmul.f32 %v4834, %v4838
      %vm4840 = vweird.f32 %v4809
      %vm4841 = vweird.f32 %v4834
      %vm4842 = vmor %vm4840, %vm4841
      %v4843 = vsel %vm4842, %v4834, %v4839
      %v4844 = vrsqrt.pop %v4812
      %v4845 = vmul.f32 %v4844, %v4812
      %v4846 = vmul.f32 %v4845, %v4844
      %v4847 = vmul.f32 0.5, %v4846
      %v4848 = vsub.f32 1.5, %v4847
      %v4849 = vmul.f32 %v4844, %v4848
      %vm4850 = vweird.f32 %v4812
      %vm4851 = vweird.f32 %v4844
      %vm4852 = vmor %vm4850, %vm4851
      %v4853 = vsel %vm4852, %v4844, %v4849
      %4854 = vrot.lane.b32.xlu0 %v1975, 118
      %v4855 = vpop.permute.xlu0 %4854
      %4856 = vrot.lane.b32.xlu0 %v1976, 118
      %v4857 = vpop.permute.xlu0 %4856
      %4858 = vrot.lane.b32.xlu0 %v1977, 118
      %v4859 = vpop.permute.xlu0 %4858
      %4860 = vrot.lane.b32.xlu0 %v1978, 118
      %v4861 = vpop.permute.xlu0 %4860
      %v4866 = vmul.f32 %v4823, %v4855
      %v4867 = vmul.f32 %v4833, %v4857
      %v4868 = vmul.f32 %v4843, %v4859
      %v4869 = vmul.f32 %v4853, %v4861
      %4871 = vset.pattern.permute.xlu0 0
      %4872 = vperm.xlu0 %4871, %v4866
      %v4873 = vpop.permute.xlu0 %4872
      %4876 = vset.pattern.permute.xlu0 0
      %4877 = vperm.xlu0 %4876, %v4867
      %v4878 = vpop.permute.xlu0 %4877
      %4881 = vset.pattern.permute.xlu0 0
      %4882 = vperm.xlu0 %4881, %v4868
      %v4883 = vpop.permute.xlu0 %4882
      %4886 = vset.pattern.permute.xlu0 0
      %4887 = vperm.xlu0 %4886, %v4869
      %v4888 = vpop.permute.xlu0 %4887
      %v4890 = vmul.f32 %v4757, %v4873
      %v4891 = vmul.f32 %v4758, %v4873
      %v4892 = vmul.f32 %v4759, %v4878
      %v4893 = vmul.f32 %v4760, %v4878
      %v4894 = vmul.f32 %v4761, %v4883
      %v4895 = vmul.f32 %v4762, %v4883
      %v4896 = vmul.f32 %v4763, %v4888
      %v4897 = vmul.f32 %v4764, %v4888
      %4898 = vset.pattern.permute.xlu0 11
      %4899 = vperm.xlu0 %4898, %v1975
      %v4900 = vpop.permute.xlu0 %4899
      %4902 = vset.pattern.permute.xlu0 11
      %4903 = vperm.xlu0 %4902, %v1976
      %v4904 = vpop.permute.xlu0 %4903
      %4906 = vset.pattern.permute.xlu0 11
      %4907 = vperm.xlu0 %4906, %v1977
      %v4908 = vpop.permute.xlu0 %4907
      %4910 = vset.pattern.permute.xlu0 11
      %4911 = vperm.xlu0 %4910, %v1978
      %v4912 = vpop.permute.xlu0 %4911
      %v4914 = vadd.f32 %v4890, %v4900
      %v4915 = vadd.f32 %v4891, %v4900
      %v4916 = vadd.f32 %v4892, %v4904
      %v4917 = vadd.f32 %v4893, %v4904
      %v4918 = vadd.f32 %v4894, %v4908
      %v4919 = vadd.f32 %v4895, %v4908
      %v4920 = vadd.f32 %v4896, %v4912
      %v4921 = vadd.f32 %v4897, %v4912
      %v4922 = vsub.f32 0.0, %v4914
      %v4923 = vsub.f32 0.0, %v4915
      %v4924 = vsub.f32 0.0, %v4916
      %v4925 = vsub.f32 0.0, %v4917
      %v4926 = vsub.f32 0.0, %v4918
      %v4927 = vsub.f32 0.0, %v4919
      %v4928 = vsub.f32 0.0, %v4920
      %v4929 = vsub.f32 0.0, %v4921
      %v4930 = vmul.f32 %v4922, 1.442695
      %v4931 = vpow.pop %v4930
      %v4932 = vmul.f32 %v4923, 1.442695
      %v4933 = vpow.pop %v4932
      %v4934 = vmul.f32 %v4924, 1.442695
      %v4935 = vpow.pop %v4934
      %v4936 = vmul.f32 %v4925, 1.442695
      %v4937 = vpow.pop %v4936
      %v4938 = vmul.f32 %v4926, 1.442695
      %v4939 = vpow.pop %v4938
      %v4940 = vmul.f32 %v4927, 1.442695
      %v4941 = vpow.pop %v4940
      %v4942 = vmul.f32 %v4928, 1.442695
      %v4943 = vpow.pop %v4942
      %v4944 = vmul.f32 %v4929, 1.442695
      %v4945 = vpow.pop %v4944
      %v4946 = vadd.f32 %v4931, 1.0
      %v4947 = vadd.f32 %v4933, 1.0
      %v4948 = vadd.f32 %v4935, 1.0
      %v4949 = vadd.f32 %v4937, 1.0
      %v4950 = vadd.f32 %v4939, 1.0
      %v4951 = vadd.f32 %v4941, 1.0
      %v4952 = vadd.f32 %v4943, 1.0
      %v4953 = vadd.f32 %v4945, 1.0
      %v4954 = vrcp.pop %v4946
      %v4955 = vmul.f32 %v4946, %v4954
      %v4956 = vsub.f32 1.0, %v4955
      %v4957 = vmul.f32 %v4954, %v4956
      %v4958 = vadd.f32 %v4954, %v4957
      %vm4959 = vweird.f32 %v4946
      %vm4960 = vweird.f32 %v4954
      %vm4961 = vmor %vm4959, %vm4960
      %v4962 = vsel %vm4961, %v4954, %v4958
      %v4963 = vand.u32 2147483647, %v4946
      %vm4964 = vcmp.eq.f32.partialorder %v4963, 8.507059e+37
      %v4965 = vand.u32 %v4946, 2147483648
      %v4966 = vor.u32 1.1754944e-38, %v4965
      %v4967 = vsel %vm4964, %v4966, %v4962
      %v4968 = vmul.f32 1.0, %v4967
      %v4969 = vrcp.pop %v4947
      %v4970 = vmul.f32 %v4947, %v4969
      %v4971 = vsub.f32 1.0, %v4970
      %v4972 = vmul.f32 %v4969, %v4971
      %v4973 = vadd.f32 %v4969, %v4972
      %vm4974 = vweird.f32 %v4947
      %vm4975 = vweird.f32 %v4969
      %vm4976 = vmor %vm4974, %vm4975
      %v4977 = vsel %vm4976, %v4969, %v4973
      %v4978 = vand.u32 2147483647, %v4947
      %vm4979 = vcmp.eq.f32.partialorder %v4978, 8.507059e+37
      %v4980 = vand.u32 %v4947, 2147483648
      %v4981 = vor.u32 1.1754944e-38, %v4980
      %v4982 = vsel %vm4979, %v4981, %v4977
      %v4983 = vmul.f32 1.0, %v4982
      %v4984 = vrcp.pop %v4948
      %v4985 = vmul.f32 %v4948, %v4984
      %v4986 = vsub.f32 1.0, %v4985
      %v4987 = vmul.f32 %v4984, %v4986
      %v4988 = vadd.f32 %v4984, %v4987
      %vm4989 = vweird.f32 %v4948
      %vm4990 = vweird.f32 %v4984
      %vm4991 = vmor %vm4989, %vm4990
      %v4992 = vsel %vm4991, %v4984, %v4988
      %v4993 = vand.u32 2147483647, %v4948
      %vm4994 = vcmp.eq.f32.partialorder %v4993, 8.507059e+37
      %v4995 = vand.u32 %v4948, 2147483648
      %v4996 = vor.u32 1.1754944e-38, %v4995
      %v4997 = vsel %vm4994, %v4996, %v4992
      %v4998 = vmul.f32 1.0, %v4997
      %v4999 = vrcp.pop %v4949
      %v5000 = vmul.f32 %v4949, %v4999
      %v5001 = vsub.f32 1.0, %v5000
      %v5002 = vmul.f32 %v4999, %v5001
      %v5003 = vadd.f32 %v4999, %v5002
      %vm5004 = vweird.f32 %v4949
      %vm5005 = vweird.f32 %v4999
      %vm5006 = vmor %vm5004, %vm5005
      %v5007 = vsel %vm5006, %v4999, %v5003
      %v5008 = vand.u32 2147483647, %v4949
      %vm5009 = vcmp.eq.f32.partialorder %v5008, 8.507059e+37
      %v5010 = vand.u32 %v4949, 2147483648
      %v5011 = vor.u32 1.1754944e-38, %v5010
      %v5012 = vsel %vm5009, %v5011, %v5007
      %v5013 = vmul.f32 1.0, %v5012
      %v5014 = vrcp.pop %v4950
      %v5015 = vmul.f32 %v4950, %v5014
      %v5016 = vsub.f32 1.0, %v5015
      %v5017 = vmul.f32 %v5014, %v5016
      %v5018 = vadd.f32 %v5014, %v5017
      %vm5019 = vweird.f32 %v4950
      %vm5020 = vweird.f32 %v5014
      %vm5021 = vmor %vm5019, %vm5020
      %v5022 = vsel %vm5021, %v5014, %v5018
      %v5023 = vand.u32 2147483647, %v4950
      %vm5024 = vcmp.eq.f32.partialorder %v5023, 8.507059e+37
      %v5025 = vand.u32 %v4950, 2147483648
      %v5026 = vor.u32 1.1754944e-38, %v5025
      %v5027 = vsel %vm5024, %v5026, %v5022
      %v5028 = vmul.f32 1.0, %v5027
      %v5029 = vrcp.pop %v4951
      %v5030 = vmul.f32 %v4951, %v5029
      %v5031 = vsub.f32 1.0, %v5030
      %v5032 = vmul.f32 %v5029, %v5031
      %v5033 = vadd.f32 %v5029, %v5032
      %vm5034 = vweird.f32 %v4951
      %vm5035 = vweird.f32 %v5029
      %vm5036 = vmor %vm5034, %vm5035
      %v5037 = vsel %vm5036, %v5029, %v5033
      %v5038 = vand.u32 2147483647, %v4951
      %vm5039 = vcmp.eq.f32.partialorder %v5038, 8.507059e+37
      %v5040 = vand.u32 %v4951, 2147483648
      %v5041 = vor.u32 1.1754944e-38, %v5040
      %v5042 = vsel %vm5039, %v5041, %v5037
      %v5043 = vmul.f32 1.0, %v5042
      %v5044 = vrcp.pop %v4952
      %v5045 = vmul.f32 %v4952, %v5044
      %v5046 = vsub.f32 1.0, %v5045
      %v5047 = vmul.f32 %v5044, %v5046
      %v5048 = vadd.f32 %v5044, %v5047
      %vm5049 = vweird.f32 %v4952
      %vm5050 = vweird.f32 %v5044
      %vm5051 = vmor %vm5049, %vm5050
      %v5052 = vsel %vm5051, %v5044, %v5048
      %v5053 = vand.u32 2147483647, %v4952
      %vm5054 = vcmp.eq.f32.partialorder %v5053, 8.507059e+37
      %v5055 = vand.u32 %v4952, 2147483648
      %v5056 = vor.u32 1.1754944e-38, %v5055
      %v5057 = vsel %vm5054, %v5056, %v5052
      %v5058 = vmul.f32 1.0, %v5057
      %v5059 = vrcp.pop %v4953
      %v5060 = vmul.f32 %v4953, %v5059
      %v5061 = vsub.f32 1.0, %v5060
      %v5062 = vmul.f32 %v5059, %v5061
      %v5063 = vadd.f32 %v5059, %v5062
      %vm5064 = vweird.f32 %v4953
      %vm5065 = vweird.f32 %v5059
      %vm5066 = vmor %vm5064, %vm5065
      %v5067 = vsel %vm5066, %v5059, %v5063
      %v5068 = vand.u32 2147483647, %v4953
      %vm5069 = vcmp.eq.f32.partialorder %v5068, 8.507059e+37
      %v5070 = vand.u32 %v4953, 2147483648
      %v5071 = vor.u32 1.1754944e-38, %v5070
      %v5072 = vsel %vm5069, %v5071, %v5067
      %v5073 = vmul.f32 1.0, %v5072
      %v5074 = vmul.f32 %v4914, %v4968
      %v5075 = vmul.f32 %v4915, %v4983
      %v5076 = vmul.f32 %v4916, %v4998
      %v5077 = vmul.f32 %v4917, %v5013
      %v5078 = vmul.f32 %v4918, %v5028
      %v5079 = vmul.f32 %v4919, %v5043
      %v5080 = vmul.f32 %v4920, %v5058
      %v5081 = vmul.f32 %v4921, %v5073
      %v5082 = vld [vmem:[%s11 + $0x60] sm:$0x33]
      %v5083 = vld [vmem:[%s11 + $0x68] sm:$0x3]
      %v5084 = vld [vmem:[%s7] sm:$0xf]
      %5085 = vrot.lane.b32.xlu0 %v5074, 17
      %v5086 = vpop.permute.xlu0 %5085
      %5087 = vrot.lane.b32.xlu0 %v5076, 17
      %v5088 = vpop.permute.xlu0 %5087
      %5089 = vrot.lane.b32.xlu0 %v5078, 17
      %v5090 = vpop.permute.xlu0 %5089
      %5091 = vrot.lane.b32.xlu0 %v5080, 17
      %v5092 = vpop.permute.xlu0 %5091
      %5093 = vrot.lane.b32.xlu0 %v5075, 17
      %v5094 = vpop.permute.xlu0 %5093
      %5095 = vrot.lane.b32.xlu0 %v5077, 17
      %v5096 = vpop.permute.xlu0 %5095
      %5097 = vrot.lane.b32.xlu0 %v5079, 17
      %v5098 = vpop.permute.xlu0 %5097
      %5099 = vrot.lane.b32.xlu0 %v5081, 17
      %v5100 = vpop.permute.xlu0 %5099
      %v5101 = vsel %vm1081, %v5086, %v5094
      %v5102 = vsel %vm1081, %v5088, %v5096
      %v5103 = vsel %vm1081, %v5090, %v5098
      %v5104 = vsel %vm1081, %v5092, %v5100
      %v5105 = vsel %vm1081, %v5094, %v5086
      %v5106 = vsel %vm1081, %v5096, %v5088
      %v5107 = vsel %vm1081, %v5098, %v5090
      %v5108 = vsel %vm1081, %v5100, %v5092
      %v5109 = vmul.f32 %v5105, %v1084
      %v5110 = vmul.f32 %v5101, %v1085
      %v5111 = vmul.f32 %v5106, %v1084
      %v5112 = vmul.f32 %v5102, %v1085
      %v5113 = vmul.f32 %v5107, %v1084
      %v5114 = vmul.f32 %v5103, %v1085
      %v5115 = vmul.f32 %v5108, %v1084
      %v5116 = vmul.f32 %v5104, %v1085
      %v5117 = vpack.c.bf16 %v5110, %v5109
      %v5118 = vpack.c.bf16 %v5112, %v5111
      %v5119 = vpack.c.bf16 %v5114, %v5113
      %v5120 = vpack.c.bf16 %v5116, %v5115
      %5121 = vrot.lane.b32.xlu0 %v5074, 16
      %v5122 = vpop.permute.xlu0 %5121
      %5123 = vrot.lane.b32.xlu0 %v5076, 16
      %v5124 = vpop.permute.xlu0 %5123
      %5125 = vrot.lane.b32.xlu0 %v5078, 16
      %v5126 = vpop.permute.xlu0 %5125
      %5127 = vrot.lane.b32.xlu0 %v5080, 16
      %v5128 = vpop.permute.xlu0 %5127
      %5129 = vrot.lane.b32.xlu0 %v5075, 16
      %v5130 = vpop.permute.xlu0 %5129
      %5131 = vrot.lane.b32.xlu0 %v5077, 16
      %v5132 = vpop.permute.xlu0 %5131
      %5133 = vrot.lane.b32.xlu0 %v5079, 16
      %v5134 = vpop.permute.xlu0 %5133
      %5135 = vrot.lane.b32.xlu0 %v5081, 16
      %v5136 = vpop.permute.xlu0 %5135
      %v5137 = vsel %vm1097, %v5122, %v5130
      %v5138 = vsel %vm1097, %v5124, %v5132
      %v5139 = vsel %vm1097, %v5126, %v5134
      %v5140 = vsel %vm1097, %v5128, %v5136
      %v5141 = vsel %vm1097, %v5130, %v5122
      %v5142 = vsel %vm1097, %v5132, %v5124
      %v5143 = vsel %vm1097, %v5134, %v5126
      %v5144 = vsel %vm1097, %v5136, %v5128
      %v5145 = vmul.f32 %v5141, %v1100
      %v5146 = vmul.f32 %v5137, %v1101
      %v5147 = vmul.f32 %v5142, %v1100
      %v5148 = vmul.f32 %v5138, %v1101
      %v5149 = vmul.f32 %v5143, %v1100
      %v5150 = vmul.f32 %v5139, %v1101
      %v5151 = vmul.f32 %v5144, %v1100
      %v5152 = vmul.f32 %v5140, %v1101
      %v5153 = vpack.c.bf16 %v5146, %v5145
      %v5154 = vpack.c.bf16 %v5148, %v5147
      %v5155 = vpack.c.bf16 %v5150, %v5149
      %v5156 = vpack.c.bf16 %v5152, %v5151
      %5157 = vrot.lane.b32.xlu0 %v5074, 15
      %v5158 = vpop.permute.xlu0 %5157
      %5159 = vrot.lane.b32.xlu0 %v5076, 15
      %v5160 = vpop.permute.xlu0 %5159
      %5161 = vrot.lane.b32.xlu0 %v5078, 15
      %v5162 = vpop.permute.xlu0 %5161
      %5163 = vrot.lane.b32.xlu0 %v5080, 15
      %v5164 = vpop.permute.xlu0 %5163
      %5165 = vrot.lane.b32.xlu0 %v5075, 15
      %v5166 = vpop.permute.xlu0 %5165
      %5167 = vrot.lane.b32.xlu0 %v5077, 15
      %v5168 = vpop.permute.xlu0 %5167
      %5169 = vrot.lane.b32.xlu0 %v5079, 15
      %v5170 = vpop.permute.xlu0 %5169
      %5171 = vrot.lane.b32.xlu0 %v5081, 15
      %v5172 = vpop.permute.xlu0 %5171
      %v5173 = vsel %vm1271, %v5158, %v5166
      %v5174 = vsel %vm1271, %v5160, %v5168
      %v5175 = vsel %vm1271, %v5162, %v5170
      %v5176 = vsel %vm1271, %v5164, %v5172
      %v5177 = vsel %vm1271, %v5166, %v5158
      %v5178 = vsel %vm1271, %v5168, %v5160
      %v5179 = vsel %vm1271, %v5170, %v5162
      %v5180 = vsel %vm1271, %v5172, %v5164
      %v5181 = vmul.f32 %v5177, %v1274
      %v5182 = vmul.f32 %v5173, %v1275
      %v5183 = vmul.f32 %v5178, %v1274
      %v5184 = vmul.f32 %v5174, %v1275
      %v5185 = vmul.f32 %v5179, %v1274
      %v5186 = vmul.f32 %v5175, %v1275
      %v5187 = vmul.f32 %v5180, %v1274
      %v5188 = vmul.f32 %v5176, %v1275
      %v5189 = vpack.c.bf16 %v5182, %v5181
      %v5190 = vpack.c.bf16 %v5184, %v5183
      %v5191 = vpack.c.bf16 %v5186, %v5185
      %v5192 = vpack.c.bf16 %v5188, %v5187
      %5193 = vrot.lane.b32.xlu0 %v5074, 1
      %v5194 = vpop.permute.xlu0 %5193
      %5195 = vrot.lane.b32.xlu0 %v5076, 1
      %v5196 = vpop.permute.xlu0 %5195
      %5197 = vrot.lane.b32.xlu0 %v5078, 1
      %v5198 = vpop.permute.xlu0 %5197
      %5199 = vrot.lane.b32.xlu0 %v5080, 1
      %v5200 = vpop.permute.xlu0 %5199
      %5201 = vrot.lane.b32.xlu0 %v5075, 1
      %v5202 = vpop.permute.xlu0 %5201
      %5203 = vrot.lane.b32.xlu0 %v5077, 1
      %v5204 = vpop.permute.xlu0 %5203
      %5205 = vrot.lane.b32.xlu0 %v5079, 1
      %v5206 = vpop.permute.xlu0 %5205
      %5207 = vrot.lane.b32.xlu0 %v5081, 1
      %v5208 = vpop.permute.xlu0 %5207
      %v5209 = vsel %vm1375, %v5194, %v5202
      %v5210 = vsel %vm1375, %v5196, %v5204
      %v5211 = vsel %vm1375, %v5198, %v5206
      %v5212 = vsel %vm1375, %v5200, %v5208
      %v5213 = vsel %vm1375, %v5202, %v5194
      %v5214 = vsel %vm1375, %v5204, %v5196
      %v5215 = vsel %vm1375, %v5206, %v5198
      %v5216 = vsel %vm1375, %v5208, %v5200
      %v5217 = vmul.f32 %v5213, %v1378
      %v5218 = vmul.f32 %v5209, %v1379
      %v5219 = vmul.f32 %v5214, %v1378
      %v5220 = vmul.f32 %v5210, %v1379
      %v5221 = vmul.f32 %v5215, %v1378
      %v5222 = vmul.f32 %v5211, %v1379
      %v5223 = vmul.f32 %v5216, %v1378
      %v5224 = vmul.f32 %v5212, %v1379
      %v5225 = vpack.c.bf16 %v5218, %v5217
      %v5226 = vpack.c.bf16 %v5220, %v5219
      %v5227 = vpack.c.bf16 %v5222, %v5221
      %v5228 = vpack.c.bf16 %v5224, %v5223
      %v5229 = vpack.c.bf16 %v5075, %v5074
      %v5230 = vpack.c.bf16 %v5077, %v5076
      %v5231 = vpack.c.bf16 %v5079, %v5078
      %v5232 = vpack.c.bf16 %v5081, %v5080
      %5233 = vrot.lane.b32.xlu0 %v5074, 127
      %v5234 = vpop.permute.xlu0 %5233
      %5235 = vrot.lane.b32.xlu0 %v5076, 127
      %v5236 = vpop.permute.xlu0 %5235
      %5237 = vrot.lane.b32.xlu0 %v5078, 127
      %v5238 = vpop.permute.xlu0 %5237
      %5239 = vrot.lane.b32.xlu0 %v5080, 127
      %v5240 = vpop.permute.xlu0 %5239
      %5241 = vrot.lane.b32.xlu0 %v5075, 127
      %v5242 = vpop.permute.xlu0 %5241
      %5243 = vrot.lane.b32.xlu0 %v5077, 127
      %v5244 = vpop.permute.xlu0 %5243
      %5245 = vrot.lane.b32.xlu0 %v5079, 127
      %v5246 = vpop.permute.xlu0 %5245
      %5247 = vrot.lane.b32.xlu0 %v5081, 127
      %v5248 = vpop.permute.xlu0 %5247
      %v5249 = vsel %vm1568, %v5234, %v5242
      %v5250 = vsel %vm1568, %v5236, %v5244
      %v5251 = vsel %vm1568, %v5238, %v5246
      %v5252 = vsel %vm1568, %v5240, %v5248
      %v5253 = vsel %vm1568, %v5242, %v5234
      %v5254 = vsel %vm1568, %v5244, %v5236
      %v5255 = vsel %vm1568, %v5246, %v5238
      %v5256 = vsel %vm1568, %v5248, %v5240
      %v5257 = vmul.f32 %v5249, %v1571
      %v5258 = vmul.f32 %v5253, %v1572
      %v5259 = vmul.f32 %v5250, %v1571
      %v5260 = vmul.f32 %v5254, %v1572
      %v5261 = vmul.f32 %v5251, %v1571
      %v5262 = vmul.f32 %v5255, %v1572
      %v5263 = vmul.f32 %v5252, %v1571
      %v5264 = vmul.f32 %v5256, %v1572
      %v5265 = vpack.c.bf16 %v5258, %v5257
      %v5266 = vpack.c.bf16 %v5260, %v5259
      %v5267 = vpack.c.bf16 %v5262, %v5261
      %v5268 = vpack.c.bf16 %v5264, %v5263
      %5269 = vrot.lane.b32.xlu0 %v5074, 113
      %v5270 = vpop.permute.xlu0 %5269
      %5271 = vrot.lane.b32.xlu0 %v5076, 113
      %v5272 = vpop.permute.xlu0 %5271
      %5273 = vrot.lane.b32.xlu0 %v5078, 113
      %v5274 = vpop.permute.xlu0 %5273
      %5275 = vrot.lane.b32.xlu0 %v5080, 113
      %v5276 = vpop.permute.xlu0 %5275
      %5277 = vrot.lane.b32.xlu0 %v5075, 113
      %v5278 = vpop.permute.xlu0 %5277
      %5279 = vrot.lane.b32.xlu0 %v5077, 113
      %v5280 = vpop.permute.xlu0 %5279
      %5281 = vrot.lane.b32.xlu0 %v5079, 113
      %v5282 = vpop.permute.xlu0 %5281
      %5283 = vrot.lane.b32.xlu0 %v5081, 113
      %v5284 = vpop.permute.xlu0 %5283
      %v5285 = vsel %vm1672, %v5270, %v5278
      %v5286 = vsel %vm1672, %v5272, %v5280
      %v5287 = vsel %vm1672, %v5274, %v5282
      %v5288 = vsel %vm1672, %v5276, %v5284
      %v5289 = vsel %vm1672, %v5278, %v5270
      %v5290 = vsel %vm1672, %v5280, %v5272
      %v5291 = vsel %vm1672, %v5282, %v5274
      %v5292 = vsel %vm1672, %v5284, %v5276
      %v5293 = vmul.f32 %v5285, %v1675
      %v5294 = vmul.f32 %v5289, %v1676
      %v5295 = vmul.f32 %v5286, %v1675
      %v5296 = vmul.f32 %v5290, %v1676
      %v5297 = vmul.f32 %v5287, %v1675
      %v5298 = vmul.f32 %v5291, %v1676
      %v5299 = vmul.f32 %v5288, %v1675
      %v5300 = vmul.f32 %v5292, %v1676
      %v5301 = vpack.c.bf16 %v5294, %v5293
      %v5302 = vpack.c.bf16 %v5296, %v5295
      %v5303 = vpack.c.bf16 %v5298, %v5297
      %v5304 = vpack.c.bf16 %v5300, %v5299
      %5305 = vrot.lane.b32.xlu0 %v5074, 112
      %v5306 = vpop.permute.xlu0 %5305
      %5307 = vrot.lane.b32.xlu0 %v5076, 112
      %v5308 = vpop.permute.xlu0 %5307
      %5309 = vrot.lane.b32.xlu0 %v5078, 112
      %v5310 = vpop.permute.xlu0 %5309
      %5311 = vrot.lane.b32.xlu0 %v5080, 112
      %v5312 = vpop.permute.xlu0 %5311
      %5313 = vrot.lane.b32.xlu0 %v5075, 112
      %v5314 = vpop.permute.xlu0 %5313
      %5315 = vrot.lane.b32.xlu0 %v5077, 112
      %v5316 = vpop.permute.xlu0 %5315
      %5317 = vrot.lane.b32.xlu0 %v5079, 112
      %v5318 = vpop.permute.xlu0 %5317
      %5319 = vrot.lane.b32.xlu0 %v5081, 112
      %v5320 = vpop.permute.xlu0 %5319
      %v5321 = vsel %vm1776, %v5306, %v5314
      %v5322 = vsel %vm1776, %v5308, %v5316
      %v5323 = vsel %vm1776, %v5310, %v5318
      %v5324 = vsel %vm1776, %v5312, %v5320
      %v5325 = vsel %vm1776, %v5314, %v5306
      %v5326 = vsel %vm1776, %v5316, %v5308
      %v5327 = vsel %vm1776, %v5318, %v5310
      %v5328 = vsel %vm1776, %v5320, %v5312
      %v5329 = vmul.f32 %v5321, %v1779
      %v5330 = vmul.f32 %v5325, %v1780
      %v5331 = vmul.f32 %v5322, %v1779
      %v5332 = vmul.f32 %v5326, %v1780
      %v5333 = vmul.f32 %v5323, %v1779
      %v5334 = vmul.f32 %v5327, %v1780
      %v5335 = vmul.f32 %v5324, %v1779
      %v5336 = vmul.f32 %v5328, %v1780
      %v5337 = vpack.c.bf16 %v5330, %v5329
      %v5338 = vpack.c.bf16 %v5332, %v5331
      %v5339 = vpack.c.bf16 %v5334, %v5333
      %v5340 = vpack.c.bf16 %v5336, %v5335
      %5341 = vrot.lane.b32.xlu0 %v5074, 111
      %v5342 = vpop.permute.xlu0 %5341
      %5343 = vrot.lane.b32.xlu0 %v5076, 111
      %v5344 = vpop.permute.xlu0 %5343
      %5345 = vrot.lane.b32.xlu0 %v5078, 111
      %v5346 = vpop.permute.xlu0 %5345
      %5347 = vrot.lane.b32.xlu0 %v5080, 111
      %v5348 = vpop.permute.xlu0 %5347
      %5349 = vrot.lane.b32.xlu0 %v5075, 111
      %v5350 = vpop.permute.xlu0 %5349
      %5351 = vrot.lane.b32.xlu0 %v5077, 111
      %v5352 = vpop.permute.xlu0 %5351
      %5353 = vrot.lane.b32.xlu0 %v5079, 111
      %v5354 = vpop.permute.xlu0 %5353
      %5355 = vrot.lane.b32.xlu0 %v5081, 111
      %v5356 = vpop.permute.xlu0 %5355
      %v5357 = vsel %vm1880, %v5342, %v5350
      %v5358 = vsel %vm1880, %v5344, %v5352
      %v5359 = vsel %vm1880, %v5346, %v5354
      %v5360 = vsel %vm1880, %v5348, %v5356
      %v5361 = vsel %vm1880, %v5350, %v5342
      %v5362 = vsel %vm1880, %v5352, %v5344
      %v5363 = vsel %vm1880, %v5354, %v5346
      %v5364 = vsel %vm1880, %v5356, %v5348
      %v5365 = vmul.f32 %v5357, %v1883
      %v5366 = vmul.f32 %v5361, %v1884
      %v5367 = vmul.f32 %v5358, %v1883
      %v5368 = vmul.f32 %v5362, %v1884
      %v5369 = vmul.f32 %v5359, %v1883
      %v5370 = vmul.f32 %v5363, %v1884
      %v5371 = vmul.f32 %v5360, %v1883
      %v5372 = vmul.f32 %v5364, %v1884
      %v5373 = vpack.c.bf16 %v5366, %v5365
      %v5374 = vpack.c.bf16 %v5368, %v5367
      %v5375 = vpack.c.bf16 %v5370, %v5369
      %v5376 = vpack.c.bf16 %v5372, %v5371
      %v5381 = vunpack.c.l.b16 %v5117
      %v5382 = vunpack.c.h.b16 %v5117
      %v5383 = vunpack.c.l.b16 %v5118
      %v5384 = vunpack.c.h.b16 %v5118
      %v5385 = vunpack.c.l.b16 %v5119
      %v5386 = vunpack.c.h.b16 %v5119
      %v5387 = vunpack.c.l.b16 %v5120
      %v5388 = vunpack.c.h.b16 %v5120
      %v5389 = vpack.c.b16 %v5383, %v5381
      %v5390 = vpack.c.b16 %v5384, %v5382
      %v5391 = vpack.c.b16 %v5387, %v5385
      %v5392 = vpack.c.b16 %v5388, %v5386
      %v5401 = vunpack.c.l.b16 %v5153
      %v5402 = vunpack.c.h.b16 %v5153
      %v5403 = vunpack.c.l.b16 %v5154
      %v5404 = vunpack.c.h.b16 %v5154
      %v5405 = vunpack.c.l.b16 %v5155
      %v5406 = vunpack.c.h.b16 %v5155
      %v5407 = vunpack.c.l.b16 %v5156
      %v5408 = vunpack.c.h.b16 %v5156
      %v5409 = vpack.c.b16 %v5403, %v5401
      %v5410 = vpack.c.b16 %v5404, %v5402
      %v5411 = vpack.c.b16 %v5407, %v5405
      %v5412 = vpack.c.b16 %v5408, %v5406
      %v5421 = vunpack.c.l.b16 %v5189
      %v5422 = vunpack.c.h.b16 %v5189
      %v5423 = vunpack.c.l.b16 %v5190
      %v5424 = vunpack.c.h.b16 %v5190
      %v5425 = vunpack.c.l.b16 %v5191
      %v5426 = vunpack.c.h.b16 %v5191
      %v5427 = vunpack.c.l.b16 %v5192
      %v5428 = vunpack.c.h.b16 %v5192
      %v5429 = vpack.c.b16 %v5423, %v5421
      %v5430 = vpack.c.b16 %v5424, %v5422
      %v5431 = vpack.c.b16 %v5427, %v5425
      %v5432 = vpack.c.b16 %v5428, %v5426
      %v5441 = vunpack.c.l.b16 %v5225
      %v5442 = vunpack.c.h.b16 %v5225
      %v5443 = vunpack.c.l.b16 %v5226
      %v5444 = vunpack.c.h.b16 %v5226
      %v5445 = vunpack.c.l.b16 %v5227
      %v5446 = vunpack.c.h.b16 %v5227
      %v5447 = vunpack.c.l.b16 %v5228
      %v5448 = vunpack.c.h.b16 %v5228
      %v5449 = vpack.c.b16 %v5443, %v5441
      %v5450 = vpack.c.b16 %v5444, %v5442
      %v5451 = vpack.c.b16 %v5447, %v5445
      %v5452 = vpack.c.b16 %v5448, %v5446
      %v5461 = vunpack.c.l.b16 %v5229
      %v5462 = vunpack.c.h.b16 %v5229
      %v5463 = vunpack.c.l.b16 %v5230
      %v5464 = vunpack.c.h.b16 %v5230
      %v5465 = vunpack.c.l.b16 %v5231
      %v5466 = vunpack.c.h.b16 %v5231
      %v5467 = vunpack.c.l.b16 %v5232
      %v5468 = vunpack.c.h.b16 %v5232
      %v5469 = vpack.c.b16 %v5463, %v5461
      %v5470 = vpack.c.b16 %v5464, %v5462
      %v5471 = vpack.c.b16 %v5467, %v5465
      %v5472 = vpack.c.b16 %v5468, %v5466
      %v5481 = vunpack.c.l.b16 %v5265
      %v5482 = vunpack.c.h.b16 %v5265
      %v5483 = vunpack.c.l.b16 %v5266
      %v5484 = vunpack.c.h.b16 %v5266
      %v5485 = vunpack.c.l.b16 %v5267
      %v5486 = vunpack.c.h.b16 %v5267
      %v5487 = vunpack.c.l.b16 %v5268
      %v5488 = vunpack.c.h.b16 %v5268
      %v5489 = vpack.c.b16 %v5483, %v5481
      %v5490 = vpack.c.b16 %v5484, %v5482
      %v5491 = vpack.c.b16 %v5487, %v5485
      %v5492 = vpack.c.b16 %v5488, %v5486
      %v5501 = vunpack.c.l.b16 %v5301
      %v5502 = vunpack.c.h.b16 %v5301
      %v5503 = vunpack.c.l.b16 %v5302
      %v5504 = vunpack.c.h.b16 %v5302
      %v5505 = vunpack.c.l.b16 %v5303
      %v5506 = vunpack.c.h.b16 %v5303
      %v5507 = vunpack.c.l.b16 %v5304
      %v5508 = vunpack.c.h.b16 %v5304
      %v5509 = vpack.c.b16 %v5503, %v5501
      %v5510 = vpack.c.b16 %v5504, %v5502
      %v5511 = vpack.c.b16 %v5507, %v5505
      %v5512 = vpack.c.b16 %v5508, %v5506
      %v5521 = vunpack.c.l.b16 %v5337
      %v5522 = vunpack.c.h.b16 %v5337
      %v5523 = vunpack.c.l.b16 %v5338
      %v5524 = vunpack.c.h.b16 %v5338
      %v5525 = vunpack.c.l.b16 %v5339
      %v5526 = vunpack.c.h.b16 %v5339
      %v5527 = vunpack.c.l.b16 %v5340
      %v5528 = vunpack.c.h.b16 %v5340
      %v5529 = vpack.c.b16 %v5523, %v5521
      %v5530 = vpack.c.b16 %v5524, %v5522
      %v5531 = vpack.c.b16 %v5527, %v5525
      %v5532 = vpack.c.b16 %v5528, %v5526
      %v5541 = vunpack.c.l.b16 %v5373
      %v5542 = vunpack.c.h.b16 %v5373
      %v5543 = vunpack.c.l.b16 %v5374
      %v5544 = vunpack.c.h.b16 %v5374
      %v5545 = vunpack.c.l.b16 %v5375
      %v5546 = vunpack.c.h.b16 %v5375
      %v5547 = vunpack.c.l.b16 %v5376
      %v5548 = vunpack.c.h.b16 %v5376
      %v5549 = vpack.c.b16 %v5543, %v5541
      %v5550 = vpack.c.b16 %v5544, %v5542
      %v5551 = vpack.c.b16 %v5547, %v5545
      %v5552 = vpack.c.b16 %v5548, %v5546
      %5558 = vset.pattern.permute.xlu0 12
      %5559 = vperm.xlu0 %5558, %v5084
      %v5560 = vpop.permute.xlu0 %5559
      %v5564 = vunpack.c.l.b16 %v5082
      %v5565 = vunpack.c.h.b16 %v5082
      %v5566 = vunpack.c.l.b16 %v5083
      %v5567 = vpack.c.b16 %v5564, %v5564
      %v5568 = vpack.c.b16 %v5565, %v5565
      %v5569 = vpack.c.b16 %v5566, %v5566
      %v5573 = vsel %vm507, %v5569, 0
      %5575 = vmatpush.bf16.msra.mxu0 %v5451
      %5576 = vmatpush.bf16.msra.mxu0 %v5449
      %5577 = vmatpush.bf16.msra.mxu0 %v5431
      %5578 = vmatpush.bf16.msra.mxu0 %v5429
      %5579 = vmatpush.bf16.msra.mxu0 %v5411
      %5580 = vmatpush.bf16.msra.mxu0 %v5409
      %5581 = vmatpush.bf16.msra.mxu0 %v5391
      %5582 = vmatpush.bf16.msra.mxu0 %v5389
      %5583 = vmatmul.bf16.gmra.mxu0 %v5567
      %v5584 = vpop.f32.mrf.mxu0
      %v5585 = vadd.f32 %v5560, %v5584
      %v5586 = vpop.f32.mrf.mxu0
      %5587 = vdwg.mxu0
      %5588 = vmatpush.bf16.msra.mxu0 %v5531
      %5589 = vmatpush.bf16.msra.mxu0 %v5529
      %5590 = vmatpush.bf16.msra.mxu0 %v5511
      %5591 = vmatpush.bf16.msra.mxu0 %v5509
      %5592 = vmatpush.bf16.msra.mxu0 %v5491
      %5593 = vmatpush.bf16.msra.mxu0 %v5489
      %5594 = vmatpush.bf16.msra.mxu0 %v5471
      %5595 = vmatpush.bf16.msra.mxu0 %v5469
      %5596 = vmatmul.bf16.gmra.mxu0 %v5568
      %v5597 = vpop.f32.mrf.mxu0
      %v5598 = vadd.f32 %v5585, %v5597
      %v5599 = vpop.f32.mrf.mxu0
      %5600 = vdwg.mxu0
      %5601 = vmatpush.bf16.msra.mxu0 0
      %5602 = vmatpush.bf16.msra.mxu0 0
      %5603 = vmatpush.bf16.msra.mxu0 0
      %5604 = vmatpush.bf16.msra.mxu0 0
      %5605 = vmatpush.bf16.msra.mxu0 0
      %5606 = vmatpush.bf16.msra.mxu0 0
      %5607 = vmatpush.bf16.msra.mxu0 %v5551
      %5608 = vmatpush.bf16.msra.mxu0 %v5549
      %5609 = vmatmul.bf16.gmra.mxu0 %v5573
      %v5610 = vpop.f32.mrf.mxu0
      %v5611 = vadd.f32 %v5598, %v5610
      %v5612 = vpop.f32.mrf.mxu0
      %5613 = vdwg.mxu0
      %5614 = vmatpush.bf16.msra.mxu0 %v5452
      %5615 = vmatpush.bf16.msra.mxu0 %v5450
      %5616 = vmatpush.bf16.msra.mxu0 %v5432
      %5617 = vmatpush.bf16.msra.mxu0 %v5430
      %5618 = vmatpush.bf16.msra.mxu0 %v5412
      %5619 = vmatpush.bf16.msra.mxu0 %v5410
      %5620 = vmatpush.bf16.msra.mxu0 %v5392
      %5621 = vmatpush.bf16.msra.mxu0 %v5390
      %5622 = vmatmul.bf16.gmra.mxu0 %v5567
      %v5623 = vpop.f32.mrf.mxu0
      %v5624 = vadd.f32 %v5560, %v5623
      %v5625 = vpop.f32.mrf.mxu0
      %5626 = vdwg.mxu0
      %5627 = vmatpush.bf16.msra.mxu0 %v5532
      %5628 = vmatpush.bf16.msra.mxu0 %v5530
      %5629 = vmatpush.bf16.msra.mxu0 %v5512
      %5630 = vmatpush.bf16.msra.mxu0 %v5510
      %5631 = vmatpush.bf16.msra.mxu0 %v5492
      %5632 = vmatpush.bf16.msra.mxu0 %v5490
      %5633 = vmatpush.bf16.msra.mxu0 %v5472
      %5634 = vmatpush.bf16.msra.mxu0 %v5470
      %5635 = vmatmul.bf16.gmra.mxu0 %v5568
      %v5636 = vpop.f32.mrf.mxu0
      %v5637 = vadd.f32 %v5624, %v5636
      %v5638 = vpop.f32.mrf.mxu0
      %5639 = vdwg.mxu0
      %5640 = vmatpush.bf16.msra.mxu0 0
      %5641 = vmatpush.bf16.msra.mxu0 0
      %5642 = vmatpush.bf16.msra.mxu0 0
      %5643 = vmatpush.bf16.msra.mxu0 0
      %5644 = vmatpush.bf16.msra.mxu0 0
      %5645 = vmatpush.bf16.msra.mxu0 0
      %5646 = vmatpush.bf16.msra.mxu0 %v5552
      %5647 = vmatpush.bf16.msra.mxu0 %v5550
      %5648 = vmatmul.bf16.gmra.mxu0 %v5573
      %v5649 = vpop.f32.mrf.mxu0
      %v5650 = vadd.f32 %v5637, %v5649
      %v5651 = vpop.f32.mrf.mxu0
      %5652 = vdwg.mxu0
      %v5655 = vrot.slane %v5650, 4
      %v5656 = vsel %vm1125, %v5611, %v5655
      %5658 = vst [vmem:[%s477] sm:$0xff] %v5656
      %p5659 = scmp.lt.s32.totalorder %s24, 1
      %s5660 = scalar_select %p5659, %s24, 1
      %s5661 = smul.addr %s5660, 2
      %s5662 = smul.addr %s5661, 4
      %s5663 = scalar_lea.vmem %s13, %s5662
      // Predicated region
      $region73: #{unet_export_wrapper_forward.1} parent=71 // pred_check
        %p5664 = pneg %p330
      $region74: #{unet_export_wrapper_forward.1} parent=71 // pred_check_branch
        %5666 = sbr.rel (%p5664) target = $region76
      $region75: #{unet_export_wrapper_forward.1} parent=71 // pred_region
        _
      $region76: #{unet_export_wrapper_forward.1} parent=71 // pred_fallthru
        _
    $region72: #{unet_export_wrapper_forward.1} parent=5 // pred_fallthru
      _
    %p5667 = scmp.le.s32.totalorder 2, %s19
    // Predicated region
    $region77: #{unet_export_wrapper_forward.1} parent=5 // pred_check
      %p5668 = pneg %p5667
    $region78: #{unet_export_wrapper_forward.1} parent=5 // pred_check_branch
      %5670 = sbr.rel (%p5668) target = $region80
    $region79: #{unet_export_wrapper_forward.1} parent=5 // pred_region
      %s5671 = ssub.s32 %s19, 2
      // Predicated region
      $region81: #{unet_export_wrapper_forward.1} parent=79 // pred_check
        %p5672 = pneg %p336
      $region82: #{unet_export_wrapper_forward.1} parent=79 // pred_check_branch
        %5674 = sbr.rel (%p5672) target = $region84
      $region83: #{unet_export_wrapper_forward.1} parent=79 // pred_region
        %p5675 = scmp.lt.s32.totalorder %s25, 1
        %s5676 = scalar_select %p5675, %s25, 1
        %s5677 = smul.addr %s5676, 2
        %s5678 = smul.addr %s5677, 4
        %s5679 = scalar_lea.vmem %s13, %s5678
      $region84: #{unet_export_wrapper_forward.1} parent=79 // pred_fallthru
        _
    $region80: #{unet_export_wrapper_forward.1} parent=5 // pred_fallthru
      _
  $region6: #{unet_export_wrapper_forward.1} parent=0 // loop_footer
    %s23 = sadd.s32 1, %s19
  $region7: #{unet_export_wrapper_forward.1} parent=0 // loop_footer_branch
    %18 = sbr.rel target = $region3
  $region8: #{unet_export_wrapper_forward.1} parent=0 // loop_exit
    _

</llo_original>
